<compile_context>
chip_gen: v6e
topology: v6e:2x2x1
jax: 0.10.0
libtpu: 0.0.40
codegen_flags: <defaults>
</compile_context>

<pallas_src>
import math

import jax
import jax.numpy as jnp
from jax import lax
from jax.experimental import pallas as pl
from jax.experimental.pallas import tpu as pltpu


def mamba_block_kernel(x_ref, w_in_ref, b_in_ref, w_x_ref, b_dt_ref, a_ref,
                       w_out_ref, b_out_ref, out_ref, h_carry):
    TL = x_ref.shape[0]
    d_ff = w_out_ref.shape[0]
    d_state = a_ref.shape[0]
    seg_s = (w_x_ref.shape[1] - 2 * d_ff) // 2       # 128-padded B / C segment width

    # Reset the carried SSM state at the start of every sequence.
    @pl.when(pl.program_id(1) == 0)
    def _():
        h_carry[...] = jnp.zeros_like(h_carry)

    x = x_ref[...]                                                  # (TL, d_model) bf16

    # ---- fused in_proj: one bf16 MXU matmul for both halves ----------------
    xz = jnp.dot(x, w_in_ref[...], preferred_element_type=jnp.float32) + b_in_ref[...]
    xs = xz[:, :d_ff]
    zz = xz[:, d_ff:]
    xs = xs * jax.nn.sigmoid(xs)                                    # SiLU (f32)

    # ---- fused, lane-aligned x_proj (dt_proj folded into the weight) --------
    # column layout of w_x_ref: [ D | delta | B(pad 128) | C(pad 128) ]
    dbc = jnp.dot(xs.astype(jnp.bfloat16), w_x_ref[...],
                  preferred_element_type=jnp.float32)               # (TL, 2*d_ff+2*seg_s)
    Dm = dbc[:, :d_ff]                                              # lane-0 aligned
    delta = jax.nn.softplus(dbc[:, d_ff:2 * d_ff] + b_dt_ref[...])  # lane d_ff aligned
    Bm = dbc[:, 2 * d_ff:2 * d_ff + d_state]                        # (TL, d_state)
    Cm = dbc[:, 2 * d_ff + seg_s:2 * d_ff + seg_s + d_state]        # (TL, d_state)

    dx = delta * xs                                                 # (TL, d_ff)

    # ---- chunk-parallel selective scan (per-state doubling scan) ------------
    # per state s: h_t = exp(A_s*delta_t) * h_{t-1} + delta_t*x_t*B_t[s].
    # The affine maps (ga, gb) compose associatively -> Hillis-Steele inclusive
    # scan in log2(TL) dense (TL, d_ff) steps.  Shifts go through the XLU
    # (pltpu.roll); boundary fill is one select on a hoisted row mask shared by
    # every state.  y_t = sum_s C_t[s] * h_t + D_t * x_t.
    row = lax.broadcasted_iota(jnp.int32, (TL, 1), 0)
    shifts, masks = [], []
    d = 1
    while d < TL:
        shifts.append(d)
        masks.append(row >= d)
        d *= 2

    h_prev = h_carry[...]                                           # (d_state, d_ff), one read
    y = Dm * xs
    h_last = []
    for s in range(d_state):
        a_s = a_ref[s]                                              # scalar = -exp(A_log[s])
        ga = jnp.exp(delta * a_s)                                   # (TL, d_ff) dense EUP
        gb = dx * Bm[:, s:s + 1]                                    # (TL, d_ff)
        for dd, m in zip(shifts, masks):
            ga_sh = jnp.where(m, pltpu.roll(ga, shift=dd, axis=0), 1.0)
            gb_sh = jnp.where(m, pltpu.roll(gb, shift=dd, axis=0), 0.0)
            gb = ga * gb_sh + gb
            ga = ga * ga_sh
        h_s = ga * h_prev[s:s + 1, :] + gb                          # h_t for all t, state s
        y = y + Cm[:, s:s + 1] * h_s
        h_last.append(h_s[TL - 1:TL, :])
    h_carry[...] = jnp.concatenate(h_last, axis=0)                  # carry, single store

    # ---- gate + out_proj -----------------------------------------------------
    zg = zz * jax.nn.sigmoid(zz)                                    # SiLU(z)
    out = jnp.dot((y * zg).astype(jnp.bfloat16), w_out_ref[...],
                  preferred_element_type=jnp.float32) + b_out_ref[...]
    out_ref[...] = out.astype(out_ref.dtype)


def _round_up(n, m):
    return -(-n // m) * m


def _tpu_vmem_capacity():
    try:
        return getattr(pltpu.get_tpu_info(), "vmem_capacity_bytes", None)
    except Exception:
        return None


def _pick_seq_tile(L, vmem_cap_bytes):
    # Scan VALU work per token grows with log2(TL) and every live (TL, d_ff) f32
    # temporary costs TL*d_ff*4 bytes, while grid-step overhead (~0.35us) and MXU
    # M-dim efficiency saturate around 128-256 rows -> prefer 128-256 row chunks,
    # capped at 128 on 64 MiB-VMEM parts (v7x).
    small_vmem = vmem_cap_bytes is not None and vmem_cap_bytes <= 64 * 1024 * 1024
    max_tl = 128 if small_vmem else 256
    for tl in (256, 128, 64, 32, 16, 8):
        if tl <= max_tl and L % tl == 0:
            return tl
    return L


def _fixed_spec(arr):
    # Constant (whole-array) operand: single-buffered -- double buffering a block
    # whose index never changes only wastes VMEM.
    idx = lambda b, l: (0,) * arr.ndim
    try:
        return pl.BlockSpec(arr.shape, idx, pipeline_mode=pl.Buffered(1))
    except Exception:                                   # older BlockSpec signature
        return pl.BlockSpec(arr.shape, idx)


def mamba_block_forward(x, params, cfg, *, seq_tile=None):
    B, L, d_model = x.shape
    d_ff, d_state, dt_rank = cfg["d_ff"], cfg["d_state"], cfg["dt_rank"]
    (w_in, b_in, w_x, w_dt, b_dt, a_log, w_out, b_out) = params

    vmem_cap = _tpu_vmem_capacity()
    TL = _pick_seq_tile(L, vmem_cap) if seq_tile is None else seq_tile
    assert L % TL == 0 and (TL % 8 == 0 or TL == L), "seq tile must be 8-aligned and divide L"

    A = -jnp.exp(a_log.astype(jnp.float32))                          # (d_state,)

    # Fused, lane-aligned x_proj weight [ D | delta | B | C ] with B / C segments
    # padded to 128 lanes; dt_proj is linear-into-linear so its weight composes
    # into the delta segment (removes a tiny-K matmul and the unaligned slice).
    seg_s = _round_up(d_state, 128)
    w_x32, w_dt32 = w_x.astype(jnp.float32), w_dt.astype(jnp.float32)
    w_delta = jnp.dot(w_x32[:, :dt_rank], w_dt32)                    # (d_ff, d_ff)
    w_xc = jnp.zeros((d_ff, 2 * d_ff + 2 * seg_s), jnp.float32)
    w_xc = w_xc.at[:, :d_ff].set(w_x32[:, dt_rank + 2 * d_state:])                        # D
    w_xc = w_xc.at[:, d_ff:2 * d_ff].set(w_delta)                                         # delta
    w_xc = w_xc.at[:, 2 * d_ff:2 * d_ff + d_state].set(w_x32[:, dt_rank:dt_rank + d_state])          # B
    w_xc = w_xc.at[:, 2 * d_ff + seg_s:2 * d_ff + seg_s + d_state].set(
        w_x32[:, dt_rank + d_state:dt_rank + 2 * d_state])                                # C
    w_xc = w_xc.astype(jnp.bfloat16)

    x_bf = x.astype(jnp.bfloat16)            # halve activation HBM<->VMEM traffic

    grid_spec = pltpu.PrefetchScalarGridSpec(
        num_scalar_prefetch=0,
        grid=(B, L // TL),
        in_specs=[
            pl.BlockSpec((pl.Squeezed(), TL, d_model), lambda b, l: (b, l, 0)),
            _fixed_spec(w_in), _fixed_spec(b_in), _fixed_spec(w_xc), _fixed_spec(b_dt),
            pl.BlockSpec(memory_space=pltpu.MemorySpace.SMEM),       # A (scalars)
            _fixed_spec(w_out), _fixed_spec(b_out),
        ],
        out_specs=pl.BlockSpec((pl.Squeezed(), TL, d_model), lambda b, l: (b, l, 0)),
        scratch_shapes=[pltpu.VMEM((d_state, d_ff), jnp.float32)],   # carried SSM state
    )

    # Request ~3/4 of physical VMEM, never all of it (v7x: 48 of 64 MiB; v5e/v6e:
    # 96-112 of 128 MiB).  Fall back to the compiler default if the query fails.
    vmem_limit = int(min(vmem_cap * 3 // 4, 112 * 1024 * 1024)) if vmem_cap else None

    return pl.pallas_call(
        mamba_block_kernel,
        out_shape=jax.ShapeDtypeStruct((B, L, d_model), x.dtype),
        grid_spec=grid_spec,
        compiler_params=pltpu.CompilerParams(
            # batch axis is parallel (megacore); the sequence axis MUST stay the
            # innermost, in-order, "arbitrary" axis: h_carry is carried across it.
            dimension_semantics=("parallel", "arbitrary"),
            vmem_limit_bytes=vmem_limit,
        ),
    )(x_bf, w_in, b_in, w_xc, b_dt, A, w_out, b_out)


def init_params(cfg, key):
    """Deterministic synthetic init mirroring the module's shapes / dt & A init."""
    d_model, d_ff = cfg["d_model"], cfg["d_ff"]
    d_state, dt_rank = cfg["d_state"], cfg["dt_rank"]
    ks = jax.random.split(key, 8)

    def uni(k, shape, fan_in):
        bound = 1.0 / math.sqrt(fan_in)
        return jax.random.uniform(k, shape, jnp.float32, -bound, bound)

    w_in = uni(ks[0], (d_model, 2 * d_ff), d_model)
    b_in = uni(ks[1], (1, 2 * d_ff), d_model)
    w_x = uni(ks[2], (d_ff, dt_rank + 2 * d_state + d_ff), d_ff)

    # dt_proj: dt_init == 'random'
    dt_init_std = dt_rank ** (-0.5) * cfg["dt_scale"]
    w_dt = jax.random.uniform(ks[3], (dt_rank, d_ff), jnp.float32,
                              -dt_init_std, dt_init_std)
    dt = jnp.exp(jax.random.uniform(ks[4], (d_ff,), jnp.float32)
                 * (math.log(cfg["dt_max"]) - math.log(cfg["dt_min"]))
                 + math.log(cfg["dt_min"]))
    dt = jnp.maximum(dt, cfg["dt_init_floor"])
    b_dt = (dt + jnp.log(-jnp.expm1(-dt)))[None, :]                 # inverse softplus init

    a_log = jnp.log(jnp.arange(1, d_state + 1, dtype=jnp.float32))  # (d_state,)

    w_out = uni(ks[5], (d_ff, d_model), d_ff)
    b_out = uni(ks[6], (1, d_model), d_ff)

    bf = jnp.bfloat16   # MXU-native weights; biases / A stay f32
    return (w_in.astype(bf), b_in, w_x.astype(bf), w_dt.astype(bf), b_dt,
            a_log, w_out.astype(bf), b_out)


def mamba_block_reference(x, params, cfg):
    """Pure-JAX reference reproducing MambaBlock.forward / selective_scan_seq
    (same bf16-operand matmuls, f32 recurrence, separate dt_proj)."""
    (w_in, b_in, w_x, w_dt, b_dt, a_log, w_out, b_out) = params
    d_ff, d_state, dt_rank = cfg["d_ff"], cfg["d_state"], cfg["dt_rank"]

    def mm(a, w):
        return jnp.dot(a.astype(jnp.bfloat16), w, preferred_element_type=jnp.float32)

    xz = mm(x, w_in) + b_in
    xs = jax.nn.silu(xz[..., :d_ff])
    zg = jax.nn.silu(xz[..., d_ff:])

    dbcd = mm(xs, w_x)
    dlt = dbcd[..., :dt_rank]
    Bm = dbcd[..., dt_rank:dt_rank + d_state]
    Cm = dbcd[..., dt_rank + d_state:dt_rank + 2 * d_state]
    Dm = dbcd[..., dt_rank + 2 * d_state:]

    delta = jax.nn.softplus(mm(dlt, w_dt) + b_dt)

    A = -jnp.exp(a_log)                                             # (d_state,)
    deltaA = jnp.exp(delta[..., None] * A)                          # (B, L, d_ff, d_state)
    BX = (delta * xs)[..., None] * Bm[:, :, None, :]                # (B, L, d_ff, d_state)

    def scan_one(dA_b, bx_b):
        def step(h, inp):
            dA_t, bx_t = inp
            h = dA_t * h + bx_t
            return h, h
        h0 = jnp.zeros((d_ff, d_state), jnp.float32)
        _, hs = lax.scan(step, h0, (dA_b, bx_b))
        return hs

    hs = jax.vmap(scan_one)(deltaA, BX)                             # (B, L, d_ff, d_state)
    y = jnp.sum(hs * Cm[:, :, None, :], axis=-1) + Dm * xs
    return mm(y * zg, w_out) + b_out


if __name__ == "__main__":
    cfg = dict(d_model=32, d_ff=64, d_state=8, dt_rank=4,
               dt_scale=1.0, dt_min=0.001, dt_max=0.1, dt_init_floor=1e-4,
               bias=True, pscan=True)
    B, L = 2, 32          # two 16-row chunks per sequence -> exercises the carried state

    key = jax.random.PRNGKey(0)
    k_x, k_p = jax.random.split(key)
    x = jax.random.normal(k_x, (B, L, cfg["d_model"]), jnp.float32)
    params = init_params(cfg, k_p)

    out = jax.block_until_ready(mamba_block_forward(x, params, cfg, seq_tile=16))
    ref = mamba_block_reference(x, params, cfg)

    assert out.shape == (B, L, cfg["d_model"])
    err = float(jnp.max(jnp.abs(out - ref)))
    assert jnp.allclose(out, ref, atol=3e-3, rtol=3e-3), "max abs err = %g" % err

    print("KERNEL_OK")
</pallas_src>

<mosaic_0001>
module attributes {stable_mosaic.version = 11 : i64} {
  func.func @mamba_block_kernel(%arg0: i32, %arg1: i32, %arg2: memref<1x16x32xbf16, #tpu.memory_space<vmem>>, %arg3: memref<32x128xbf16, #tpu.memory_space<vmem>>, %arg4: memref<1x128xf32, #tpu.memory_space<vmem>>, %arg5: memref<64x384xbf16, #tpu.memory_space<vmem>>, %arg6: memref<1x64xf32, #tpu.memory_space<vmem>>, %arg7: memref<8xf32, #tpu.memory_space<smem>>, %arg8: memref<64x32xbf16, #tpu.memory_space<vmem>>, %arg9: memref<1x32xf32, #tpu.memory_space<vmem>>, %arg10: memref<1x16x32xf32, #tpu.memory_space<vmem>>, %arg11: memref<8x64xf32, #tpu.memory_space<vmem>>) attributes {dimension_semantics = [#tpu.dimension_semantics<parallel>, #tpu.dimension_semantics<arbitrary>], iteration_bounds = array<i64: 2, 2>, scalar_prefetch = 0 : i64, scratch_operands = 1 : i64, tpu.core_type = #tpu.core_type<tc>, window_params = [{transform_indices = @transform_0, window_bounds = array<i64: 1, 16, 32>}, {pipeline_mode = #tpu.pipeline_mode<synchronous>, transform_indices = @transform_1, window_bounds = array<i64: 32, 128>}, {pipeline_mode = #tpu.pipeline_mode<synchronous>, transform_indices = @transform_2, window_bounds = array<i64: 1, 128>}, {pipeline_mode = #tpu.pipeline_mode<synchronous>, transform_indices = @transform_3, window_bounds = array<i64: 64, 384>}, {pipeline_mode = #tpu.pipeline_mode<synchronous>, transform_indices = @transform_4, window_bounds = array<i64: 1, 64>}, {transform_indices = @transform_5, window_bounds = array<i64: 8>}, {pipeline_mode = #tpu.pipeline_mode<synchronous>, transform_indices = @transform_6, window_bounds = array<i64: 64, 32>}, {pipeline_mode = #tpu.pipeline_mode<synchronous>, transform_indices = @transform_7, window_bounds = array<i64: 1, 32>}, {transform_indices = @transform_8, window_bounds = array<i64: 1, 16, 32>}]} {
    %c0_i32 = arith.constant 0 : i32
    %0 = arith.cmpi eq, %arg1, %c0_i32 : i32
    %1 = arith.extui %0 : i1 to i32
    %c0_i32_0 = arith.constant 0 : i32
    %2 = arith.cmpi ne, %1, %c0_i32_0 : i32
    scf.if %2 {
      %cst_157 = arith.constant 0.000000e+00 : f32
      %616 = vector.broadcast %cst_157 : f32 to vector<8x64xf32>
      %c0_158 = arith.constant 0 : index
      %c0_159 = arith.constant 0 : index
      %617 = vector.load %arg11[%c0_158, %c0_159] : memref<8x64xf32, #tpu.memory_space<vmem>>, vector<8x64xf32>
      tpu.vector_store %arg11[%c0_158, %c0_159], %616 {strides = array<i32>} : memref<8x64xf32, #tpu.memory_space<vmem>>, vector<8x64xf32>,
    } else {
    }
    %c0 = arith.constant 0 : index
    %c0_1 = arith.constant 0 : index
    %c0_2 = arith.constant 0 : index
    %3 = vector.load %arg2[%c0, %c0_1, %c0_2] : memref<1x16x32xbf16, #tpu.memory_space<vmem>>, vector<1x16x32xbf16>
    %4 = vector.shape_cast %3 : vector<1x16x32xbf16> to vector<16x32xbf16>
    %c0_3 = arith.constant 0 : index
    %c0_4 = arith.constant 0 : index
    %5 = vector.load %arg3[%c0_3, %c0_4] : memref<32x128xbf16, #tpu.memory_space<vmem>>, vector<32x128xbf16>
    %cst = arith.constant dense<0.000000e+00> : vector<16x128xf32>
    %6 = tpu.matmul %4, %5, %cst {dimension_numbers = #tpu.dot_dimension_numbers<[1], [0], [0], [1], [0, 0, 1, 1], [], []>} : vector<16x32xbf16>, vector<32x128xbf16>, vector<16x128xf32> -> vector<16x128xf32>
    %c0_5 = arith.constant 0 : index
    %c0_6 = arith.constant 0 : index
    %7 = vector.load %arg4[%c0_5, %c0_6] : memref<1x128xf32, #tpu.memory_space<vmem>>, vector<1x128xf32>
    %8 = vector.broadcast %7 : vector<1x128xf32> to vector<16x128xf32>
    %9 = arith.addf %6, %8 : vector<16x128xf32>
    %10 = vector.extract_strided_slice %9 {offsets = [0, 0], sizes = [16, 64], strides = [1, 1]} : vector<16x128xf32> to vector<16x64xf32>
    %11 = vector.extract_strided_slice %9 {offsets = [0, 64], sizes = [16, 64], strides = [1, 1]} : vector<16x128xf32> to vector<16x64xf32>
    %12 = arith.negf %10 : vector<16x64xf32>
    %13 = math.exp %12 : vector<16x64xf32>
    %cst_7 = arith.constant 1.000000e+00 : f32
    %14 = vector.broadcast %cst_7 : f32 to vector<16x64xf32>
    %15 = arith.addf %14, %13 : vector<16x64xf32>
    %16 = arith.divf %14, %15 : vector<16x64xf32>
    %17 = arith.mulf %10, %16 : vector<16x64xf32>
    %18 = arith.truncf %17 : vector<16x64xf32> to vector<16x64xbf16>
    %c0_8 = arith.constant 0 : index
    %c0_9 = arith.constant 0 : index
    %19 = vector.load %arg5[%c0_8, %c0_9] : memref<64x384xbf16, #tpu.memory_space<vmem>>, vector<64x384xbf16>
    %cst_10 = arith.constant dense<0.000000e+00> : vector<16x384xf32>
    %20 = tpu.matmul %18, %19, %cst_10 {dimension_numbers = #tpu.dot_dimension_numbers<[1], [0], [0], [1], [0, 0, 1, 1], [], []>} : vector<16x64xbf16>, vector<64x384xbf16>, vector<16x384xf32> -> vector<16x384xf32>
    %21 = vector.extract_strided_slice %20 {offsets = [0, 0], sizes = [16, 64], strides = [1, 1]} : vector<16x384xf32> to vector<16x64xf32>
    %22 = vector.extract_strided_slice %20 {offsets = [0, 64], sizes = [16, 64], strides = [1, 1]} : vector<16x384xf32> to vector<16x64xf32>
    %c0_11 = arith.constant 0 : index
    %c0_12 = arith.constant 0 : index
    %23 = vector.load %arg6[%c0_11, %c0_12] : memref<1x64xf32, #tpu.memory_space<vmem>>, vector<1x64xf32>
    %24 = vector.broadcast %23 : vector<1x64xf32> to vector<16x64xf32>
    %25 = arith.addf %22, %24 : vector<16x64xf32>
    %cst_13 = arith.constant 0.000000e+00 : f32
    %26 = vector.broadcast %cst_13 : f32 to vector<16x64xf32>
    %27 = arith.maximumf %25, %26 : vector<16x64xf32>
    %28 = vector.broadcast %cst_13 : f32 to vector<16x64xf32>
    %29 = arith.subf %25, %28 : vector<16x64xf32>
    %30 = arith.cmpf one, %29, %29 : vector<16x64xf32>
    %31 = vector.broadcast %cst_13 : f32 to vector<16x64xf32>
    %32 = arith.addf %25, %31 : vector<16x64xf32>
    %33 = math.absf %29 : vector<16x64xf32>
    %cst_14 = arith.constant 0.000000e+00 : f32
    %34 = vector.broadcast %cst_14 : f32 to vector<16x64xf32>
    %35 = arith.subf %34, %33 : vector<16x64xf32>
    %36 = math.exp %35 : vector<16x64xf32>
    %37 = math.log1p %36 : vector<16x64xf32>
    %38 = arith.addf %27, %37 : vector<16x64xf32>
    %39 = arith.select %30, %32, %38 : vector<16x64xi1>, vector<16x64xf32>
    %40 = vector.extract_strided_slice %20 {offsets = [0, 128], sizes = [16, 8], strides = [1, 1]} : vector<16x384xf32> to vector<16x8xf32>
    %41 = vector.extract_strided_slice %20 {offsets = [0, 256], sizes = [16, 8], strides = [1, 1]} : vector<16x384xf32> to vector<16x8xf32>
    %42 = arith.mulf %39, %17 : vector<16x64xf32>
    %43 = tpu.iota {dimensions = array<i32: 0>} : vector<16x1xi32>
    %c1_i32 = arith.constant 1 : i32
    %44 = vector.broadcast %c1_i32 : i32 to vector<16x1xi32>
    %45 = arith.cmpi sge, %43, %44 : vector<16x1xi32>
    %c2_i32 = arith.constant 2 : i32
    %46 = vector.broadcast %c2_i32 : i32 to vector<16x1xi32>
    %47 = arith.cmpi sge, %43, %46 : vector<16x1xi32>
    %c4_i32 = arith.constant 4 : i32
    %48 = vector.broadcast %c4_i32 : i32 to vector<16x1xi32>
    %49 = arith.cmpi sge, %43, %48 : vector<16x1xi32>
    %c8_i32 = arith.constant 8 : i32
    %50 = vector.broadcast %c8_i32 : i32 to vector<16x1xi32>
    %51 = arith.cmpi sge, %43, %50 : vector<16x1xi32>
    %c0_15 = arith.constant 0 : index
    %c0_16 = arith.constant 0 : index
    %52 = vector.load %arg11[%c0_15, %c0_16] : memref<8x64xf32, #tpu.memory_space<vmem>>, vector<8x64xf32>
    %53 = arith.mulf %21, %17 : vector<16x64xf32>
    %c0_17 = arith.constant 0 : index
    %54 = memref.load %arg7[%c0_17] : memref<8xf32, #tpu.memory_space<smem>>
    %55 = vector.broadcast %54 : f32 to vector<16x64xf32>
    %56 = arith.mulf %39, %55 : vector<16x64xf32>
    %57 = math.exp %56 : vector<16x64xf32>
    %58 = vector.extract_strided_slice %40 {offsets = [0, 0], sizes = [16, 1], strides = [1, 1]} : vector<16x8xf32> to vector<16x1xf32>
    %59 = vector.broadcast %58 : vector<16x1xf32> to vector<16x64xf32>
    %60 = arith.mulf %42, %59 : vector<16x64xf32>
    %c1_i32_18 = arith.constant 1 : i32
    %61 = tpu.dynamic_rotate %57 by %c1_i32_18 dim 0 : vector<16x64xf32>, i32 -> vector<16x64xf32>
    %cst_19 = arith.constant 1.000000e+00 : f32
    %62 = vector.shape_cast %45 : vector<16x1xi1> to vector<16x1xi1>
    %63 = vector.broadcast %62 : vector<16x1xi1> to vector<16x64xi1>
    %64 = vector.broadcast %cst_19 : f32 to vector<16x64xf32>
    %65 = arith.select %63, %61, %64 : vector<16x64xi1>, vector<16x64xf32>
    %c1_i32_20 = arith.constant 1 : i32
    %66 = tpu.dynamic_rotate %60 by %c1_i32_20 dim 0 : vector<16x64xf32>, i32 -> vector<16x64xf32>
    %cst_21 = arith.constant 0.000000e+00 : f32
    %67 = vector.shape_cast %45 : vector<16x1xi1> to vector<16x1xi1>
    %68 = vector.broadcast %67 : vector<16x1xi1> to vector<16x64xi1>
    %69 = vector.broadcast %cst_21 : f32 to vector<16x64xf32>
    %70 = arith.select %68, %66, %69 : vector<16x64xi1>, vector<16x64xf32>
    %71 = arith.mulf %57, %70 : vector<16x64xf32>
    %72 = arith.addf %71, %60 : vector<16x64xf32>
    %73 = arith.mulf %57, %65 : vector<16x64xf32>
    %c2_i32_22 = arith.constant 2 : i32
    %74 = tpu.dynamic_rotate %73 by %c2_i32_22 dim 0 : vector<16x64xf32>, i32 -> vector<16x64xf32>
    %cst_23 = arith.constant 1.000000e+00 : f32
    %75 = vector.shape_cast %47 : vector<16x1xi1> to vector<16x1xi1>
    %76 = vector.broadcast %75 : vector<16x1xi1> to vector<16x64xi1>
    %77 = vector.broadcast %cst_23 : f32 to vector<16x64xf32>
    %78 = arith.select %76, %74, %77 : vector<16x64xi1>, vector<16x64xf32>
    %c2_i32_24 = arith.constant 2 : i32
    %79 = tpu.dynamic_rotate %72 by %c2_i32_24 dim 0 : vector<16x64xf32>, i32 -> vector<16x64xf32>
    %cst_25 = arith.constant 0.000000e+00 : f32
    %80 = vector.shape_cast %47 : vector<16x1xi1> to vector<16x1xi1>
    %81 = vector.broadcast %80 : vector<16x1xi1> to vector<16x64xi1>
    %82 = vector.broadcast %cst_25 : f32 to vector<16x64xf32>
    %83 = arith.select %81, %79, %82 : vector<16x64xi1>, vector<16x64xf32>
    %84 = arith.mulf %73, %83 : vector<16x64xf32>
    %85 = arith.addf %84, %72 : vector<16x64xf32>
    %86 = arith.mulf %73, %78 : vector<16x64xf32>
    %c4_i32_26 = arith.constant 4 : i32
    %87 = tpu.dynamic_rotate %86 by %c4_i32_26 dim 0 : vector<16x64xf32>, i32 -> vector<16x64xf32>
    %cst_27 = arith.constant 1.000000e+00 : f32
    %88 = vector.shape_cast %49 : vector<16x1xi1> to vector<16x1xi1>
    %89 = vector.broadcast %88 : vector<16x1xi1> to vector<16x64xi1>
    %90 = vector.broadcast %cst_27 : f32 to vector<16x64xf32>
    %91 = arith.select %89, %87, %90 : vector<16x64xi1>, vector<16x64xf32>
    %c4_i32_28 = arith.constant 4 : i32
    %92 = tpu.dynamic_rotate %85 by %c4_i32_28 dim 0 : vector<16x64xf32>, i32 -> vector<16x64xf32>
    %cst_29 = arith.constant 0.000000e+00 : f32
    %93 = vector.shape_cast %49 : vector<16x1xi1> to vector<16x1xi1>
    %94 = vector.broadcast %93 : vector<16x1xi1> to vector<16x64xi1>
    %95 = vector.broadcast %cst_29 : f32 to vector<16x64xf32>
    %96 = arith.select %94, %92, %95 : vector<16x64xi1>, vector<16x64xf32>
    %97 = arith.mulf %86, %96 : vector<16x64xf32>
    %98 = arith.addf %97, %85 : vector<16x64xf32>
    %99 = arith.mulf %86, %91 : vector<16x64xf32>
    %c8_i32_30 = arith.constant 8 : i32
    %100 = tpu.dynamic_rotate %99 by %c8_i32_30 dim 0 : vector<16x64xf32>, i32 -> vector<16x64xf32>
    %cst_31 = arith.constant 1.000000e+00 : f32
    %101 = vector.shape_cast %51 : vector<16x1xi1> to vector<16x1xi1>
    %102 = vector.broadcast %101 : vector<16x1xi1> to vector<16x64xi1>
    %103 = vector.broadcast %cst_31 : f32 to vector<16x64xf32>
    %104 = arith.select %102, %100, %103 : vector<16x64xi1>, vector<16x64xf32>
    %c8_i32_32 = arith.constant 8 : i32
    %105 = tpu.dynamic_rotate %98 by %c8_i32_32 dim 0 : vector<16x64xf32>, i32 -> vector<16x64xf32>
    %cst_33 = arith.constant 0.000000e+00 : f32
    %106 = vector.shape_cast %51 : vector<16x1xi1> to vector<16x1xi1>
    %107 = vector.broadcast %106 : vector<16x1xi1> to vector<16x64xi1>
    %108 = vector.broadcast %cst_33 : f32 to vector<16x64xf32>
    %109 = arith.select %107, %105, %108 : vector<16x64xi1>, vector<16x64xf32>
    %110 = arith.mulf %99, %109 : vector<16x64xf32>
    %111 = arith.addf %110, %98 : vector<16x64xf32>
    %112 = arith.mulf %99, %104 : vector<16x64xf32>
    %113 = vector.extract_strided_slice %52 {offsets = [0, 0], sizes = [1, 64], strides = [1, 1]} : vector<8x64xf32> to vector<1x64xf32>
    %114 = vector.broadcast %113 : vector<1x64xf32> to vector<16x64xf32>
    %115 = arith.mulf %112, %114 : vector<16x64xf32>
    %116 = arith.addf %115, %111 : vector<16x64xf32>
    %117 = vector.extract_strided_slice %41 {offsets = [0, 0], sizes = [16, 1], strides = [1, 1]} : vector<16x8xf32> to vector<16x1xf32>
    %118 = vector.broadcast %117 : vector<16x1xf32> to vector<16x64xf32>
    %119 = arith.mulf %118, %116 : vector<16x64xf32>
    %120 = arith.addf %53, %119 : vector<16x64xf32>
    %121 = vector.extract_strided_slice %116 {offsets = [15, 0], sizes = [1, 64], strides = [1, 1]} : vector<16x64xf32> to vector<1x64xf32>
    %c1 = arith.constant 1 : index
    %122 = memref.load %arg7[%c1] : memref<8xf32, #tpu.memory_space<smem>>
    %123 = vector.broadcast %122 : f32 to vector<16x64xf32>
    %124 = arith.mulf %39, %123 : vector<16x64xf32>
    %125 = math.exp %124 : vector<16x64xf32>
    %126 = vector.extract_strided_slice %40 {offsets = [0, 1], sizes = [16, 1], strides = [1, 1]} : vector<16x8xf32> to vector<16x1xf32>
    %127 = vector.broadcast %126 : vector<16x1xf32> to vector<16x64xf32>
    %128 = arith.mulf %42, %127 : vector<16x64xf32>
    %c1_i32_34 = arith.constant 1 : i32
    %129 = tpu.dynamic_rotate %125 by %c1_i32_34 dim 0 : vector<16x64xf32>, i32 -> vector<16x64xf32>
    %cst_35 = arith.constant 1.000000e+00 : f32
    %130 = vector.shape_cast %45 : vector<16x1xi1> to vector<16x1xi1>
    %131 = vector.broadcast %130 : vector<16x1xi1> to vector<16x64xi1>
    %132 = vector.broadcast %cst_35 : f32 to vector<16x64xf32>
    %133 = arith.select %131, %129, %132 : vector<16x64xi1>, vector<16x64xf32>
    %c1_i32_36 = arith.constant 1 : i32
    %134 = tpu.dynamic_rotate %128 by %c1_i32_36 dim 0 : vector<16x64xf32>, i32 -> vector<16x64xf32>
    %cst_37 = arith.constant 0.000000e+00 : f32
    %135 = vector.shape_cast %45 : vector<16x1xi1> to vector<16x1xi1>
    %136 = vector.broadcast %135 : vector<16x1xi1> to vector<16x64xi1>
    %137 = vector.broadcast %cst_37 : f32 to vector<16x64xf32>
    %138 = arith.select %136, %134, %137 : vector<16x64xi1>, vector<16x64xf32>
    %139 = arith.mulf %125, %138 : vector<16x64xf32>
    %140 = arith.addf %139, %128 : vector<16x64xf32>
    %141 = arith.mulf %125, %133 : vector<16x64xf32>
    %c2_i32_38 = arith.constant 2 : i32
    %142 = tpu.dynamic_rotate %141 by %c2_i32_38 dim 0 : vector<16x64xf32>, i32 -> vector<16x64xf32>
    %cst_39 = arith.constant 1.000000e+00 : f32
    %143 = vector.shape_cast %47 : vector<16x1xi1> to vector<16x1xi1>
    %144 = vector.broadcast %143 : vector<16x1xi1> to vector<16x64xi1>
    %145 = vector.broadcast %cst_39 : f32 to vector<16x64xf32>
    %146 = arith.select %144, %142, %145 : vector<16x64xi1>, vector<16x64xf32>
    %c2_i32_40 = arith.constant 2 : i32
    %147 = tpu.dynamic_rotate %140 by %c2_i32_40 dim 0 : vector<16x64xf32>, i32 -> vector<16x64xf32>
    %cst_41 = arith.constant 0.000000e+00 : f32
    %148 = vector.shape_cast %47 : vector<16x1xi1> to vector<16x1xi1>
    %149 = vector.broadcast %148 : vector<16x1xi1> to vector<16x64xi1>
    %150 = vector.broadcast %cst_41 : f32 to vector<16x64xf32>
    %151 = arith.select %149, %147, %150 : vector<16x64xi1>, vector<16x64xf32>
    %152 = arith.mulf %141, %151 : vector<16x64xf32>
    %153 = arith.addf %152, %140 : vector<16x64xf32>
    %154 = arith.mulf %141, %146 : vector<16x64xf32>
    %c4_i32_42 = arith.constant 4 : i32
    %155 = tpu.dynamic_rotate %154 by %c4_i32_42 dim 0 : vector<16x64xf32>, i32 -> vector<16x64xf32>
    %cst_43 = arith.constant 1.000000e+00 : f32
    %156 = vector.shape_cast %49 : vector<16x1xi1> to vector<16x1xi1>
    %157 = vector.broadcast %156 : vector<16x1xi1> to vector<16x64xi1>
    %158 = vector.broadcast %cst_43 : f32 to vector<16x64xf32>
    %159 = arith.select %157, %155, %158 : vector<16x64xi1>, vector<16x64xf32>
    %c4_i32_44 = arith.constant 4 : i32
    %160 = tpu.dynamic_rotate %153 by %c4_i32_44 dim 0 : vector<16x64xf32>, i32 -> vector<16x64xf32>
    %cst_45 = arith.constant 0.000000e+00 : f32
    %161 = vector.shape_cast %49 : vector<16x1xi1> to vector<16x1xi1>
    %162 = vector.broadcast %161 : vector<16x1xi1> to vector<16x64xi1>
    %163 = vector.broadcast %cst_45 : f32 to vector<16x64xf32>
    %164 = arith.select %162, %160, %163 : vector<16x64xi1>, vector<16x64xf32>
    %165 = arith.mulf %154, %164 : vector<16x64xf32>
    %166 = arith.addf %165, %153 : vector<16x64xf32>
    %167 = arith.mulf %154, %159 : vector<16x64xf32>
    %c8_i32_46 = arith.constant 8 : i32
    %168 = tpu.dynamic_rotate %167 by %c8_i32_46 dim 0 : vector<16x64xf32>, i32 -> vector<16x64xf32>
    %cst_47 = arith.constant 1.000000e+00 : f32
    %169 = vector.shape_cast %51 : vector<16x1xi1> to vector<16x1xi1>
    %170 = vector.broadcast %169 : vector<16x1xi1> to vector<16x64xi1>
    %171 = vector.broadcast %cst_47 : f32 to vector<16x64xf32>
    %172 = arith.select %170, %168, %171 : vector<16x64xi1>, vector<16x64xf32>
    %c8_i32_48 = arith.constant 8 : i32
    %173 = tpu.dynamic_rotate %166 by %c8_i32_48 dim 0 : vector<16x64xf32>, i32 -> vector<16x64xf32>
    %cst_49 = arith.constant 0.000000e+00 : f32
    %174 = vector.shape_cast %51 : vector<16x1xi1> to vector<16x1xi1>
    %175 = vector.broadcast %174 : vector<16x1xi1> to vector<16x64xi1>
    %176 = vector.broadcast %cst_49 : f32 to vector<16x64xf32>
    %177 = arith.select %175, %173, %176 : vector<16x64xi1>, vector<16x64xf32>
    %178 = arith.mulf %167, %177 : vector<16x64xf32>
    %179 = arith.addf %178, %166 : vector<16x64xf32>
    %180 = arith.mulf %167, %172 : vector<16x64xf32>
    %181 = vector.extract_strided_slice %52 {offsets = [1, 0], sizes = [1, 64], strides = [1, 1]} : vector<8x64xf32> to vector<1x64xf32>
    %182 = vector.broadcast %181 : vector<1x64xf32> to vector<16x64xf32>
    %183 = arith.mulf %180, %182 : vector<16x64xf32>
    %184 = arith.addf %183, %179 : vector<16x64xf32>
    %185 = vector.extract_strided_slice %41 {offsets = [0, 1], sizes = [16, 1], strides = [1, 1]} : vector<16x8xf32> to vector<16x1xf32>
    %186 = vector.broadcast %185 : vector<16x1xf32> to vector<16x64xf32>
    %187 = arith.mulf %186, %184 : vector<16x64xf32>
    %188 = arith.addf %120, %187 : vector<16x64xf32>
    %189 = vector.extract_strided_slice %184 {offsets = [15, 0], sizes = [1, 64], strides = [1, 1]} : vector<16x64xf32> to vector<1x64xf32>
    %c2 = arith.constant 2 : index
    %190 = memref.load %arg7[%c2] : memref<8xf32, #tpu.memory_space<smem>>
    %191 = vector.broadcast %190 : f32 to vector<16x64xf32>
    %192 = arith.mulf %39, %191 : vector<16x64xf32>
    %193 = math.exp %192 : vector<16x64xf32>
    %194 = vector.extract_strided_slice %40 {offsets = [0, 2], sizes = [16, 1], strides = [1, 1]} : vector<16x8xf32> to vector<16x1xf32>
    %195 = vector.broadcast %194 : vector<16x1xf32> to vector<16x64xf32>
    %196 = arith.mulf %42, %195 : vector<16x64xf32>
    %c1_i32_50 = arith.constant 1 : i32
    %197 = tpu.dynamic_rotate %193 by %c1_i32_50 dim 0 : vector<16x64xf32>, i32 -> vector<16x64xf32>
    %cst_51 = arith.constant 1.000000e+00 : f32
    %198 = vector.shape_cast %45 : vector<16x1xi1> to vector<16x1xi1>
    %199 = vector.broadcast %198 : vector<16x1xi1> to vector<16x64xi1>
    %200 = vector.broadcast %cst_51 : f32 to vector<16x64xf32>
    %201 = arith.select %199, %197, %200 : vector<16x64xi1>, vector<16x64xf32>
    %c1_i32_52 = arith.constant 1 : i32
    %202 = tpu.dynamic_rotate %196 by %c1_i32_52 dim 0 : vector<16x64xf32>, i32 -> vector<16x64xf32>
    %cst_53 = arith.constant 0.000000e+00 : f32
    %203 = vector.shape_cast %45 : vector<16x1xi1> to vector<16x1xi1>
    %204 = vector.broadcast %203 : vector<16x1xi1> to vector<16x64xi1>
    %205 = vector.broadcast %cst_53 : f32 to vector<16x64xf32>
    %206 = arith.select %204, %202, %205 : vector<16x64xi1>, vector<16x64xf32>
    %207 = arith.mulf %193, %206 : vector<16x64xf32>
    %208 = arith.addf %207, %196 : vector<16x64xf32>
    %209 = arith.mulf %193, %201 : vector<16x64xf32>
    %c2_i32_54 = arith.constant 2 : i32
    %210 = tpu.dynamic_rotate %209 by %c2_i32_54 dim 0 : vector<16x64xf32>, i32 -> vector<16x64xf32>
    %cst_55 = arith.constant 1.000000e+00 : f32
    %211 = vector.shape_cast %47 : vector<16x1xi1> to vector<16x1xi1>
    %212 = vector.broadcast %211 : vector<16x1xi1> to vector<16x64xi1>
    %213 = vector.broadcast %cst_55 : f32 to vector<16x64xf32>
    %214 = arith.select %212, %210, %213 : vector<16x64xi1>, vector<16x64xf32>
    %c2_i32_56 = arith.constant 2 : i32
    %215 = tpu.dynamic_rotate %208 by %c2_i32_56 dim 0 : vector<16x64xf32>, i32 -> vector<16x64xf32>
    %cst_57 = arith.constant 0.000000e+00 : f32
    %216 = vector.shape_cast %47 : vector<16x1xi1> to vector<16x1xi1>
    %217 = vector.broadcast %216 : vector<16x1xi1> to vector<16x64xi1>
    %218 = vector.broadcast %cst_57 : f32 to vector<16x64xf32>
    %219 = arith.select %217, %215, %218 : vector<16x64xi1>, vector<16x64xf32>
    %220 = arith.mulf %209, %219 : vector<16x64xf32>
    %221 = arith.addf %220, %208 : vector<16x64xf32>
    %222 = arith.mulf %209, %214 : vector<16x64xf32>
    %c4_i32_58 = arith.constant 4 : i32
    %223 = tpu.dynamic_rotate %222 by %c4_i32_58 dim 0 : vector<16x64xf32>, i32 -> vector<16x64xf32>
    %cst_59 = arith.constant 1.000000e+00 : f32
    %224 = vector.shape_cast %49 : vector<16x1xi1> to vector<16x1xi1>
    %225 = vector.broadcast %224 : vector<16x1xi1> to vector<16x64xi1>
    %226 = vector.broadcast %cst_59 : f32 to vector<16x64xf32>
    %227 = arith.select %225, %223, %226 : vector<16x64xi1>, vector<16x64xf32>
    %c4_i32_60 = arith.constant 4 : i32
    %228 = tpu.dynamic_rotate %221 by %c4_i32_60 dim 0 : vector<16x64xf32>, i32 -> vector<16x64xf32>
    %cst_61 = arith.constant 0.000000e+00 : f32
    %229 = vector.shape_cast %49 : vector<16x1xi1> to vector<16x1xi1>
    %230 = vector.broadcast %229 : vector<16x1xi1> to vector<16x64xi1>
    %231 = vector.broadcast %cst_61 : f32 to vector<16x64xf32>
    %232 = arith.select %230, %228, %231 : vector<16x64xi1>, vector<16x64xf32>
    %233 = arith.mulf %222, %232 : vector<16x64xf32>
    %234 = arith.addf %233, %221 : vector<16x64xf32>
    %235 = arith.mulf %222, %227 : vector<16x64xf32>
    %c8_i32_62 = arith.constant 8 : i32
    %236 = tpu.dynamic_rotate %235 by %c8_i32_62 dim 0 : vector<16x64xf32>, i32 -> vector<16x64xf32>
    %cst_63 = arith.constant 1.000000e+00 : f32
    %237 = vector.shape_cast %51 : vector<16x1xi1> to vector<16x1xi1>
    %238 = vector.broadcast %237 : vector<16x1xi1> to vector<16x64xi1>
    %239 = vector.broadcast %cst_63 : f32 to vector<16x64xf32>
    %240 = arith.select %238, %236, %239 : vector<16x64xi1>, vector<16x64xf32>
    %c8_i32_64 = arith.constant 8 : i32
    %241 = tpu.dynamic_rotate %234 by %c8_i32_64 dim 0 : vector<16x64xf32>, i32 -> vector<16x64xf32>
    %cst_65 = arith.constant 0.000000e+00 : f32
    %242 = vector.shape_cast %51 : vector<16x1xi1> to vector<16x1xi1>
    %243 = vector.broadcast %242 : vector<16x1xi1> to vector<16x64xi1>
    %244 = vector.broadcast %cst_65 : f32 to vector<16x64xf32>
    %245 = arith.select %243, %241, %244 : vector<16x64xi1>, vector<16x64xf32>
    %246 = arith.mulf %235, %245 : vector<16x64xf32>
    %247 = arith.addf %246, %234 : vector<16x64xf32>
    %248 = arith.mulf %235, %240 : vector<16x64xf32>
    %249 = vector.extract_strided_slice %52 {offsets = [2, 0], sizes = [1, 64], strides = [1, 1]} : vector<8x64xf32> to vector<1x64xf32>
    %250 = vector.broadcast %249 : vector<1x64xf32> to vector<16x64xf32>
    %251 = arith.mulf %248, %250 : vector<16x64xf32>
    %252 = arith.addf %251, %247 : vector<16x64xf32>
    %253 = vector.extract_strided_slice %41 {offsets = [0, 2], sizes = [16, 1], strides = [1, 1]} : vector<16x8xf32> to vector<16x1xf32>
    %254 = vector.broadcast %253 : vector<16x1xf32> to vector<16x64xf32>
    %255 = arith.mulf %254, %252 : vector<16x64xf32>
    %256 = arith.addf %188, %255 : vector<16x64xf32>
    %257 = vector.extract_strided_slice %252 {offsets = [15, 0], sizes = [1, 64], strides = [1, 1]} : vector<16x64xf32> to vector<1x64xf32>
    %c3 = arith.constant 3 : index
    %258 = memref.load %arg7[%c3] : memref<8xf32, #tpu.memory_space<smem>>
    %259 = vector.broadcast %258 : f32 to vector<16x64xf32>
    %260 = arith.mulf %39, %259 : vector<16x64xf32>
    %261 = math.exp %260 : vector<16x64xf32>
    %262 = vector.extract_strided_slice %40 {offsets = [0, 3], sizes = [16, 1], strides = [1, 1]} : vector<16x8xf32> to vector<16x1xf32>
    %263 = vector.broadcast %262 : vector<16x1xf32> to vector<16x64xf32>
    %264 = arith.mulf %42, %263 : vector<16x64xf32>
    %c1_i32_66 = arith.constant 1 : i32
    %265 = tpu.dynamic_rotate %261 by %c1_i32_66 dim 0 : vector<16x64xf32>, i32 -> vector<16x64xf32>
    %cst_67 = arith.constant 1.000000e+00 : f32
    %266 = vector.shape_cast %45 : vector<16x1xi1> to vector<16x1xi1>
    %267 = vector.broadcast %266 : vector<16x1xi1> to vector<16x64xi1>
    %268 = vector.broadcast %cst_67 : f32 to vector<16x64xf32>
    %269 = arith.select %267, %265, %268 : vector<16x64xi1>, vector<16x64xf32>
    %c1_i32_68 = arith.constant 1 : i32
    %270 = tpu.dynamic_rotate %264 by %c1_i32_68 dim 0 : vector<16x64xf32>, i32 -> vector<16x64xf32>
    %cst_69 = arith.constant 0.000000e+00 : f32
    %271 = vector.shape_cast %45 : vector<16x1xi1> to vector<16x1xi1>
    %272 = vector.broadcast %271 : vector<16x1xi1> to vector<16x64xi1>
    %273 = vector.broadcast %cst_69 : f32 to vector<16x64xf32>
    %274 = arith.select %272, %270, %273 : vector<16x64xi1>, vector<16x64xf32>
    %275 = arith.mulf %261, %274 : vector<16x64xf32>
    %276 = arith.addf %275, %264 : vector<16x64xf32>
    %277 = arith.mulf %261, %269 : vector<16x64xf32>
    %c2_i32_70 = arith.constant 2 : i32
    %278 = tpu.dynamic_rotate %277 by %c2_i32_70 dim 0 : vector<16x64xf32>, i32 -> vector<16x64xf32>
    %cst_71 = arith.constant 1.000000e+00 : f32
    %279 = vector.shape_cast %47 : vector<16x1xi1> to vector<16x1xi1>
    %280 = vector.broadcast %279 : vector<16x1xi1> to vector<16x64xi1>
    %281 = vector.broadcast %cst_71 : f32 to vector<16x64xf32>
    %282 = arith.select %280, %278, %281 : vector<16x64xi1>, vector<16x64xf32>
    %c2_i32_72 = arith.constant 2 : i32
    %283 = tpu.dynamic_rotate %276 by %c2_i32_72 dim 0 : vector<16x64xf32>, i32 -> vector<16x64xf32>
    %cst_73 = arith.constant 0.000000e+00 : f32
    %284 = vector.shape_cast %47 : vector<16x1xi1> to vector<16x1xi1>
    %285 = vector.broadcast %284 : vector<16x1xi1> to vector<16x64xi1>
    %286 = vector.broadcast %cst_73 : f32 to vector<16x64xf32>
    %287 = arith.select %285, %283, %286 : vector<16x64xi1>, vector<16x64xf32>
    %288 = arith.mulf %277, %287 : vector<16x64xf32>
    %289 = arith.addf %288, %276 : vector<16x64xf32>
    %290 = arith.mulf %277, %282 : vector<16x64xf32>
    %c4_i32_74 = arith.constant 4 : i32
    %291 = tpu.dynamic_rotate %290 by %c4_i32_74 dim 0 : vector<16x64xf32>, i32 -> vector<16x64xf32>
    %cst_75 = arith.constant 1.000000e+00 : f32
    %292 = vector.shape_cast %49 : vector<16x1xi1> to vector<16x1xi1>
    %293 = vector.broadcast %292 : vector<16x1xi1> to vector<16x64xi1>
    %294 = vector.broadcast %cst_75 : f32 to vector<16x64xf32>
    %295 = arith.select %293, %291, %294 : vector<16x64xi1>, vector<16x64xf32>
    %c4_i32_76 = arith.constant 4 : i32
    %296 = tpu.dynamic_rotate %289 by %c4_i32_76 dim 0 : vector<16x64xf32>, i32 -> vector<16x64xf32>
    %cst_77 = arith.constant 0.000000e+00 : f32
    %297 = vector.shape_cast %49 : vector<16x1xi1> to vector<16x1xi1>
    %298 = vector.broadcast %297 : vector<16x1xi1> to vector<16x64xi1>
    %299 = vector.broadcast %cst_77 : f32 to vector<16x64xf32>
    %300 = arith.select %298, %296, %299 : vector<16x64xi1>, vector<16x64xf32>
    %301 = arith.mulf %290, %300 : vector<16x64xf32>
    %302 = arith.addf %301, %289 : vector<16x64xf32>
    %303 = arith.mulf %290, %295 : vector<16x64xf32>
    %c8_i32_78 = arith.constant 8 : i32
    %304 = tpu.dynamic_rotate %303 by %c8_i32_78 dim 0 : vector<16x64xf32>, i32 -> vector<16x64xf32>
    %cst_79 = arith.constant 1.000000e+00 : f32
    %305 = vector.shape_cast %51 : vector<16x1xi1> to vector<16x1xi1>
    %306 = vector.broadcast %305 : vector<16x1xi1> to vector<16x64xi1>
    %307 = vector.broadcast %cst_79 : f32 to vector<16x64xf32>
    %308 = arith.select %306, %304, %307 : vector<16x64xi1>, vector<16x64xf32>
    %c8_i32_80 = arith.constant 8 : i32
    %309 = tpu.dynamic_rotate %302 by %c8_i32_80 dim 0 : vector<16x64xf32>, i32 -> vector<16x64xf32>
    %cst_81 = arith.constant 0.000000e+00 : f32
    %310 = vector.shape_cast %51 : vector<16x1xi1> to vector<16x1xi1>
    %311 = vector.broadcast %310 : vector<16x1xi1> to vector<16x64xi1>
    %312 = vector.broadcast %cst_81 : f32 to vector<16x64xf32>
    %313 = arith.select %311, %309, %312 : vector<16x64xi1>, vector<16x64xf32>
    %314 = arith.mulf %303, %313 : vector<16x64xf32>
    %315 = arith.addf %314, %302 : vector<16x64xf32>
    %316 = arith.mulf %303, %308 : vector<16x64xf32>
    %317 = vector.extract_strided_slice %52 {offsets = [3, 0], sizes = [1, 64], strides = [1, 1]} : vector<8x64xf32> to vector<1x64xf32>
    %318 = vector.broadcast %317 : vector<1x64xf32> to vector<16x64xf32>
    %319 = arith.mulf %316, %318 : vector<16x64xf32>
    %320 = arith.addf %319, %315 : vector<16x64xf32>
    %321 = vector.extract_strided_slice %41 {offsets = [0, 3], sizes = [16, 1], strides = [1, 1]} : vector<16x8xf32> to vector<16x1xf32>
    %322 = vector.broadcast %321 : vector<16x1xf32> to vector<16x64xf32>
    %323 = arith.mulf %322, %320 : vector<16x64xf32>
    %324 = arith.addf %256, %323 : vector<16x64xf32>
    %325 = vector.extract_strided_slice %320 {offsets = [15, 0], sizes = [1, 64], strides = [1, 1]} : vector<16x64xf32> to vector<1x64xf32>
    %c4 = arith.constant 4 : index
    %326 = memref.load %arg7[%c4] : memref<8xf32, #tpu.memory_space<smem>>
    %327 = vector.broadcast %326 : f32 to vector<16x64xf32>
    %328 = arith.mulf %39, %327 : vector<16x64xf32>
    %329 = math.exp %328 : vector<16x64xf32>
    %330 = vector.extract_strided_slice %40 {offsets = [0, 4], sizes = [16, 1], strides = [1, 1]} : vector<16x8xf32> to vector<16x1xf32>
    %331 = vector.broadcast %330 : vector<16x1xf32> to vector<16x64xf32>
    %332 = arith.mulf %42, %331 : vector<16x64xf32>
    %c1_i32_82 = arith.constant 1 : i32
    %333 = tpu.dynamic_rotate %329 by %c1_i32_82 dim 0 : vector<16x64xf32>, i32 -> vector<16x64xf32>
    %cst_83 = arith.constant 1.000000e+00 : f32
    %334 = vector.shape_cast %45 : vector<16x1xi1> to vector<16x1xi1>
    %335 = vector.broadcast %334 : vector<16x1xi1> to vector<16x64xi1>
    %336 = vector.broadcast %cst_83 : f32 to vector<16x64xf32>
    %337 = arith.select %335, %333, %336 : vector<16x64xi1>, vector<16x64xf32>
    %c1_i32_84 = arith.constant 1 : i32
    %338 = tpu.dynamic_rotate %332 by %c1_i32_84 dim 0 : vector<16x64xf32>, i32 -> vector<16x64xf32>
    %cst_85 = arith.constant 0.000000e+00 : f32
    %339 = vector.shape_cast %45 : vector<16x1xi1> to vector<16x1xi1>
    %340 = vector.broadcast %339 : vector<16x1xi1> to vector<16x64xi1>
    %341 = vector.broadcast %cst_85 : f32 to vector<16x64xf32>
    %342 = arith.select %340, %338, %341 : vector<16x64xi1>, vector<16x64xf32>
    %343 = arith.mulf %329, %342 : vector<16x64xf32>
    %344 = arith.addf %343, %332 : vector<16x64xf32>
    %345 = arith.mulf %329, %337 : vector<16x64xf32>
    %c2_i32_86 = arith.constant 2 : i32
    %346 = tpu.dynamic_rotate %345 by %c2_i32_86 dim 0 : vector<16x64xf32>, i32 -> vector<16x64xf32>
    %cst_87 = arith.constant 1.000000e+00 : f32
    %347 = vector.shape_cast %47 : vector<16x1xi1> to vector<16x1xi1>
    %348 = vector.broadcast %347 : vector<16x1xi1> to vector<16x64xi1>
    %349 = vector.broadcast %cst_87 : f32 to vector<16x64xf32>
    %350 = arith.select %348, %346, %349 : vector<16x64xi1>, vector<16x64xf32>
    %c2_i32_88 = arith.constant 2 : i32
    %351 = tpu.dynamic_rotate %344 by %c2_i32_88 dim 0 : vector<16x64xf32>, i32 -> vector<16x64xf32>
    %cst_89 = arith.constant 0.000000e+00 : f32
    %352 = vector.shape_cast %47 : vector<16x1xi1> to vector<16x1xi1>
    %353 = vector.broadcast %352 : vector<16x1xi1> to vector<16x64xi1>
    %354 = vector.broadcast %cst_89 : f32 to vector<16x64xf32>
    %355 = arith.select %353, %351, %354 : vector<16x64xi1>, vector<16x64xf32>
    %356 = arith.mulf %345, %355 : vector<16x64xf32>
    %357 = arith.addf %356, %344 : vector<16x64xf32>
    %358 = arith.mulf %345, %350 : vector<16x64xf32>
    %c4_i32_90 = arith.constant 4 : i32
    %359 = tpu.dynamic_rotate %358 by %c4_i32_90 dim 0 : vector<16x64xf32>, i32 -> vector<16x64xf32>
    %cst_91 = arith.constant 1.000000e+00 : f32
    %360 = vector.shape_cast %49 : vector<16x1xi1> to vector<16x1xi1>
    %361 = vector.broadcast %360 : vector<16x1xi1> to vector<16x64xi1>
    %362 = vector.broadcast %cst_91 : f32 to vector<16x64xf32>
    %363 = arith.select %361, %359, %362 : vector<16x64xi1>, vector<16x64xf32>
    %c4_i32_92 = arith.constant 4 : i32
    %364 = tpu.dynamic_rotate %357 by %c4_i32_92 dim 0 : vector<16x64xf32>, i32 -> vector<16x64xf32>
    %cst_93 = arith.constant 0.000000e+00 : f32
    %365 = vector.shape_cast %49 : vector<16x1xi1> to vector<16x1xi1>
    %366 = vector.broadcast %365 : vector<16x1xi1> to vector<16x64xi1>
    %367 = vector.broadcast %cst_93 : f32 to vector<16x64xf32>
    %368 = arith.select %366, %364, %367 : vector<16x64xi1>, vector<16x64xf32>
    %369 = arith.mulf %358, %368 : vector<16x64xf32>
    %370 = arith.addf %369, %357 : vector<16x64xf32>
    %371 = arith.mulf %358, %363 : vector<16x64xf32>
    %c8_i32_94 = arith.constant 8 : i32
    %372 = tpu.dynamic_rotate %371 by %c8_i32_94 dim 0 : vector<16x64xf32>, i32 -> vector<16x64xf32>
    %cst_95 = arith.constant 1.000000e+00 : f32
    %373 = vector.shape_cast %51 : vector<16x1xi1> to vector<16x1xi1>
    %374 = vector.broadcast %373 : vector<16x1xi1> to vector<16x64xi1>
    %375 = vector.broadcast %cst_95 : f32 to vector<16x64xf32>
    %376 = arith.select %374, %372, %375 : vector<16x64xi1>, vector<16x64xf32>
    %c8_i32_96 = arith.constant 8 : i32
    %377 = tpu.dynamic_rotate %370 by %c8_i32_96 dim 0 : vector<16x64xf32>, i32 -> vector<16x64xf32>
    %cst_97 = arith.constant 0.000000e+00 : f32
    %378 = vector.shape_cast %51 : vector<16x1xi1> to vector<16x1xi1>
    %379 = vector.broadcast %378 : vector<16x1xi1> to vector<16x64xi1>
    %380 = vector.broadcast %cst_97 : f32 to vector<16x64xf32>
    %381 = arith.select %379, %377, %380 : vector<16x64xi1>, vector<16x64xf32>
    %382 = arith.mulf %371, %381 : vector<16x64xf32>
    %383 = arith.addf %382, %370 : vector<16x64xf32>
    %384 = arith.mulf %371, %376 : vector<16x64xf32>
    %385 = vector.extract_strided_slice %52 {offsets = [4, 0], sizes = [1, 64], strides = [1, 1]} : vector<8x64xf32> to vector<1x64xf32>
    %386 = vector.broadcast %385 : vector<1x64xf32> to vector<16x64xf32>
    %387 = arith.mulf %384, %386 : vector<16x64xf32>
    %388 = arith.addf %387, %383 : vector<16x64xf32>
    %389 = vector.extract_strided_slice %41 {offsets = [0, 4], sizes = [16, 1], strides = [1, 1]} : vector<16x8xf32> to vector<16x1xf32>
    %390 = vector.broadcast %389 : vector<16x1xf32> to vector<16x64xf32>
    %391 = arith.mulf %390, %388 : vector<16x64xf32>
    %392 = arith.addf %324, %391 : vector<16x64xf32>
    %393 = vector.extract_strided_slice %388 {offsets = [15, 0], sizes = [1, 64], strides = [1, 1]} : vector<16x64xf32> to vector<1x64xf32>
    %c5 = arith.constant 5 : index
    %394 = memref.load %arg7[%c5] : memref<8xf32, #tpu.memory_space<smem>>
    %395 = vector.broadcast %394 : f32 to vector<16x64xf32>
    %396 = arith.mulf %39, %395 : vector<16x64xf32>
    %397 = math.exp %396 : vector<16x64xf32>
    %398 = vector.extract_strided_slice %40 {offsets = [0, 5], sizes = [16, 1], strides = [1, 1]} : vector<16x8xf32> to vector<16x1xf32>
    %399 = vector.broadcast %398 : vector<16x1xf32> to vector<16x64xf32>
    %400 = arith.mulf %42, %399 : vector<16x64xf32>
    %c1_i32_98 = arith.constant 1 : i32
    %401 = tpu.dynamic_rotate %397 by %c1_i32_98 dim 0 : vector<16x64xf32>, i32 -> vector<16x64xf32>
    %cst_99 = arith.constant 1.000000e+00 : f32
    %402 = vector.shape_cast %45 : vector<16x1xi1> to vector<16x1xi1>
    %403 = vector.broadcast %402 : vector<16x1xi1> to vector<16x64xi1>
    %404 = vector.broadcast %cst_99 : f32 to vector<16x64xf32>
    %405 = arith.select %403, %401, %404 : vector<16x64xi1>, vector<16x64xf32>
    %c1_i32_100 = arith.constant 1 : i32
    %406 = tpu.dynamic_rotate %400 by %c1_i32_100 dim 0 : vector<16x64xf32>, i32 -> vector<16x64xf32>
    %cst_101 = arith.constant 0.000000e+00 : f32
    %407 = vector.shape_cast %45 : vector<16x1xi1> to vector<16x1xi1>
    %408 = vector.broadcast %407 : vector<16x1xi1> to vector<16x64xi1>
    %409 = vector.broadcast %cst_101 : f32 to vector<16x64xf32>
    %410 = arith.select %408, %406, %409 : vector<16x64xi1>, vector<16x64xf32>
    %411 = arith.mulf %397, %410 : vector<16x64xf32>
    %412 = arith.addf %411, %400 : vector<16x64xf32>
    %413 = arith.mulf %397, %405 : vector<16x64xf32>
    %c2_i32_102 = arith.constant 2 : i32
    %414 = tpu.dynamic_rotate %413 by %c2_i32_102 dim 0 : vector<16x64xf32>, i32 -> vector<16x64xf32>
    %cst_103 = arith.constant 1.000000e+00 : f32
    %415 = vector.shape_cast %47 : vector<16x1xi1> to vector<16x1xi1>
    %416 = vector.broadcast %415 : vector<16x1xi1> to vector<16x64xi1>
    %417 = vector.broadcast %cst_103 : f32 to vector<16x64xf32>
    %418 = arith.select %416, %414, %417 : vector<16x64xi1>, vector<16x64xf32>
    %c2_i32_104 = arith.constant 2 : i32
    %419 = tpu.dynamic_rotate %412 by %c2_i32_104 dim 0 : vector<16x64xf32>, i32 -> vector<16x64xf32>
    %cst_105 = arith.constant 0.000000e+00 : f32
    %420 = vector.shape_cast %47 : vector<16x1xi1> to vector<16x1xi1>
    %421 = vector.broadcast %420 : vector<16x1xi1> to vector<16x64xi1>
    %422 = vector.broadcast %cst_105 : f32 to vector<16x64xf32>
    %423 = arith.select %421, %419, %422 : vector<16x64xi1>, vector<16x64xf32>
    %424 = arith.mulf %413, %423 : vector<16x64xf32>
    %425 = arith.addf %424, %412 : vector<16x64xf32>
    %426 = arith.mulf %413, %418 : vector<16x64xf32>
    %c4_i32_106 = arith.constant 4 : i32
    %427 = tpu.dynamic_rotate %426 by %c4_i32_106 dim 0 : vector<16x64xf32>, i32 -> vector<16x64xf32>
    %cst_107 = arith.constant 1.000000e+00 : f32
    %428 = vector.shape_cast %49 : vector<16x1xi1> to vector<16x1xi1>
    %429 = vector.broadcast %428 : vector<16x1xi1> to vector<16x64xi1>
    %430 = vector.broadcast %cst_107 : f32 to vector<16x64xf32>
    %431 = arith.select %429, %427, %430 : vector<16x64xi1>, vector<16x64xf32>
    %c4_i32_108 = arith.constant 4 : i32
    %432 = tpu.dynamic_rotate %425 by %c4_i32_108 dim 0 : vector<16x64xf32>, i32 -> vector<16x64xf32>
    %cst_109 = arith.constant 0.000000e+00 : f32
    %433 = vector.shape_cast %49 : vector<16x1xi1> to vector<16x1xi1>
    %434 = vector.broadcast %433 : vector<16x1xi1> to vector<16x64xi1>
    %435 = vector.broadcast %cst_109 : f32 to vector<16x64xf32>
    %436 = arith.select %434, %432, %435 : vector<16x64xi1>, vector<16x64xf32>
    %437 = arith.mulf %426, %436 : vector<16x64xf32>
    %438 = arith.addf %437, %425 : vector<16x64xf32>
    %439 = arith.mulf %426, %431 : vector<16x64xf32>
    %c8_i32_110 = arith.constant 8 : i32
    %440 = tpu.dynamic_rotate %439 by %c8_i32_110 dim 0 : vector<16x64xf32>, i32 -> vector<16x64xf32>
    %cst_111 = arith.constant 1.000000e+00 : f32
    %441 = vector.shape_cast %51 : vector<16x1xi1> to vector<16x1xi1>
    %442 = vector.broadcast %441 : vector<16x1xi1> to vector<16x64xi1>
    %443 = vector.broadcast %cst_111 : f32 to vector<16x64xf32>
    %444 = arith.select %442, %440, %443 : vector<16x64xi1>, vector<16x64xf32>
    %c8_i32_112 = arith.constant 8 : i32
    %445 = tpu.dynamic_rotate %438 by %c8_i32_112 dim 0 : vector<16x64xf32>, i32 -> vector<16x64xf32>
    %cst_113 = arith.constant 0.000000e+00 : f32
    %446 = vector.shape_cast %51 : vector<16x1xi1> to vector<16x1xi1>
    %447 = vector.broadcast %446 : vector<16x1xi1> to vector<16x64xi1>
    %448 = vector.broadcast %cst_113 : f32 to vector<16x64xf32>
    %449 = arith.select %447, %445, %448 : vector<16x64xi1>, vector<16x64xf32>
    %450 = arith.mulf %439, %449 : vector<16x64xf32>
    %451 = arith.addf %450, %438 : vector<16x64xf32>
    %452 = arith.mulf %439, %444 : vector<16x64xf32>
    %453 = vector.extract_strided_slice %52 {offsets = [5, 0], sizes = [1, 64], strides = [1, 1]} : vector<8x64xf32> to vector<1x64xf32>
    %454 = vector.broadcast %453 : vector<1x64xf32> to vector<16x64xf32>
    %455 = arith.mulf %452, %454 : vector<16x64xf32>
    %456 = arith.addf %455, %451 : vector<16x64xf32>
    %457 = vector.extract_strided_slice %41 {offsets = [0, 5], sizes = [16, 1], strides = [1, 1]} : vector<16x8xf32> to vector<16x1xf32>
    %458 = vector.broadcast %457 : vector<16x1xf32> to vector<16x64xf32>
    %459 = arith.mulf %458, %456 : vector<16x64xf32>
    %460 = arith.addf %392, %459 : vector<16x64xf32>
    %461 = vector.extract_strided_slice %456 {offsets = [15, 0], sizes = [1, 64], strides = [1, 1]} : vector<16x64xf32> to vector<1x64xf32>
    %c6 = arith.constant 6 : index
    %462 = memref.load %arg7[%c6] : memref<8xf32, #tpu.memory_space<smem>>
    %463 = vector.broadcast %462 : f32 to vector<16x64xf32>
    %464 = arith.mulf %39, %463 : vector<16x64xf32>
    %465 = math.exp %464 : vector<16x64xf32>
    %466 = vector.extract_strided_slice %40 {offsets = [0, 6], sizes = [16, 1], strides = [1, 1]} : vector<16x8xf32> to vector<16x1xf32>
    %467 = vector.broadcast %466 : vector<16x1xf32> to vector<16x64xf32>
    %468 = arith.mulf %42, %467 : vector<16x64xf32>
    %c1_i32_114 = arith.constant 1 : i32
    %469 = tpu.dynamic_rotate %465 by %c1_i32_114 dim 0 : vector<16x64xf32>, i32 -> vector<16x64xf32>
    %cst_115 = arith.constant 1.000000e+00 : f32
    %470 = vector.shape_cast %45 : vector<16x1xi1> to vector<16x1xi1>
    %471 = vector.broadcast %470 : vector<16x1xi1> to vector<16x64xi1>
    %472 = vector.broadcast %cst_115 : f32 to vector<16x64xf32>
    %473 = arith.select %471, %469, %472 : vector<16x64xi1>, vector<16x64xf32>
    %c1_i32_116 = arith.constant 1 : i32
    %474 = tpu.dynamic_rotate %468 by %c1_i32_116 dim 0 : vector<16x64xf32>, i32 -> vector<16x64xf32>
    %cst_117 = arith.constant 0.000000e+00 : f32
    %475 = vector.shape_cast %45 : vector<16x1xi1> to vector<16x1xi1>
    %476 = vector.broadcast %475 : vector<16x1xi1> to vector<16x64xi1>
    %477 = vector.broadcast %cst_117 : f32 to vector<16x64xf32>
    %478 = arith.select %476, %474, %477 : vector<16x64xi1>, vector<16x64xf32>
    %479 = arith.mulf %465, %478 : vector<16x64xf32>
    %480 = arith.addf %479, %468 : vector<16x64xf32>
    %481 = arith.mulf %465, %473 : vector<16x64xf32>
    %c2_i32_118 = arith.constant 2 : i32
    %482 = tpu.dynamic_rotate %481 by %c2_i32_118 dim 0 : vector<16x64xf32>, i32 -> vector<16x64xf32>
    %cst_119 = arith.constant 1.000000e+00 : f32
    %483 = vector.shape_cast %47 : vector<16x1xi1> to vector<16x1xi1>
    %484 = vector.broadcast %483 : vector<16x1xi1> to vector<16x64xi1>
    %485 = vector.broadcast %cst_119 : f32 to vector<16x64xf32>
    %486 = arith.select %484, %482, %485 : vector<16x64xi1>, vector<16x64xf32>
    %c2_i32_120 = arith.constant 2 : i32
    %487 = tpu.dynamic_rotate %480 by %c2_i32_120 dim 0 : vector<16x64xf32>, i32 -> vector<16x64xf32>
    %cst_121 = arith.constant 0.000000e+00 : f32
    %488 = vector.shape_cast %47 : vector<16x1xi1> to vector<16x1xi1>
    %489 = vector.broadcast %488 : vector<16x1xi1> to vector<16x64xi1>
    %490 = vector.broadcast %cst_121 : f32 to vector<16x64xf32>
    %491 = arith.select %489, %487, %490 : vector<16x64xi1>, vector<16x64xf32>
    %492 = arith.mulf %481, %491 : vector<16x64xf32>
    %493 = arith.addf %492, %480 : vector<16x64xf32>
    %494 = arith.mulf %481, %486 : vector<16x64xf32>
    %c4_i32_122 = arith.constant 4 : i32
    %495 = tpu.dynamic_rotate %494 by %c4_i32_122 dim 0 : vector<16x64xf32>, i32 -> vector<16x64xf32>
    %cst_123 = arith.constant 1.000000e+00 : f32
    %496 = vector.shape_cast %49 : vector<16x1xi1> to vector<16x1xi1>
    %497 = vector.broadcast %496 : vector<16x1xi1> to vector<16x64xi1>
    %498 = vector.broadcast %cst_123 : f32 to vector<16x64xf32>
    %499 = arith.select %497, %495, %498 : vector<16x64xi1>, vector<16x64xf32>
    %c4_i32_124 = arith.constant 4 : i32
    %500 = tpu.dynamic_rotate %493 by %c4_i32_124 dim 0 : vector<16x64xf32>, i32 -> vector<16x64xf32>
    %cst_125 = arith.constant 0.000000e+00 : f32
    %501 = vector.shape_cast %49 : vector<16x1xi1> to vector<16x1xi1>
    %502 = vector.broadcast %501 : vector<16x1xi1> to vector<16x64xi1>
    %503 = vector.broadcast %cst_125 : f32 to vector<16x64xf32>
    %504 = arith.select %502, %500, %503 : vector<16x64xi1>, vector<16x64xf32>
    %505 = arith.mulf %494, %504 : vector<16x64xf32>
    %506 = arith.addf %505, %493 : vector<16x64xf32>
    %507 = arith.mulf %494, %499 : vector<16x64xf32>
    %c8_i32_126 = arith.constant 8 : i32
    %508 = tpu.dynamic_rotate %507 by %c8_i32_126 dim 0 : vector<16x64xf32>, i32 -> vector<16x64xf32>
    %cst_127 = arith.constant 1.000000e+00 : f32
    %509 = vector.shape_cast %51 : vector<16x1xi1> to vector<16x1xi1>
    %510 = vector.broadcast %509 : vector<16x1xi1> to vector<16x64xi1>
    %511 = vector.broadcast %cst_127 : f32 to vector<16x64xf32>
    %512 = arith.select %510, %508, %511 : vector<16x64xi1>, vector<16x64xf32>
    %c8_i32_128 = arith.constant 8 : i32
    %513 = tpu.dynamic_rotate %506 by %c8_i32_128 dim 0 : vector<16x64xf32>, i32 -> vector<16x64xf32>
    %cst_129 = arith.constant 0.000000e+00 : f32
    %514 = vector.shape_cast %51 : vector<16x1xi1> to vector<16x1xi1>
    %515 = vector.broadcast %514 : vector<16x1xi1> to vector<16x64xi1>
    %516 = vector.broadcast %cst_129 : f32 to vector<16x64xf32>
    %517 = arith.select %515, %513, %516 : vector<16x64xi1>, vector<16x64xf32>
    %518 = arith.mulf %507, %517 : vector<16x64xf32>
    %519 = arith.addf %518, %506 : vector<16x64xf32>
    %520 = arith.mulf %507, %512 : vector<16x64xf32>
    %521 = vector.extract_strided_slice %52 {offsets = [6, 0], sizes = [1, 64], strides = [1, 1]} : vector<8x64xf32> to vector<1x64xf32>
    %522 = vector.broadcast %521 : vector<1x64xf32> to vector<16x64xf32>
    %523 = arith.mulf %520, %522 : vector<16x64xf32>
    %524 = arith.addf %523, %519 : vector<16x64xf32>
    %525 = vector.extract_strided_slice %41 {offsets = [0, 6], sizes = [16, 1], strides = [1, 1]} : vector<16x8xf32> to vector<16x1xf32>
    %526 = vector.broadcast %525 : vector<16x1xf32> to vector<16x64xf32>
    %527 = arith.mulf %526, %524 : vector<16x64xf32>
    %528 = arith.addf %460, %527 : vector<16x64xf32>
    %529 = vector.extract_strided_slice %524 {offsets = [15, 0], sizes = [1, 64], strides = [1, 1]} : vector<16x64xf32> to vector<1x64xf32>
    %c7 = arith.constant 7 : index
    %530 = memref.load %arg7[%c7] : memref<8xf32, #tpu.memory_space<smem>>
    %531 = vector.broadcast %530 : f32 to vector<16x64xf32>
    %532 = arith.mulf %39, %531 : vector<16x64xf32>
    %533 = math.exp %532 : vector<16x64xf32>
    %534 = vector.extract_strided_slice %40 {offsets = [0, 7], sizes = [16, 1], strides = [1, 1]} : vector<16x8xf32> to vector<16x1xf32>
    %535 = vector.broadcast %534 : vector<16x1xf32> to vector<16x64xf32>
    %536 = arith.mulf %42, %535 : vector<16x64xf32>
    %c1_i32_130 = arith.constant 1 : i32
    %537 = tpu.dynamic_rotate %533 by %c1_i32_130 dim 0 : vector<16x64xf32>, i32 -> vector<16x64xf32>
    %cst_131 = arith.constant 1.000000e+00 : f32
    %538 = vector.shape_cast %45 : vector<16x1xi1> to vector<16x1xi1>
    %539 = vector.broadcast %538 : vector<16x1xi1> to vector<16x64xi1>
    %540 = vector.broadcast %cst_131 : f32 to vector<16x64xf32>
    %541 = arith.select %539, %537, %540 : vector<16x64xi1>, vector<16x64xf32>
    %c1_i32_132 = arith.constant 1 : i32
    %542 = tpu.dynamic_rotate %536 by %c1_i32_132 dim 0 : vector<16x64xf32>, i32 -> vector<16x64xf32>
    %cst_133 = arith.constant 0.000000e+00 : f32
    %543 = vector.shape_cast %45 : vector<16x1xi1> to vector<16x1xi1>
    %544 = vector.broadcast %543 : vector<16x1xi1> to vector<16x64xi1>
    %545 = vector.broadcast %cst_133 : f32 to vector<16x64xf32>
    %546 = arith.select %544, %542, %545 : vector<16x64xi1>, vector<16x64xf32>
    %547 = arith.mulf %533, %546 : vector<16x64xf32>
    %548 = arith.addf %547, %536 : vector<16x64xf32>
    %549 = arith.mulf %533, %541 : vector<16x64xf32>
    %c2_i32_134 = arith.constant 2 : i32
    %550 = tpu.dynamic_rotate %549 by %c2_i32_134 dim 0 : vector<16x64xf32>, i32 -> vector<16x64xf32>
    %cst_135 = arith.constant 1.000000e+00 : f32
    %551 = vector.shape_cast %47 : vector<16x1xi1> to vector<16x1xi1>
    %552 = vector.broadcast %551 : vector<16x1xi1> to vector<16x64xi1>
    %553 = vector.broadcast %cst_135 : f32 to vector<16x64xf32>
    %554 = arith.select %552, %550, %553 : vector<16x64xi1>, vector<16x64xf32>
    %c2_i32_136 = arith.constant 2 : i32
    %555 = tpu.dynamic_rotate %548 by %c2_i32_136 dim 0 : vector<16x64xf32>, i32 -> vector<16x64xf32>
    %cst_137 = arith.constant 0.000000e+00 : f32
    %556 = vector.shape_cast %47 : vector<16x1xi1> to vector<16x1xi1>
    %557 = vector.broadcast %556 : vector<16x1xi1> to vector<16x64xi1>
    %558 = vector.broadcast %cst_137 : f32 to vector<16x64xf32>
    %559 = arith.select %557, %555, %558 : vector<16x64xi1>, vector<16x64xf32>
    %560 = arith.mulf %549, %559 : vector<16x64xf32>
    %561 = arith.addf %560, %548 : vector<16x64xf32>
    %562 = arith.mulf %549, %554 : vector<16x64xf32>
    %c4_i32_138 = arith.constant 4 : i32
    %563 = tpu.dynamic_rotate %562 by %c4_i32_138 dim 0 : vector<16x64xf32>, i32 -> vector<16x64xf32>
    %cst_139 = arith.constant 1.000000e+00 : f32
    %564 = vector.shape_cast %49 : vector<16x1xi1> to vector<16x1xi1>
    %565 = vector.broadcast %564 : vector<16x1xi1> to vector<16x64xi1>
    %566 = vector.broadcast %cst_139 : f32 to vector<16x64xf32>
    %567 = arith.select %565, %563, %566 : vector<16x64xi1>, vector<16x64xf32>
    %c4_i32_140 = arith.constant 4 : i32
    %568 = tpu.dynamic_rotate %561 by %c4_i32_140 dim 0 : vector<16x64xf32>, i32 -> vector<16x64xf32>
    %cst_141 = arith.constant 0.000000e+00 : f32
    %569 = vector.shape_cast %49 : vector<16x1xi1> to vector<16x1xi1>
    %570 = vector.broadcast %569 : vector<16x1xi1> to vector<16x64xi1>
    %571 = vector.broadcast %cst_141 : f32 to vector<16x64xf32>
    %572 = arith.select %570, %568, %571 : vector<16x64xi1>, vector<16x64xf32>
    %573 = arith.mulf %562, %572 : vector<16x64xf32>
    %574 = arith.addf %573, %561 : vector<16x64xf32>
    %575 = arith.mulf %562, %567 : vector<16x64xf32>
    %c8_i32_142 = arith.constant 8 : i32
    %576 = tpu.dynamic_rotate %575 by %c8_i32_142 dim 0 : vector<16x64xf32>, i32 -> vector<16x64xf32>
    %cst_143 = arith.constant 1.000000e+00 : f32
    %577 = vector.shape_cast %51 : vector<16x1xi1> to vector<16x1xi1>
    %578 = vector.broadcast %577 : vector<16x1xi1> to vector<16x64xi1>
    %579 = vector.broadcast %cst_143 : f32 to vector<16x64xf32>
    %580 = arith.select %578, %576, %579 : vector<16x64xi1>, vector<16x64xf32>
    %c8_i32_144 = arith.constant 8 : i32
    %581 = tpu.dynamic_rotate %574 by %c8_i32_144 dim 0 : vector<16x64xf32>, i32 -> vector<16x64xf32>
    %cst_145 = arith.constant 0.000000e+00 : f32
    %582 = vector.shape_cast %51 : vector<16x1xi1> to vector<16x1xi1>
    %583 = vector.broadcast %582 : vector<16x1xi1> to vector<16x64xi1>
    %584 = vector.broadcast %cst_145 : f32 to vector<16x64xf32>
    %585 = arith.select %583, %581, %584 : vector<16x64xi1>, vector<16x64xf32>
    %586 = arith.mulf %575, %585 : vector<16x64xf32>
    %587 = arith.addf %586, %574 : vector<16x64xf32>
    %588 = arith.mulf %575, %580 : vector<16x64xf32>
    %589 = vector.extract_strided_slice %52 {offsets = [7, 0], sizes = [1, 64], strides = [1, 1]} : vector<8x64xf32> to vector<1x64xf32>
    %590 = vector.broadcast %589 : vector<1x64xf32> to vector<16x64xf32>
    %591 = arith.mulf %588, %590 : vector<16x64xf32>
    %592 = arith.addf %591, %587 : vector<16x64xf32>
    %593 = vector.extract_strided_slice %41 {offsets = [0, 7], sizes = [16, 1], strides = [1, 1]} : vector<16x8xf32> to vector<16x1xf32>
    %594 = vector.broadcast %593 : vector<16x1xf32> to vector<16x64xf32>
    %595 = arith.mulf %594, %592 : vector<16x64xf32>
    %596 = arith.addf %528, %595 : vector<16x64xf32>
    %597 = vector.extract_strided_slice %592 {offsets = [15, 0], sizes = [1, 64], strides = [1, 1]} : vector<16x64xf32> to vector<1x64xf32>
    %598 = tpu.concatenate %121, %189, %257, %325, %393, %461, %529, %597 in 0 : vector<1x64xf32>, vector<1x64xf32>, vector<1x64xf32>, vector<1x64xf32>, vector<1x64xf32>, vector<1x64xf32>, vector<1x64xf32>, vector<1x64xf32> -> vector<8x64xf32>
    %c0_146 = arith.constant 0 : index
    %c0_147 = arith.constant 0 : index
    %599 = vector.load %arg11[%c0_146, %c0_147] : memref<8x64xf32, #tpu.memory_space<vmem>>, vector<8x64xf32>
    tpu.vector_store %arg11[%c0_146, %c0_147], %598 {strides = array<i32>} : memref<8x64xf32, #tpu.memory_space<vmem>>, vector<8x64xf32>,
    %600 = arith.negf %11 : vector<16x64xf32>
    %601 = math.exp %600 : vector<16x64xf32>
    %cst_148 = arith.constant 1.000000e+00 : f32
    %602 = vector.broadcast %cst_148 : f32 to vector<16x64xf32>
    %603 = arith.addf %602, %601 : vector<16x64xf32>
    %604 = arith.divf %602, %603 : vector<16x64xf32>
    %605 = arith.mulf %11, %604 : vector<16x64xf32>
    %606 = arith.mulf %596, %605 : vector<16x64xf32>
    %607 = arith.truncf %606 : vector<16x64xf32> to vector<16x64xbf16>
    %c0_149 = arith.constant 0 : index
    %c0_150 = arith.constant 0 : index
    %608 = vector.load %arg8[%c0_149, %c0_150] : memref<64x32xbf16, #tpu.memory_space<vmem>>, vector<64x32xbf16>
    %cst_151 = arith.constant dense<0.000000e+00> : vector<16x32xf32>
    %609 = tpu.matmul %607, %608, %cst_151 {dimension_numbers = #tpu.dot_dimension_numbers<[1], [0], [0], [1], [0, 0, 1, 1], [], []>} : vector<16x64xbf16>, vector<64x32xbf16>, vector<16x32xf32> -> vector<16x32xf32>
    %c0_152 = arith.constant 0 : index
    %c0_153 = arith.constant 0 : index
    %610 = vector.load %arg9[%c0_152, %c0_153] : memref<1x32xf32, #tpu.memory_space<vmem>>, vector<1x32xf32>
    %611 = vector.broadcast %610 : vector<1x32xf32> to vector<16x32xf32>
    %612 = arith.addf %609, %611 : vector<16x32xf32>
    %c0_154 = arith.constant 0 : index
    %c0_155 = arith.constant 0 : index
    %c0_156 = arith.constant 0 : index
    %613 = vector.load %arg10[%c0_154, %c0_155, %c0_156] : memref<1x16x32xf32, #tpu.memory_space<vmem>>, vector<1x16x32xf32>
    %614 = vector.shape_cast %613 : vector<1x16x32xf32> to vector<16x32xf32>
    %615 = vector.shape_cast %612 : vector<16x32xf32> to vector<1x16x32xf32>
    tpu.vector_store %arg10[%c0_154, %c0_155, %c0_156], %615 {strides = array<i32>} : memref<1x16x32xf32, #tpu.memory_space<vmem>>, vector<1x16x32xf32>,
    return
  }
  func.func @transform_0(%arg0: i32, %arg1: i32) -> (i32, i32, i32) {
    %c0_i32 = arith.constant 0 : i32
    %c0_i32_0 = arith.constant 0 : i32
    return %arg0, %arg1, %c0_i32 : i32, i32, i32
  }
  func.func @transform_1(%arg0: i32, %arg1: i32) -> (i32, i32) {
    %c0_i32 = arith.constant 0 : i32
    %c0_i32_0 = arith.constant 0 : i32
    %c0_i32_1 = arith.constant 0 : i32
    return %c0_i32, %c0_i32_0 : i32, i32
  }
  func.func @transform_2(%arg0: i32, %arg1: i32) -> (i32, i32) {
    %c0_i32 = arith.constant 0 : i32
    %c0_i32_0 = arith.constant 0 : i32
    %c0_i32_1 = arith.constant 0 : i32
    return %c0_i32, %c0_i32_0 : i32, i32
  }
  func.func @transform_3(%arg0: i32, %arg1: i32) -> (i32, i32) {
    %c0_i32 = arith.constant 0 : i32
    %c0_i32_0 = arith.constant 0 : i32
    %c0_i32_1 = arith.constant 0 : i32
    return %c0_i32, %c0_i32_0 : i32, i32
  }
  func.func @transform_4(%arg0: i32, %arg1: i32) -> (i32, i32) {
    %c0_i32 = arith.constant 0 : i32
    %c0_i32_0 = arith.constant 0 : i32
    %c0_i32_1 = arith.constant 0 : i32
    return %c0_i32, %c0_i32_0 : i32, i32
  }
  func.func @transform_5(%arg0: i32, %arg1: i32) -> i32 {
    %c0_i32 = arith.constant 0 : i32
    %c0_i32_0 = arith.constant 0 : i32
    return %c0_i32 : i32
  }
  func.func @transform_6(%arg0: i32, %arg1: i32) -> (i32, i32) {
    %c0_i32 = arith.constant 0 : i32
    %c0_i32_0 = arith.constant 0 : i32
    %c0_i32_1 = arith.constant 0 : i32
    return %c0_i32, %c0_i32_0 : i32, i32
  }
  func.func @transform_7(%arg0: i32, %arg1: i32) -> (i32, i32) {
    %c0_i32 = arith.constant 0 : i32
    %c0_i32_0 = arith.constant 0 : i32
    %c0_i32_1 = arith.constant 0 : i32
    return %c0_i32, %c0_i32_0 : i32, i32
  }
  func.func @transform_8(%arg0: i32, %arg1: i32) -> (i32, i32, i32) {
    %c0_i32 = arith.constant 0 : i32
    %c0_i32_0 = arith.constant 0 : i32
    return %arg0, %arg1, %c0_i32 : i32, i32, i32
  }
}

</mosaic_0001>

<llo_original>
// kernel: tpu_custom_call.1
$region0: #{tpu_custom_call.1}
  #allocation0 [shape = 'u32[]', space=smem, size = 0x4, offset = 0x4, fixed_abs, tag = 'smem constant byte address 0x4 - core index']
  #allocation1 [shape = 'u32[144,128]{1,0:T(1,128)}', space=vmem, size = 0x12000, scoped, tag = 'internal scratch']
  #allocation2 [shape = 'f32[8,64]{1,0:T(8,128)}', space=vmem, size = 0x1000, scoped, tag = 'scratch operand']
  %s0 = inlined_call_operand.vmem [shape: bf16[2,32,32], index: 0, kind: input, shape index: {}]
  %s1 = inlined_call_operand.vmem [shape: bf16[32,128], index: 1, kind: input, shape index: {}]
  %s2 = inlined_call_operand.vmem [shape: f32[1,128], index: 2, kind: input, shape index: {}]
  %s3 = inlined_call_operand.hbm [shape: bf16[64,384], index: 3, kind: input, shape index: {}]
  %s4 = inlined_call_operand.vmem [shape: f32[1,64], index: 4, kind: input, shape index: {}]
  %s5 = inlined_call_operand.vmem [shape: f32[8], index: 5, kind: input, shape index: {}]
  %s6 = inlined_call_operand.vmem [shape: bf16[64,32], index: 6, kind: input, shape index: {}]
  %s7 = inlined_call_operand.vmem [shape: f32[1,32], index: 7, kind: input, shape index: {}]
  %s8 = inlined_call_operand.hbm [shape: f32[2,32,32], index: 8, kind: output, shape index: {}]
  %s9 = sld [smem:[#allocation0]]
  $region77: #{tpu_custom_call.1} parent=0
    _
  %s11 = ssub.s32 1, %s9
  %s12 = scalar_select 0, %s11, %s9
  $region1: #{tpu_custom_call.1} parent=0
    #allocation3 [shape = 'u8[49152]{0}', space=vmem, size = 0xc000, scoped, tag = 'input window, operand 3, single buffered']
    #allocation4 [shape = 's32[2]{0}', space=sflag, size = 0x8, scoped, tag = 'scoped memory for tpu_custom_call.1']
    #allocation5 [shape = 's32[2]{0}', space=sflag, size = 0x8, scoped, tag = 'scoped memory for tpu_custom_call.1']
    #allocation6 [shape = 's32[2]{0}', space=sflag, size = 0x8, scoped, tag = 'scoped memory for tpu_custom_call.1']
    #allocation7 [shape = 'u8[512]{0}', space=smem, size = 0x200, scoped, tag = 'input window, operand 5, single buffered']
    #allocation8 [shape = 'u8[16384]{0}', space=vmem, size = 0x4000, scoped, tag = 'output window, operand 0']
    %13 = vsyncpa [#allocation4], 0
    %14 = vsyncpa [#allocation6], 0
    %15 = vsyncpa [#allocation5], 0
    %s16 = scalar_lea.sflag [#allocation5], 1
    %17 = vsyncpa %s16, 0
    loop: start=0, step=1, limit=6
    $region2: #{tpu_custom_call.1} parent=1 // loop_pre_header
      _
    $region3: #{tpu_custom_call.1} parent=1 // loop_header
      %s19 = sphi 0, %s23
      %p20 = scmp.ge.s32.totalorder %s19, 6
      %s26 = sphi 0, %s38
      %s27 = sphi 0, %s34
      %s28 = sphi 0, %s26
      %s29 = sphi 0, %s27
      %s30 = sphi 0, %s28
      %s31 = sphi 0, %s29
      %s43 = sphi 0, %s45
      %s46 = sphi 0, %s43
      %s47 = sphi 0, %s46
      %s63 = sphi 0, %s47
      %s67 = sphi 0, %s67
      %s69 = sphi 0, %s67
      %s70 = sphi 0, %s69
      %s84 = sphi 0, %s70
      %s88 = sphi 0, %s88
      %s90 = sphi 0, %s88
      %s91 = sphi 0, %s90
      %s105 = sphi 0, %s91
      %s109 = sphi 0, %s109
      %s111 = sphi 0, %s109
      %s112 = sphi 0, %s111
      %s126 = sphi 0, %s112
      %s130 = sphi 0, %s130
      %s132 = sphi 0, %s130
      %s133 = sphi 0, %s132
      %s147 = sphi 0, %s133
      %s151 = sphi 0, %s151
      %s153 = sphi 0, %s151
      %s154 = sphi 0, %s153
      %s168 = sphi 0, %s154
      %s172 = sphi 0, %s172
      %s174 = sphi 0, %s172
      %s175 = sphi 0, %s174
      %s189 = sphi 0, %s175
      %s193 = sphi 0, %s193
      %s195 = sphi 0, %s193
      %s196 = sphi 0, %s195
      %s210 = sphi 0, %s196
      %s218 = sphi 0, %s220
      %s221 = sphi 0, %s218
      %s222 = sphi 0, %s221
      %s238 = sphi 0, %s222
    $region4: #{tpu_custom_call.1} parent=1 // loop_header_branch
      %22 = sbr.rel (%p20) target = $region8
    $region5: #{tpu_custom_call.1} parent=1 // loop_body
      %s24 = ssub.s32 %s19, 1
      %s25 = ssub.s32 %s19, 2
      %s32 = sadd.s32 1, %s27
      %p33 = scmp.ge.s32.totalorder %s32, 2
      %s34 = scalar_select %p33, 0, %s32
      %s35 = sadd.s32 1, %s26
      %s36 = scalar_select %p33, %s35, %s26
      %p37 = scmp.ge.s32.totalorder %s36, 2
      %s38 = scalar_select %p37, 0, %s36
      %s39 = ssub.s32 %s26, %s38
      %s40 = ssub.s32 %s27, %s34
      %s41 = sor.u32 %s39, %s40
      %p42 = scmp.eq.s32.totalorder %s41, 0
      %s44 = sadd.s32 %s43, 1
      %s45 = scalar_select %p42, %s43, %s44
      %p48 = pneg %p42
      %p49 = scmp.eq.s32.totalorder %s19, 3
      %p50 = por %p48, %p49
      %p51 = scmp.ne.s32.totalorder %s43, %s46
      %p52 = scmp.eq.s32.totalorder %s19, 0
      %p53 = por %p51, %p52
      %p54 = scmp.ne.s32.totalorder %s43, %s46
      %p55 = scmp.eq.s32.totalorder %s24, 3
      %p56 = por %p54, %p55
      %p57 = scmp.ne.s32.totalorder %s46, %s47
      %p58 = scmp.eq.s32.totalorder %s24, 0
      %p59 = por %p57, %p58
      %p60 = scmp.ne.s32.totalorder %s46, %s47
      %p61 = scmp.eq.s32.totalorder %s25, 3
      %p62 = por %p60, %p61
      %p64 = scmp.ne.s32.totalorder %s47, %s63
      %p65 = scmp.eq.s32.totalorder %s25, 0
      %p66 = por %p64, %p65
      %s68 = sadd.s32 %s67, 1
      %p71 = scmp.eq.s32.totalorder %s19, 3
      %p72 = scmp.ne.s32.totalorder %s67, %s69
      %p73 = scmp.eq.s32.totalorder %s19, 0
      %p74 = por %p72, %p73
      %p75 = scmp.ne.s32.totalorder %s67, %s69
      %p76 = scmp.eq.s32.totalorder %s24, 3
      %p77 = por %p75, %p76
      %p78 = scmp.ne.s32.totalorder %s69, %s70
      %p79 = scmp.eq.s32.totalorder %s24, 0
      %p80 = por %p78, %p79
      %p81 = scmp.ne.s32.totalorder %s69, %s70
      %p82 = scmp.eq.s32.totalorder %s25, 3
      %p83 = por %p81, %p82
      %p85 = scmp.ne.s32.totalorder %s70, %s84
      %p86 = scmp.eq.s32.totalorder %s25, 0
      %p87 = por %p85, %p86
      %s89 = sadd.s32 %s88, 1
      %p92 = scmp.eq.s32.totalorder %s19, 3
      %p93 = scmp.ne.s32.totalorder %s88, %s90
      %p94 = scmp.eq.s32.totalorder %s19, 0
      %p95 = por %p93, %p94
      %p96 = scmp.ne.s32.totalorder %s88, %s90
      %p97 = scmp.eq.s32.totalorder %s24, 3
      %p98 = por %p96, %p97
      %p99 = scmp.ne.s32.totalorder %s90, %s91
      %p100 = scmp.eq.s32.totalorder %s24, 0
      %p101 = por %p99, %p100
      %p102 = scmp.ne.s32.totalorder %s90, %s91
      %p103 = scmp.eq.s32.totalorder %s25, 3
      %p104 = por %p102, %p103
      %p106 = scmp.ne.s32.totalorder %s91, %s105
      %p107 = scmp.eq.s32.totalorder %s25, 0
      %p108 = por %p106, %p107
      %s110 = sadd.s32 %s109, 1
      %p113 = scmp.eq.s32.totalorder %s19, 3
      %p114 = scmp.ne.s32.totalorder %s109, %s111
      %p115 = scmp.eq.s32.totalorder %s19, 0
      %p116 = por %p114, %p115
      %p117 = scmp.ne.s32.totalorder %s109, %s111
      %p118 = scmp.eq.s32.totalorder %s24, 3
      %p119 = por %p117, %p118
      %p120 = scmp.ne.s32.totalorder %s111, %s112
      %p121 = scmp.eq.s32.totalorder %s24, 0
      %p122 = por %p120, %p121
      %p123 = scmp.ne.s32.totalorder %s111, %s112
      %p124 = scmp.eq.s32.totalorder %s25, 3
      %p125 = por %p123, %p124
      %p127 = scmp.ne.s32.totalorder %s112, %s126
      %p128 = scmp.eq.s32.totalorder %s25, 0
      %p129 = por %p127, %p128
      %s131 = sadd.s32 %s130, 1
      %p134 = scmp.eq.s32.totalorder %s19, 3
      %p135 = scmp.ne.s32.totalorder %s130, %s132
      %p136 = scmp.eq.s32.totalorder %s19, 0
      %p137 = por %p135, %p136
      %p138 = scmp.ne.s32.totalorder %s130, %s132
      %p139 = scmp.eq.s32.totalorder %s24, 3
      %p140 = por %p138, %p139
      %p141 = scmp.ne.s32.totalorder %s132, %s133
      %p142 = scmp.eq.s32.totalorder %s24, 0
      %p143 = por %p141, %p142
      %p144 = scmp.ne.s32.totalorder %s132, %s133
      %p145 = scmp.eq.s32.totalorder %s25, 3
      %p146 = por %p144, %p145
      %p148 = scmp.ne.s32.totalorder %s133, %s147
      %p149 = scmp.eq.s32.totalorder %s25, 0
      %p150 = por %p148, %p149
      %s152 = sadd.s32 %s151, 1
      %p155 = scmp.eq.s32.totalorder %s19, 3
      %p156 = scmp.ne.s32.totalorder %s151, %s153
      %p157 = scmp.eq.s32.totalorder %s19, 0
      %p158 = por %p156, %p157
      %p159 = scmp.ne.s32.totalorder %s151, %s153
      %p160 = scmp.eq.s32.totalorder %s24, 3
      %p161 = por %p159, %p160
      %p162 = scmp.ne.s32.totalorder %s153, %s154
      %p163 = scmp.eq.s32.totalorder %s24, 0
      %p164 = por %p162, %p163
      %p165 = scmp.ne.s32.totalorder %s153, %s154
      %p166 = scmp.eq.s32.totalorder %s25, 3
      %p167 = por %p165, %p166
      %p169 = scmp.ne.s32.totalorder %s154, %s168
      %p170 = scmp.eq.s32.totalorder %s25, 0
      %p171 = por %p169, %p170
      %s173 = sadd.s32 %s172, 1
      %p176 = scmp.eq.s32.totalorder %s19, 3
      %p177 = scmp.ne.s32.totalorder %s172, %s174
      %p178 = scmp.eq.s32.totalorder %s19, 0
      %p179 = por %p177, %p178
      %p180 = scmp.ne.s32.totalorder %s172, %s174
      %p181 = scmp.eq.s32.totalorder %s24, 3
      %p182 = por %p180, %p181
      %p183 = scmp.ne.s32.totalorder %s174, %s175
      %p184 = scmp.eq.s32.totalorder %s24, 0
      %p185 = por %p183, %p184
      %p186 = scmp.ne.s32.totalorder %s174, %s175
      %p187 = scmp.eq.s32.totalorder %s25, 3
      %p188 = por %p186, %p187
      %p190 = scmp.ne.s32.totalorder %s175, %s189
      %p191 = scmp.eq.s32.totalorder %s25, 0
      %p192 = por %p190, %p191
      %s194 = sadd.s32 %s193, 1
      %p197 = scmp.eq.s32.totalorder %s19, 3
      %p198 = scmp.ne.s32.totalorder %s193, %s195
      %p199 = scmp.eq.s32.totalorder %s19, 0
      %p200 = por %p198, %p199
      %p201 = scmp.ne.s32.totalorder %s193, %s195
      %p202 = scmp.eq.s32.totalorder %s24, 3
      %p203 = por %p201, %p202
      %p204 = scmp.ne.s32.totalorder %s195, %s196
      %p205 = scmp.eq.s32.totalorder %s24, 0
      %p206 = por %p204, %p205
      %p207 = scmp.ne.s32.totalorder %s195, %s196
      %p208 = scmp.eq.s32.totalorder %s25, 3
      %p209 = por %p207, %p208
      %p211 = scmp.ne.s32.totalorder %s196, %s210
      %p212 = scmp.eq.s32.totalorder %s25, 0
      %p213 = por %p211, %p212
      %s214 = ssub.s32 %s26, %s38
      %s215 = ssub.s32 %s27, %s34
      %s216 = sor.u32 %s214, %s215
      %p217 = scmp.eq.s32.totalorder %s216, 0
      %s219 = sadd.s32 %s218, 1
      %s220 = scalar_select %p217, %s218, %s219
      %p223 = pneg %p217
      %p224 = scmp.eq.s32.totalorder %s19, 3
      %p225 = por %p223, %p224
      %p226 = scmp.ne.s32.totalorder %s218, %s221
      %p227 = scmp.eq.s32.totalorder %s19, 0
      %p228 = por %p226, %p227
      %p229 = scmp.ne.s32.totalorder %s218, %s221
      %p230 = scmp.eq.s32.totalorder %s24, 3
      %p231 = por %p229, %p230
      %p232 = scmp.ne.s32.totalorder %s221, %s222
      %p233 = scmp.eq.s32.totalorder %s24, 0
      %p234 = por %p232, %p233
      %p235 = scmp.ne.s32.totalorder %s221, %s222
      %p236 = scmp.eq.s32.totalorder %s25, 3
      %p237 = por %p235, %p236
      %p239 = scmp.ne.s32.totalorder %s222, %s238
      %p240 = scmp.eq.s32.totalorder %s25, 0
      %p241 = por %p239, %p240
      %p242 = scmp.le.s32.totalorder 1, %s19
      %p243 = scmp.lt.s32.totalorder %s19, 5
      %p244 = pnand %p242, %p243
      %p245 = pneg %p244
      // Predicated region
      $region9: #{tpu_custom_call.1} parent=5 // pred_check
        _
      $region10: #{tpu_custom_call.1} parent=5 // pred_check_branch
        %247 = sbr.rel (%p244) target = $region12
      $region11: #{tpu_custom_call.1} parent=5 // pred_region
        %s248 = ssub.s32 %s19, 1
        // Predicated region
        $region13: #{tpu_custom_call.1} parent=11 // pred_check
          %p249 = pneg %p80
        $region14: #{tpu_custom_call.1} parent=11 // pred_check_branch
          %251 = sbr.rel (%p249) target = $region16
        $region15: #{tpu_custom_call.1} parent=11 // pred_region
          _
        $region16: #{tpu_custom_call.1} parent=11 // pred_fallthru
          _
        // Predicated region
        $region17: #{tpu_custom_call.1} parent=11 // pred_check
          %p252 = pneg %p101
        $region18: #{tpu_custom_call.1} parent=11 // pred_check_branch
          %254 = sbr.rel (%p252) target = $region20
        $region19: #{tpu_custom_call.1} parent=11 // pred_region
          _
        $region20: #{tpu_custom_call.1} parent=11 // pred_fallthru
          _
        // Predicated region
        $region21: #{tpu_custom_call.1} parent=11 // pred_check
          %p255 = pneg %p122
        $region22: #{tpu_custom_call.1} parent=11 // pred_check_branch
          %257 = sbr.rel (%p255) target = $region24
        $region23: #{tpu_custom_call.1} parent=11 // pred_region
          %s259 = ssub.s32 1536, 1536
          %260 = vsyncadd [#allocation4], %s259
          %s261 = sshll.u32 [#allocation3], 4
          %s262 = int_to_ptr.vmem [resolvable:$true] %s261
          %267 = dma.hbm_to_vmem [thread:$0]  %s3, 1536, %s262, [#allocation4], 192, 192, 12
        $region24: #{tpu_custom_call.1} parent=11 // pred_fallthru
          _
        // Predicated region
        $region25: #{tpu_custom_call.1} parent=11 // pred_check
          %p268 = pneg %p143
        $region26: #{tpu_custom_call.1} parent=11 // pred_check_branch
          %270 = sbr.rel (%p268) target = $region28
        $region27: #{tpu_custom_call.1} parent=11 // pred_region
          _
        $region28: #{tpu_custom_call.1} parent=11 // pred_fallthru
          _
        // Predicated region
        $region29: #{tpu_custom_call.1} parent=11 // pred_check
          %p271 = pneg %p164
        $region30: #{tpu_custom_call.1} parent=11 // pred_check_branch
          %273 = sbr.rel (%p271) target = $region32
        $region31: #{tpu_custom_call.1} parent=11 // pred_region
          %s275 = ssub.s32 16, 16
          %276 = vsyncadd [#allocation6], %s275
          %s278 = sshll.u32 %s5, 4
          %s279 = int_to_ptr.vmem [resolvable:$true] %s278
          %281 = dma.vmem_to_smem %s279, 16, [#allocation7], [#allocation6]
        $region32: #{tpu_custom_call.1} parent=11 // pred_fallthru
          _
        // Predicated region
        $region33: #{tpu_custom_call.1} parent=11 // pred_check
          %p282 = pneg %p185
        $region34: #{tpu_custom_call.1} parent=11 // pred_check_branch
          %284 = sbr.rel (%p282) target = $region36
        $region35: #{tpu_custom_call.1} parent=11 // pred_region
          _
        $region36: #{tpu_custom_call.1} parent=11 // pred_fallthru
          _
        // Predicated region
        $region37: #{tpu_custom_call.1} parent=11 // pred_check
          %p285 = pneg %p206
        $region38: #{tpu_custom_call.1} parent=11 // pred_check_branch
          %287 = sbr.rel (%p285) target = $region40
        $region39: #{tpu_custom_call.1} parent=11 // pred_region
          _
        $region40: #{tpu_custom_call.1} parent=11 // pred_fallthru
          _
      $region12: #{tpu_custom_call.1} parent=5 // pred_fallthru
        _
      %p288 = scmp.lt.s32.totalorder %s19, 4
      // Predicated region
      $region41: #{tpu_custom_call.1} parent=5 // pred_check
        %p289 = pneg %p288
      $region42: #{tpu_custom_call.1} parent=5 // pred_check_branch
        %291 = sbr.rel (%p289) target = $region44
      $region43: #{tpu_custom_call.1} parent=5 // pred_region
        // Predicated region
        $region45: #{tpu_custom_call.1} parent=43 // pred_check
          %p292 = pneg %p53
        $region46: #{tpu_custom_call.1} parent=43 // pred_check_branch
          %294 = sbr.rel (%p292) target = $region48
        $region47: #{tpu_custom_call.1} parent=43 // pred_region
          %s295 = smul.u32 2, %s27
          %p296 = scmp.lt.s32.totalorder %s26, 1
          %s297 = scalar_select %p296, %s26, 1
          %p298 = scmp.lt.s32.totalorder %s295, 3
          %s299 = scalar_select %p298, %s295, 3
          %s300 = smul.addr %s297, 4
          %s301 = sadd.s32 %s299, %s300
          %s302 = smul.addr %s301, 4
          %s303 = scalar_lea.vmem %s0, %s302
          %s304 = smul.u32 2, %s27
        $region48: #{tpu_custom_call.1} parent=43 // pred_fallthru
          _
      $region44: #{tpu_custom_call.1} parent=5 // pred_fallthru
        _
      %p305 = scmp.le.s32.totalorder 1, %s19
      %p306 = scmp.lt.s32.totalorder %s19, 5
      %p307 = pnand %p305, %p306
      %p308 = pneg %p307
      // Predicated region
      $region49: #{tpu_custom_call.1} parent=5 // pred_check
        _
      $region50: #{tpu_custom_call.1} parent=5 // pred_check_branch
        %310 = sbr.rel (%p307) target = $region52
      $region51: #{tpu_custom_call.1} parent=5 // pred_region
        %s311 = ssub.s32 %s19, 1
        // Predicated region
        $region53: #{tpu_custom_call.1} parent=51 // pred_check
          %p312 = pneg %p122
        $region54: #{tpu_custom_call.1} parent=51 // pred_check_branch
          %314 = sbr.rel (%p312) target = $region56
        $region55: #{tpu_custom_call.1} parent=51 // pred_region
          %315 = dma.done [#allocation4], 1536
        $region56: #{tpu_custom_call.1} parent=51 // pred_fallthru
          _
        // Predicated region
        $region57: #{tpu_custom_call.1} parent=51 // pred_check
          %p316 = pneg %p164
        $region58: #{tpu_custom_call.1} parent=51 // pred_check_branch
          %318 = sbr.rel (%p316) target = $region60
        $region59: #{tpu_custom_call.1} parent=51 // pred_region
          %319 = dma.done [#allocation6], 16
        $region60: #{tpu_custom_call.1} parent=51 // pred_fallthru
          _
        %320 = sfence
        %s321 = smul.u32 2, %s29
        %p322 = scmp.lt.s32.totalorder %s28, 1
        %s323 = scalar_select %p322, %s28, 1
        %p324 = scmp.lt.s32.totalorder %s321, 3
        %s325 = scalar_select %p324, %s321, 3
        %s326 = smul.addr %s323, 4
        %s327 = sadd.s32 %s325, %s326
        %s328 = smul.addr %s327, 4
        %s329 = scalar_lea.vmem %s0, %s328
        %p330 = pneg %p59
        %p331 = pneg %p56
        %p332 = pneg %p80
        %p333 = pneg %p77
        %p334 = pneg %p101
        %p335 = pneg %p98
        %p336 = pneg %p122
        %p337 = pneg %p119
        %p338 = pneg %p143
        %p339 = pneg %p140
        %p340 = pneg %p164
        %p341 = pneg %p161
        %p342 = pneg %p185
        %p343 = pneg %p182
        %p344 = pneg %p206
        %p345 = pneg %p203
        %p346 = pneg %p234
        %p347 = pneg %p231
        %s348 = sand.u32 %s221, 1
        %s349 = scalar_lea.sflag [#allocation5], %s348
        %s350 = sand.u32 %s221, 1
        %s351 = smul.addr %s350, 16
        %s352 = scalar_lea.vmem [#allocation8], %s351
        %s353 = smul.u32 2, %s29
        %p354 = scmp.lt.s32.totalorder %s28, 1
        %s355 = scalar_select %p354, %s28, 1
        %p356 = scmp.lt.s32.totalorder %s353, 3
        %s357 = scalar_select %p356, %s353, 3
        %s358 = smul.addr %s355, 4
        %s359 = sadd.s32 %s357, %s358
        %s360 = smul.addr %s359, 4
        %s361 = scalar_lea.vmem %s0, %s360
        %s362 = smul.u32 2, %s29
        %s363 = smul.u32 2, %s29
        %p365 = scmp.eq.s32.totalorder %s29, 0
        // Predicated region
        $region61: #{tpu_custom_call.1} parent=51 // pred_check
          %p366 = pneg %p365
        $region62: #{tpu_custom_call.1} parent=51 // pred_check_branch
          %368 = sbr.rel (%p366) target = $region64
        $region63: #{tpu_custom_call.1} parent=51 // pred_region
          %vm369 = vcmask 523264
          %370 = vst.msk [vmem:[#allocation2] sm:$0xff] %vm369, 0.0
        $region64: #{tpu_custom_call.1} parent=51 // pred_fallthru
          _
        %v371 = vld [vmem:[%s361] sm:$0xf]
        %v372 = vld [vmem:[%s361 + $0x4] sm:$0xf]
        %v373 = vld [vmem:[%s1] sm:$0xf]
        %v374 = vld [vmem:[%s1 + $0x4] sm:$0xf]
        %v375 = vld [vmem:[%s1 + $0x8] sm:$0xf]
        %v376 = vld [vmem:[%s1 + $0xc] sm:$0xf]
        %v377 = vld [vmem:[%s2] sm:$0x1]
        %v379 = vlaneseq
        %v380 = vshrl.u32 %v379, 7
        %v381 = vsub.s32 0, %v380
        %v382 = vrot.slane %v377, %v381
        %v386 = vunpack.c.l.b16 %v371
        %v387 = vunpack.c.l.b16 %v372
        %v388 = vpack.c.b16 %v387, %v386
        %v393 = vunpack.c.l.b16 %v373
        %v394 = vunpack.c.l.b16 %v374
        %v395 = vunpack.c.l.b16 %v375
        %v396 = vunpack.c.l.b16 %v376
        %v397 = vpack.c.b16 %v394, %v393
        %v398 = vpack.c.b16 %v396, %v395
        %vm401 = vcmask 261120
        %v403 = vsel %vm401, %v388, 0
        %405 = vmatprep.subr.bf16.mxu0 0
        %406 = vmatpush1.bf16.msra.mxu0 0
        %407 = vmatprep.subr.bf16.mxu0 0
        %408 = vmatpush1.bf16.msra.mxu0 0
        %409 = vmatprep.subr.bf16.mxu0 0
        %410 = vmatpush1.bf16.msra.mxu0 0
        %411 = vmatprep.subr.bf16.mxu0 0
        %412 = vmatpush1.bf16.msra.mxu0 0
        %413 = vmatprep.subr.bf16.mxu0 0
        %414 = vmatpush1.bf16.msra.mxu0 0
        %415 = vmatprep.subr.bf16.mxu0 0
        %416 = vmatpush1.bf16.msra.mxu0 0
        %417 = vmatprep.subr.bf16.mxu0 0
        %418 = vmatpush1.bf16.msra.mxu0 %v398
        %419 = vmatprep.subr.bf16.mxu0 0
        %420 = vmatpush1.bf16.msra.mxu0 %v397
        %421 = vmatprep.subr.bf16.mxu0 0
        %422 = vmatpush2.bf16.msra.mxu0 0
        %423 = vmatprep.subr.bf16.mxu0 0
        %424 = vmatpush2.bf16.msra.mxu0 0
        %425 = vmatprep.subr.bf16.mxu0 0
        %426 = vmatpush2.bf16.msra.mxu0 0
        %427 = vmatprep.subr.bf16.mxu0 0
        %428 = vmatpush2.bf16.msra.mxu0 0
        %429 = vmatprep.subr.bf16.mxu0 0
        %430 = vmatpush2.bf16.msra.mxu0 0
        %431 = vmatprep.subr.bf16.mxu0 0
        %432 = vmatpush2.bf16.msra.mxu0 0
        %433 = vmatprep.subr.bf16.mxu0 0
        %434 = vmatpush2.bf16.msra.mxu0 0
        %435 = vmatprep.subr.bf16.mxu0 0
        %436 = vmatpush2.bf16.msra.mxu0 0
        %437 = vmatprep.mubr.bf16.mxu0 0
        %438 = vmatmul.mubr.bf16.gmra.mxu0 %v403
        %v439 = vpop.f32.mrf.mxu0
        %v440 = vadd.f32 %v382, %v439
        %v441 = vpop.f32.mrf.mxu0
        %v442 = vpop.f32.mrf.mxu0
        %v443 = vadd.f32 %v382, %v442
        %v444 = vpop.f32.mrf.mxu0
        %445 = vdwg.mxu0
        %v446 = vxor.u32 %v440, 2147483648
        %v447 = vxor.u32 %v443, 2147483648
        %v448 = vmul.f32 %v446, 1.442695
        %v449 = vpow.pop %v448
        %v450 = vmul.f32 %v447, 1.442695
        %v451 = vpow.pop %v450
        %v452 = vadd.f32 %v449, 1.0
        %v453 = vadd.f32 %v451, 1.0
        %v454 = vrcp.pop %v452
        %v455 = vmul.f32 1.0, %v454
        %v456 = vrcp.pop %v453
        %v457 = vmul.f32 1.0, %v456
        %v458 = vmul.f32 %v440, %v455
        %v459 = vmul.f32 %v443, %v457
        %v460 = vpack.c.bf16 %v459, %v458
        %v461 = vld [vmem:[#allocation3] sm:$0xff]
        %v462 = vld [vmem:[#allocation3 + $0x8] sm:$0xf]
        %v463 = vld [vmem:[#allocation3 + $0xc] sm:$0xff]
        %v464 = vld [vmem:[#allocation3 + $0x14] sm:$0xf]
        %v465 = vld [vmem:[#allocation3 + $0x18] sm:$0xff]
        %v466 = vld [vmem:[#allocation3 + $0x20] sm:$0xf]
        %v467 = vld [vmem:[#allocation3 + $0x24] sm:$0xff]
        %v468 = vld [vmem:[#allocation3 + $0x2c] sm:$0xf]
        %v469 = vld [vmem:[#allocation3 + $0x30] sm:$0xff]
        %v470 = vld [vmem:[#allocation3 + $0x38] sm:$0xf]
        %v471 = vld [vmem:[#allocation3 + $0x3c] sm:$0xff]
        %v472 = vld [vmem:[#allocation3 + $0x44] sm:$0xf]
        %v473 = vld [vmem:[#allocation3 + $0x48] sm:$0xff]
        %v474 = vld [vmem:[#allocation3 + $0x50] sm:$0xf]
        %v475 = vld [vmem:[#allocation3 + $0x54] sm:$0xff]
        %v476 = vld [vmem:[#allocation3 + $0x5c] sm:$0xf]
        %v493 = vunpack.c.l.b16 %v461
        %v494 = vunpack.c.h.b16 %v461
        %v495 = vunpack.c.l.b16 %v462
        %v496 = vunpack.c.l.b16 %v463
        %v497 = vunpack.c.h.b16 %v463
        %v498 = vunpack.c.l.b16 %v464
        %v499 = vunpack.c.l.b16 %v465
        %v500 = vunpack.c.h.b16 %v465
        %v501 = vunpack.c.l.b16 %v466
        %v502 = vunpack.c.l.b16 %v467
        %v503 = vunpack.c.h.b16 %v467
        %v504 = vunpack.c.l.b16 %v468
        %v505 = vunpack.c.l.b16 %v469
        %v506 = vunpack.c.h.b16 %v469
        %v507 = vunpack.c.l.b16 %v470
        %v508 = vunpack.c.l.b16 %v471
        %v509 = vunpack.c.h.b16 %v471
        %v510 = vunpack.c.l.b16 %v472
        %v511 = vunpack.c.l.b16 %v473
        %v512 = vunpack.c.h.b16 %v473
        %v513 = vunpack.c.l.b16 %v474
        %v514 = vunpack.c.l.b16 %v475
        %v515 = vunpack.c.h.b16 %v475
        %v516 = vunpack.c.l.b16 %v476
        %v517 = vpack.c.b16 %v496, %v493
        %v518 = vpack.c.b16 %v497, %v494
        %v519 = vpack.c.b16 %v498, %v495
        %v520 = vpack.c.b16 %v502, %v499
        %v521 = vpack.c.b16 %v503, %v500
        %v522 = vpack.c.b16 %v504, %v501
        %v523 = vpack.c.b16 %v508, %v505
        %v524 = vpack.c.b16 %v509, %v506
        %v525 = vpack.c.b16 %v510, %v507
        %v526 = vpack.c.b16 %v514, %v511
        %v527 = vpack.c.b16 %v515, %v512
        %v528 = vpack.c.b16 %v516, %v513
        %vm541 = vcmask 523264
        %v543 = vsel %vm541, %v460, 0
        %545 = vmatprep.subr.bf16.mxu0 0
        %546 = vmatpush1.bf16.msra.mxu0 0
        %547 = vmatprep.subr.bf16.mxu0 0
        %548 = vmatpush1.bf16.msra.mxu0 0
        %549 = vmatprep.subr.bf16.mxu0 0
        %550 = vmatpush1.bf16.msra.mxu0 0
        %551 = vmatprep.subr.bf16.mxu0 0
        %552 = vmatpush1.bf16.msra.mxu0 0
        %553 = vmatprep.subr.bf16.mxu0 %v527
        %554 = vmatpush1.bf16.msra.mxu0 %v526
        %555 = vmatprep.subr.bf16.mxu0 %v524
        %556 = vmatpush1.bf16.msra.mxu0 %v523
        %557 = vmatprep.subr.bf16.mxu0 %v521
        %558 = vmatpush1.bf16.msra.mxu0 %v520
        %559 = vmatprep.subr.bf16.mxu0 %v518
        %560 = vmatpush1.bf16.msra.mxu0 %v517
        %561 = vmatprep.subr.bf16.mxu0 0
        %562 = vmatpush2.bf16.msra.mxu0 0
        %563 = vmatprep.subr.bf16.mxu0 0
        %564 = vmatpush2.bf16.msra.mxu0 0
        %565 = vmatprep.subr.bf16.mxu0 0
        %566 = vmatpush2.bf16.msra.mxu0 0
        %567 = vmatprep.subr.bf16.mxu0 0
        %568 = vmatpush2.bf16.msra.mxu0 0
        %569 = vmatprep.subr.bf16.mxu0 0
        %570 = vmatpush2.bf16.msra.mxu0 0
        %571 = vmatprep.subr.bf16.mxu0 0
        %572 = vmatpush2.bf16.msra.mxu0 0
        %573 = vmatprep.subr.bf16.mxu0 0
        %574 = vmatpush2.bf16.msra.mxu0 0
        %575 = vmatprep.subr.bf16.mxu0 0
        %576 = vmatpush2.bf16.msra.mxu0 0
        %577 = vmatprep.mubr.bf16.mxu0 0
        %578 = vmatmul.mubr.bf16.gmra.mxu0 %v543
        %v579 = vpop.f32.mrf.mxu0
        %v580 = vadd.f32 0.0, %v579
        %v581 = vpop.f32.mrf.mxu0
        %v582 = vadd.f32 0.0, %v581
        %v583 = vpop.f32.mrf.mxu0
        %v584 = vadd.f32 0.0, %v583
        %v585 = vpop.f32.mrf.mxu0
        %v586 = vadd.f32 0.0, %v585
        %587 = vdwg.mxu0
        %588 = vmatprep.subr.bf16.mxu0 0
        %589 = vmatpush1.bf16.msra.mxu0 0
        %590 = vmatprep.subr.bf16.mxu0 0
        %591 = vmatpush1.bf16.msra.mxu0 0
        %592 = vmatprep.subr.bf16.mxu0 0
        %593 = vmatpush1.bf16.msra.mxu0 0
        %594 = vmatprep.subr.bf16.mxu0 0
        %595 = vmatpush1.bf16.msra.mxu0 0
        %596 = vmatprep.subr.bf16.mxu0 0
        %597 = vmatpush1.bf16.msra.mxu0 %v528
        %598 = vmatprep.subr.bf16.mxu0 0
        %599 = vmatpush1.bf16.msra.mxu0 %v525
        %600 = vmatprep.subr.bf16.mxu0 0
        %601 = vmatpush1.bf16.msra.mxu0 %v522
        %602 = vmatprep.subr.bf16.mxu0 0
        %603 = vmatpush1.bf16.msra.mxu0 %v519
        %604 = vmatprep.subr.bf16.mxu0 0
        %605 = vmatpush2.bf16.msra.mxu0 0
        %606 = vmatprep.subr.bf16.mxu0 0
        %607 = vmatpush2.bf16.msra.mxu0 0
        %608 = vmatprep.subr.bf16.mxu0 0
        %609 = vmatpush2.bf16.msra.mxu0 0
        %610 = vmatprep.subr.bf16.mxu0 0
        %611 = vmatpush2.bf16.msra.mxu0 0
        %612 = vmatprep.subr.bf16.mxu0 0
        %613 = vmatpush2.bf16.msra.mxu0 0
        %614 = vmatprep.subr.bf16.mxu0 0
        %615 = vmatpush2.bf16.msra.mxu0 0
        %616 = vmatprep.subr.bf16.mxu0 0
        %617 = vmatpush2.bf16.msra.mxu0 0
        %618 = vmatprep.subr.bf16.mxu0 0
        %619 = vmatpush2.bf16.msra.mxu0 0
        %620 = vmatprep.mubr.bf16.mxu0 0
        %621 = vmatmul.mubr.bf16.gmra.mxu0 %v543
        %v622 = vpop.f32.mrf.mxu0
        %v623 = vadd.f32 0.0, %v622
        %v624 = vpop.f32.mrf.mxu0
        %v625 = vpop.f32.mrf.mxu0
        %v626 = vadd.f32 0.0, %v625
        %v627 = vpop.f32.mrf.mxu0
        %628 = vdwg.mxu0
        %v629 = vld [vmem:[%s4] sm:$0x1]
        %v631 = vlaneseq
        %v632 = vshrl.u32 %v631, 7
        %v633 = vsub.s32 0, %v632
        %v634 = vrot.slane %v629, %v633
        %635 = vrot.lane.b32.xlu0 %v634, 64
        %v636 = vpop.permute.xlu0 %635
        %v638 = vadd.f32 %v580, %v636
        %v639 = vadd.f32 %v584, %v636
        %v640 = vmax.f32 %v638, 0.0
        %v641 = vmax.f32 %v639, 0.0
        %vm642 = vcmp.ne.f32.partialorder %v638, %v638
        %vm643 = vcmp.ne.f32.partialorder %v639, %v639
        %v644 = vadd.f32 %v638, 0.0
        %v645 = vadd.f32 %v639, 0.0
        %v646 = vand.u32 2147483647, %v638
        %v647 = vand.u32 2147483647, %v639
        %v648 = vsub.f32 0.0, %v646
        %v649 = vsub.f32 0.0, %v647
        %v650 = vmul.f32 %v648, 1.442695
        %v651 = vpow.pop %v650
        %v652 = vmul.f32 %v649, 1.442695
        %v653 = vpow.pop %v652
        %v654 = vadd.f32 %v651, 1.0
        %v655 = vlog2.pop %v654
        %v656 = vmul.f32 %v655, 0.6931472
        %v657 = vmul.f32 -0.5, %v651
        %v658 = vadd.f32 %v657, 1.0
        %v659 = vmul.f32 %v658, %v651
        %v660 = vand.u32 2147483647, %v651
        %vm661 = vcmp.lt.f32.partialorder %v660, 0.0004427343
        %v662 = vsel %vm661, %v659, %v656
        %v663 = vadd.f32 %v653, 1.0
        %v664 = vlog2.pop %v663
        %v665 = vmul.f32 %v664, 0.6931472
        %v666 = vmul.f32 -0.5, %v653
        %v667 = vadd.f32 %v666, 1.0
        %v668 = vmul.f32 %v667, %v653
        %v669 = vand.u32 2147483647, %v653
        %vm670 = vcmp.lt.f32.partialorder %v669, 0.0004427343
        %v671 = vsel %vm670, %v668, %v665
        %v672 = vadd.f32 %v640, %v662
        %v673 = vadd.f32 %v641, %v671
        %v674 = vsel %vm642, %v644, %v672
        %v675 = vsel %vm643, %v645, %v673
        %678 = vrot.lane.b32.xlu0 %v458, 64
        %v679 = vpop.permute.xlu0 %678
        %680 = vrot.lane.b32.xlu0 %v459, 64
        %v681 = vpop.permute.xlu0 %680
        %v684 = vmul.f32 %v674, %v679
        %v685 = vmul.f32 %v675, %v681
        %v686 = vlaneseq
        %v687 = vshrl.u32 %v686, 7
        %v688 = vadd.s32 %v687, 8
        %vm689 = vcmp.ge.s32.totalorder %v687, 1
        %vm690 = vcmp.ge.s32.totalorder %v688, 1
        %vm691 = vcmp.ge.s32.totalorder %v687, 2
        %vm692 = vcmp.ge.s32.totalorder %v688, 2
        %vm693 = vcmp.ge.s32.totalorder %v687, 4
        %vm694 = vcmp.ge.s32.totalorder %v688, 4
        %vm695 = vcmp.ge.s32.totalorder %v687, 8
        %vm696 = vcmp.ge.s32.totalorder %v688, 8
        %v697 = vld [vmem:[#allocation2] sm:$0xff]
        %v698 = vmul.f32 %v580, %v458
        %v699 = vmul.f32 %v584, %v459
        %s700 = sld [smem:[#allocation7]]
        %v701 = vstv %s700
        %v702 = vmul.f32 %v674, %v701
        %v703 = vmul.f32 %v675, %v701
        %v704 = vmul.f32 %v702, 1.442695
        %v705 = vpow.pop %v704
        %v706 = vmul.f32 %v703, 1.442695
        %v707 = vpow.pop %v706
        %709 = vset.pattern.permute.xlu0 0
        %710 = vperm.xlu0 %709, %v582
        %v711 = vpop.permute.xlu0 %710
        %714 = vset.pattern.permute.xlu0 0
        %715 = vperm.xlu0 %714, %v586
        %v716 = vpop.permute.xlu0 %715
        %v718 = vmul.f32 %v684, %v711
        %v719 = vmul.f32 %v685, %v716
        %722 = vrot.lane.b32.xlu0 %v705, 64
        %v723 = vpop.permute.xlu0 %722
        %724 = vrot.lane.b32.xlu0 %v707, 64
        %v725 = vpop.permute.xlu0 %724
        %v728 = vrot.slane %v723, 7
        %v729 = vrot.slane %v725, 7
        %vm730 = vcmp.lt.s32.totalorder %v687, 1
        %v731 = vsel %vm730, %v728, %v729
        %v732 = vsel %vm730, %v729, %v728
        %v733 = vsel %vm689, 1, 0
        %v734 = vsel %vm690, 1, 0
        %vm735 = vcmp.eq.s32.totalorder %v733, 1
        %vm736 = vcmp.eq.s32.totalorder %v734, 1
        %v737 = vsel %vm735, %v732, 1.0
        %v738 = vsel %vm736, %v731, 1.0
        %741 = vrot.lane.b32.xlu0 %v718, 64
        %v742 = vpop.permute.xlu0 %741
        %743 = vrot.lane.b32.xlu0 %v719, 64
        %v744 = vpop.permute.xlu0 %743
        %v747 = vrot.slane %v742, 7
        %v748 = vrot.slane %v744, 7
        %v749 = vsel %vm730, %v747, %v748
        %v750 = vsel %vm730, %v748, %v747
        %v751 = vsel %vm735, %v750, 0.0
        %v752 = vsel %vm736, %v749, 0.0
        %755 = vrot.lane.b32.xlu0 %v751, 64
        %v756 = vpop.permute.xlu0 %755
        %757 = vrot.lane.b32.xlu0 %v752, 64
        %v758 = vpop.permute.xlu0 %757
        %v761 = vmul.f32 %v705, %v756
        %v762 = vmul.f32 %v707, %v758
        %v763 = vadd.f32 %v761, %v718
        %v764 = vadd.f32 %v762, %v719
        %767 = vrot.lane.b32.xlu0 %v737, 64
        %v768 = vpop.permute.xlu0 %767
        %769 = vrot.lane.b32.xlu0 %v738, 64
        %v770 = vpop.permute.xlu0 %769
        %v773 = vmul.f32 %v705, %v768
        %v774 = vmul.f32 %v707, %v770
        %777 = vrot.lane.b32.xlu0 %v773, 64
        %v778 = vpop.permute.xlu0 %777
        %779 = vrot.lane.b32.xlu0 %v774, 64
        %v780 = vpop.permute.xlu0 %779
        %v783 = vrot.slane %v778, 6
        %v784 = vrot.slane %v780, 6
        %vm785 = vcmp.lt.s32.totalorder %v687, 2
        %v786 = vsel %vm785, %v783, %v784
        %v787 = vsel %vm785, %v784, %v783
        %v788 = vsel %vm691, 1, 0
        %v789 = vsel %vm692, 1, 0
        %vm790 = vcmp.eq.s32.totalorder %v788, 1
        %vm791 = vcmp.eq.s32.totalorder %v789, 1
        %v792 = vsel %vm790, %v787, 1.0
        %v793 = vsel %vm791, %v786, 1.0
        %796 = vrot.lane.b32.xlu0 %v763, 64
        %v797 = vpop.permute.xlu0 %796
        %798 = vrot.lane.b32.xlu0 %v764, 64
        %v799 = vpop.permute.xlu0 %798
        %v802 = vrot.slane %v797, 6
        %v803 = vrot.slane %v799, 6
        %v804 = vsel %vm785, %v802, %v803
        %v805 = vsel %vm785, %v803, %v802
        %v806 = vsel %vm790, %v805, 0.0
        %v807 = vsel %vm791, %v804, 0.0
        %810 = vrot.lane.b32.xlu0 %v806, 64
        %v811 = vpop.permute.xlu0 %810
        %812 = vrot.lane.b32.xlu0 %v807, 64
        %v813 = vpop.permute.xlu0 %812
        %v816 = vmul.f32 %v773, %v811
        %v817 = vmul.f32 %v774, %v813
        %v818 = vadd.f32 %v816, %v763
        %v819 = vadd.f32 %v817, %v764
        %822 = vrot.lane.b32.xlu0 %v792, 64
        %v823 = vpop.permute.xlu0 %822
        %824 = vrot.lane.b32.xlu0 %v793, 64
        %v825 = vpop.permute.xlu0 %824
        %v828 = vmul.f32 %v773, %v823
        %v829 = vmul.f32 %v774, %v825
        %832 = vrot.lane.b32.xlu0 %v828, 64
        %v833 = vpop.permute.xlu0 %832
        %834 = vrot.lane.b32.xlu0 %v829, 64
        %v835 = vpop.permute.xlu0 %834
        %v838 = vrot.slane %v833, 4
        %v839 = vrot.slane %v835, 4
        %vm840 = vcmp.lt.s32.totalorder %v687, 4
        %v841 = vsel %vm840, %v838, %v839
        %v842 = vsel %vm840, %v839, %v838
        %v843 = vsel %vm693, 1, 0
        %v844 = vsel %vm694, 1, 0
        %vm845 = vcmp.eq.s32.totalorder %v843, 1
        %vm846 = vcmp.eq.s32.totalorder %v844, 1
        %v847 = vsel %vm845, %v842, 1.0
        %v848 = vsel %vm846, %v841, 1.0
        %851 = vrot.lane.b32.xlu0 %v818, 64
        %v852 = vpop.permute.xlu0 %851
        %853 = vrot.lane.b32.xlu0 %v819, 64
        %v854 = vpop.permute.xlu0 %853
        %v857 = vrot.slane %v852, 4
        %v858 = vrot.slane %v854, 4
        %v859 = vsel %vm840, %v857, %v858
        %v860 = vsel %vm840, %v858, %v857
        %v861 = vsel %vm845, %v860, 0.0
        %v862 = vsel %vm846, %v859, 0.0
        %865 = vrot.lane.b32.xlu0 %v861, 64
        %v866 = vpop.permute.xlu0 %865
        %867 = vrot.lane.b32.xlu0 %v862, 64
        %v868 = vpop.permute.xlu0 %867
        %v871 = vmul.f32 %v828, %v866
        %v872 = vmul.f32 %v829, %v868
        %v873 = vadd.f32 %v871, %v818
        %v874 = vadd.f32 %v872, %v819
        %877 = vrot.lane.b32.xlu0 %v847, 64
        %v878 = vpop.permute.xlu0 %877
        %879 = vrot.lane.b32.xlu0 %v848, 64
        %v880 = vpop.permute.xlu0 %879
        %v883 = vmul.f32 %v828, %v878
        %v884 = vmul.f32 %v829, %v880
        %887 = vrot.lane.b32.xlu0 %v883, 64
        %v888 = vpop.permute.xlu0 %887
        %889 = vrot.lane.b32.xlu0 %v884, 64
        %v890 = vpop.permute.xlu0 %889
        %v893 = vsel %vm695, 1, 0
        %v894 = vsel %vm696, 1, 0
        %vm895 = vcmp.eq.s32.totalorder %v893, 1
        %vm896 = vcmp.eq.s32.totalorder %v894, 1
        %v897 = vsel %vm895, %v890, 1.0
        %v898 = vsel %vm896, %v888, 1.0
        %901 = vrot.lane.b32.xlu0 %v873, 64
        %v902 = vpop.permute.xlu0 %901
        %903 = vrot.lane.b32.xlu0 %v874, 64
        %v904 = vpop.permute.xlu0 %903
        %v907 = vsel %vm895, %v904, 0.0
        %v908 = vsel %vm896, %v902, 0.0
        %911 = vrot.lane.b32.xlu0 %v907, 64
        %v912 = vpop.permute.xlu0 %911
        %913 = vrot.lane.b32.xlu0 %v908, 64
        %v914 = vpop.permute.xlu0 %913
        %v917 = vmul.f32 %v883, %v912
        %v918 = vmul.f32 %v884, %v914
        %v919 = vadd.f32 %v917, %v873
        %v920 = vadd.f32 %v918, %v874
        %923 = vrot.lane.b32.xlu0 %v897, 64
        %v924 = vpop.permute.xlu0 %923
        %925 = vrot.lane.b32.xlu0 %v898, 64
        %v926 = vpop.permute.xlu0 %925
        %v929 = vmul.f32 %v883, %v924
        %v930 = vmul.f32 %v884, %v926
        %v931 = vlaneseq
        %v932 = vshrl.u32 %v931, 7
        %v933 = vsub.s32 0, %v932
        %v934 = vrot.slane %v697, %v933
        %936 = vrot.lane.b32.xlu0 %v934, 64
        %v937 = vpop.permute.xlu0 %936
        %v939 = vmul.f32 %v929, %v937
        %v940 = vmul.f32 %v930, %v937
        %v941 = vadd.f32 %v939, %v919
        %v942 = vadd.f32 %v940, %v920
        %944 = vset.pattern.permute.xlu0 0
        %945 = vperm.xlu0 %944, %v623
        %v946 = vpop.permute.xlu0 %945
        %949 = vset.pattern.permute.xlu0 0
        %950 = vperm.xlu0 %949, %v626
        %v951 = vpop.permute.xlu0 %950
        %v953 = vmul.f32 %v946, %v941
        %v954 = vmul.f32 %v951, %v942
        %957 = vrot.lane.b32.xlu0 %v953, 64
        %v958 = vpop.permute.xlu0 %957
        %959 = vrot.lane.b32.xlu0 %v954, 64
        %v960 = vpop.permute.xlu0 %959
        %v963 = vadd.f32 %v698, %v958
        %v964 = vadd.f32 %v699, %v960
        %s965 = sld [smem:[#allocation7 + $0x1]]
        %v966 = vstv %s965
        %v967 = vmul.f32 %v674, %v966
        %v968 = vmul.f32 %v675, %v966
        %v969 = vmul.f32 %v967, 1.442695
        %v970 = vpow.pop %v969
        %v971 = vmul.f32 %v968, 1.442695
        %v972 = vpow.pop %v971
        %973 = vset.pattern.permute.xlu0 1
        %974 = vperm.xlu0 %973, %v582
        %v975 = vpop.permute.xlu0 %974
        %977 = vset.pattern.permute.xlu0 1
        %978 = vperm.xlu0 %977, %v586
        %v979 = vpop.permute.xlu0 %978
        %v981 = vmul.f32 %v684, %v975
        %v982 = vmul.f32 %v685, %v979
        %985 = vrot.lane.b32.xlu0 %v970, 64
        %v986 = vpop.permute.xlu0 %985
        %987 = vrot.lane.b32.xlu0 %v972, 64
        %v988 = vpop.permute.xlu0 %987
        %v991 = vrot.slane %v986, 7
        %v992 = vrot.slane %v988, 7
        %v993 = vsel %vm730, %v991, %v992
        %v994 = vsel %vm730, %v992, %v991
        %v995 = vsel %vm735, %v994, 1.0
        %v996 = vsel %vm736, %v993, 1.0
        %999 = vrot.lane.b32.xlu0 %v981, 64
        %v1000 = vpop.permute.xlu0 %999
        %1001 = vrot.lane.b32.xlu0 %v982, 64
        %v1002 = vpop.permute.xlu0 %1001
        %v1005 = vrot.slane %v1000, 7
        %v1006 = vrot.slane %v1002, 7
        %v1007 = vsel %vm730, %v1005, %v1006
        %v1008 = vsel %vm730, %v1006, %v1005
        %v1009 = vsel %vm735, %v1008, 0.0
        %v1010 = vsel %vm736, %v1007, 0.0
        %1013 = vrot.lane.b32.xlu0 %v1009, 64
        %v1014 = vpop.permute.xlu0 %1013
        %1015 = vrot.lane.b32.xlu0 %v1010, 64
        %v1016 = vpop.permute.xlu0 %1015
        %v1019 = vmul.f32 %v970, %v1014
        %v1020 = vmul.f32 %v972, %v1016
        %v1021 = vadd.f32 %v1019, %v981
        %v1022 = vadd.f32 %v1020, %v982
        %1025 = vrot.lane.b32.xlu0 %v995, 64
        %v1026 = vpop.permute.xlu0 %1025
        %1027 = vrot.lane.b32.xlu0 %v996, 64
        %v1028 = vpop.permute.xlu0 %1027
        %v1031 = vmul.f32 %v970, %v1026
        %v1032 = vmul.f32 %v972, %v1028
        %1035 = vrot.lane.b32.xlu0 %v1031, 64
        %v1036 = vpop.permute.xlu0 %1035
        %1037 = vrot.lane.b32.xlu0 %v1032, 64
        %v1038 = vpop.permute.xlu0 %1037
        %v1041 = vrot.slane %v1036, 6
        %v1042 = vrot.slane %v1038, 6
        %v1043 = vsel %vm785, %v1041, %v1042
        %v1044 = vsel %vm785, %v1042, %v1041
        %v1045 = vsel %vm790, %v1044, 1.0
        %v1046 = vsel %vm791, %v1043, 1.0
        %1049 = vrot.lane.b32.xlu0 %v1021, 64
        %v1050 = vpop.permute.xlu0 %1049
        %1051 = vrot.lane.b32.xlu0 %v1022, 64
        %v1052 = vpop.permute.xlu0 %1051
        %v1055 = vrot.slane %v1050, 6
        %v1056 = vrot.slane %v1052, 6
        %v1057 = vsel %vm785, %v1055, %v1056
        %v1058 = vsel %vm785, %v1056, %v1055
        %v1059 = vsel %vm790, %v1058, 0.0
        %v1060 = vsel %vm791, %v1057, 0.0
        %1063 = vrot.lane.b32.xlu0 %v1059, 64
        %v1064 = vpop.permute.xlu0 %1063
        %1065 = vrot.lane.b32.xlu0 %v1060, 64
        %v1066 = vpop.permute.xlu0 %1065
        %v1069 = vmul.f32 %v1031, %v1064
        %v1070 = vmul.f32 %v1032, %v1066
        %v1071 = vadd.f32 %v1069, %v1021
        %v1072 = vadd.f32 %v1070, %v1022
        %1075 = vrot.lane.b32.xlu0 %v1045, 64
        %v1076 = vpop.permute.xlu0 %1075
        %1077 = vrot.lane.b32.xlu0 %v1046, 64
        %v1078 = vpop.permute.xlu0 %1077
        %v1081 = vmul.f32 %v1031, %v1076
        %v1082 = vmul.f32 %v1032, %v1078
        %1085 = vrot.lane.b32.xlu0 %v1081, 64
        %v1086 = vpop.permute.xlu0 %1085
        %1087 = vrot.lane.b32.xlu0 %v1082, 64
        %v1088 = vpop.permute.xlu0 %1087
        %v1091 = vrot.slane %v1086, 4
        %v1092 = vrot.slane %v1088, 4
        %v1093 = vsel %vm840, %v1091, %v1092
        %v1094 = vsel %vm840, %v1092, %v1091
        %v1095 = vsel %vm845, %v1094, 1.0
        %v1096 = vsel %vm846, %v1093, 1.0
        %1099 = vrot.lane.b32.xlu0 %v1071, 64
        %v1100 = vpop.permute.xlu0 %1099
        %1101 = vrot.lane.b32.xlu0 %v1072, 64
        %v1102 = vpop.permute.xlu0 %1101
        %v1105 = vrot.slane %v1100, 4
        %v1106 = vrot.slane %v1102, 4
        %v1107 = vsel %vm840, %v1105, %v1106
        %v1108 = vsel %vm840, %v1106, %v1105
        %v1109 = vsel %vm845, %v1108, 0.0
        %v1110 = vsel %vm846, %v1107, 0.0
        %1113 = vrot.lane.b32.xlu0 %v1109, 64
        %v1114 = vpop.permute.xlu0 %1113
        %1115 = vrot.lane.b32.xlu0 %v1110, 64
        %v1116 = vpop.permute.xlu0 %1115
        %v1119 = vmul.f32 %v1081, %v1114
        %v1120 = vmul.f32 %v1082, %v1116
        %v1121 = vadd.f32 %v1119, %v1071
        %v1122 = vadd.f32 %v1120, %v1072
        %1125 = vrot.lane.b32.xlu0 %v1095, 64
        %v1126 = vpop.permute.xlu0 %1125
        %1127 = vrot.lane.b32.xlu0 %v1096, 64
        %v1128 = vpop.permute.xlu0 %1127
        %v1131 = vmul.f32 %v1081, %v1126
        %v1132 = vmul.f32 %v1082, %v1128
        %1135 = vrot.lane.b32.xlu0 %v1131, 64
        %v1136 = vpop.permute.xlu0 %1135
        %1137 = vrot.lane.b32.xlu0 %v1132, 64
        %v1138 = vpop.permute.xlu0 %1137
        %v1141 = vsel %vm895, %v1138, 1.0
        %v1142 = vsel %vm896, %v1136, 1.0
        %1145 = vrot.lane.b32.xlu0 %v1121, 64
        %v1146 = vpop.permute.xlu0 %1145
        %1147 = vrot.lane.b32.xlu0 %v1122, 64
        %v1148 = vpop.permute.xlu0 %1147
        %v1151 = vsel %vm895, %v1148, 0.0
        %v1152 = vsel %vm896, %v1146, 0.0
        %1155 = vrot.lane.b32.xlu0 %v1151, 64
        %v1156 = vpop.permute.xlu0 %1155
        %1157 = vrot.lane.b32.xlu0 %v1152, 64
        %v1158 = vpop.permute.xlu0 %1157
        %v1161 = vmul.f32 %v1131, %v1156
        %v1162 = vmul.f32 %v1132, %v1158
        %v1163 = vadd.f32 %v1161, %v1121
        %v1164 = vadd.f32 %v1162, %v1122
        %1167 = vrot.lane.b32.xlu0 %v1141, 64
        %v1168 = vpop.permute.xlu0 %1167
        %1169 = vrot.lane.b32.xlu0 %v1142, 64
        %v1170 = vpop.permute.xlu0 %1169
        %v1173 = vmul.f32 %v1131, %v1168
        %v1174 = vmul.f32 %v1132, %v1170
        %v1175 = vlaneseq
        %v1176 = vshrl.u32 %v1175, 7
        %v1177 = vsub.s32 1, %v1176
        %v1178 = vrot.slane %v697, %v1177
        %1180 = vrot.lane.b32.xlu0 %v1178, 64
        %v1181 = vpop.permute.xlu0 %1180
        %v1183 = vmul.f32 %v1173, %v1181
        %v1184 = vmul.f32 %v1174, %v1181
        %v1185 = vadd.f32 %v1183, %v1163
        %v1186 = vadd.f32 %v1184, %v1164
        %1187 = vset.pattern.permute.xlu0 1
        %1188 = vperm.xlu0 %1187, %v623
        %v1189 = vpop.permute.xlu0 %1188
        %1191 = vset.pattern.permute.xlu0 1
        %1192 = vperm.xlu0 %1191, %v626
        %v1193 = vpop.permute.xlu0 %1192
        %v1195 = vmul.f32 %v1189, %v1185
        %v1196 = vmul.f32 %v1193, %v1186
        %1199 = vrot.lane.b32.xlu0 %v1195, 64
        %v1200 = vpop.permute.xlu0 %1199
        %1201 = vrot.lane.b32.xlu0 %v1196, 64
        %v1202 = vpop.permute.xlu0 %1201
        %v1205 = vadd.f32 %v963, %v1200
        %v1206 = vadd.f32 %v964, %v1202
        %s1207 = sld [smem:[#allocation7 + $0x2]]
        %v1208 = vstv %s1207
        %v1209 = vmul.f32 %v674, %v1208
        %v1210 = vmul.f32 %v675, %v1208
        %v1211 = vmul.f32 %v1209, 1.442695
        %v1212 = vpow.pop %v1211
        %v1213 = vmul.f32 %v1210, 1.442695
        %v1214 = vpow.pop %v1213
        %1215 = vset.pattern.permute.xlu0 2
        %1216 = vperm.xlu0 %1215, %v582
        %v1217 = vpop.permute.xlu0 %1216
        %1219 = vset.pattern.permute.xlu0 2
        %1220 = vperm.xlu0 %1219, %v586
        %v1221 = vpop.permute.xlu0 %1220
        %v1223 = vmul.f32 %v684, %v1217
        %v1224 = vmul.f32 %v685, %v1221
        %1227 = vrot.lane.b32.xlu0 %v1212, 64
        %v1228 = vpop.permute.xlu0 %1227
        %1229 = vrot.lane.b32.xlu0 %v1214, 64
        %v1230 = vpop.permute.xlu0 %1229
        %v1233 = vrot.slane %v1228, 7
        %v1234 = vrot.slane %v1230, 7
        %v1235 = vsel %vm730, %v1233, %v1234
        %v1236 = vsel %vm730, %v1234, %v1233
        %v1237 = vsel %vm735, %v1236, 1.0
        %v1238 = vsel %vm736, %v1235, 1.0
        %1241 = vrot.lane.b32.xlu0 %v1223, 64
        %v1242 = vpop.permute.xlu0 %1241
        %1243 = vrot.lane.b32.xlu0 %v1224, 64
        %v1244 = vpop.permute.xlu0 %1243
        %v1247 = vrot.slane %v1242, 7
        %v1248 = vrot.slane %v1244, 7
        %v1249 = vsel %vm730, %v1247, %v1248
        %v1250 = vsel %vm730, %v1248, %v1247
        %v1251 = vsel %vm735, %v1250, 0.0
        %v1252 = vsel %vm736, %v1249, 0.0
        %1255 = vrot.lane.b32.xlu0 %v1251, 64
        %v1256 = vpop.permute.xlu0 %1255
        %1257 = vrot.lane.b32.xlu0 %v1252, 64
        %v1258 = vpop.permute.xlu0 %1257
        %v1261 = vmul.f32 %v1212, %v1256
        %v1262 = vmul.f32 %v1214, %v1258
        %v1263 = vadd.f32 %v1261, %v1223
        %v1264 = vadd.f32 %v1262, %v1224
        %1267 = vrot.lane.b32.xlu0 %v1237, 64
        %v1268 = vpop.permute.xlu0 %1267
        %1269 = vrot.lane.b32.xlu0 %v1238, 64
        %v1270 = vpop.permute.xlu0 %1269
        %v1273 = vmul.f32 %v1212, %v1268
        %v1274 = vmul.f32 %v1214, %v1270
        %1277 = vrot.lane.b32.xlu0 %v1273, 64
        %v1278 = vpop.permute.xlu0 %1277
        %1279 = vrot.lane.b32.xlu0 %v1274, 64
        %v1280 = vpop.permute.xlu0 %1279
        %v1283 = vrot.slane %v1278, 6
        %v1284 = vrot.slane %v1280, 6
        %v1285 = vsel %vm785, %v1283, %v1284
        %v1286 = vsel %vm785, %v1284, %v1283
        %v1287 = vsel %vm790, %v1286, 1.0
        %v1288 = vsel %vm791, %v1285, 1.0
        %1291 = vrot.lane.b32.xlu0 %v1263, 64
        %v1292 = vpop.permute.xlu0 %1291
        %1293 = vrot.lane.b32.xlu0 %v1264, 64
        %v1294 = vpop.permute.xlu0 %1293
        %v1297 = vrot.slane %v1292, 6
        %v1298 = vrot.slane %v1294, 6
        %v1299 = vsel %vm785, %v1297, %v1298
        %v1300 = vsel %vm785, %v1298, %v1297
        %v1301 = vsel %vm790, %v1300, 0.0
        %v1302 = vsel %vm791, %v1299, 0.0
        %1305 = vrot.lane.b32.xlu0 %v1301, 64
        %v1306 = vpop.permute.xlu0 %1305
        %1307 = vrot.lane.b32.xlu0 %v1302, 64
        %v1308 = vpop.permute.xlu0 %1307
        %v1311 = vmul.f32 %v1273, %v1306
        %v1312 = vmul.f32 %v1274, %v1308
        %v1313 = vadd.f32 %v1311, %v1263
        %v1314 = vadd.f32 %v1312, %v1264
        %1317 = vrot.lane.b32.xlu0 %v1287, 64
        %v1318 = vpop.permute.xlu0 %1317
        %1319 = vrot.lane.b32.xlu0 %v1288, 64
        %v1320 = vpop.permute.xlu0 %1319
        %v1323 = vmul.f32 %v1273, %v1318
        %v1324 = vmul.f32 %v1274, %v1320
        %1327 = vrot.lane.b32.xlu0 %v1323, 64
        %v1328 = vpop.permute.xlu0 %1327
        %1329 = vrot.lane.b32.xlu0 %v1324, 64
        %v1330 = vpop.permute.xlu0 %1329
        %v1333 = vrot.slane %v1328, 4
        %v1334 = vrot.slane %v1330, 4
        %v1335 = vsel %vm840, %v1333, %v1334
        %v1336 = vsel %vm840, %v1334, %v1333
        %v1337 = vsel %vm845, %v1336, 1.0
        %v1338 = vsel %vm846, %v1335, 1.0
        %1341 = vrot.lane.b32.xlu0 %v1313, 64
        %v1342 = vpop.permute.xlu0 %1341
        %1343 = vrot.lane.b32.xlu0 %v1314, 64
        %v1344 = vpop.permute.xlu0 %1343
        %v1347 = vrot.slane %v1342, 4
        %v1348 = vrot.slane %v1344, 4
        %v1349 = vsel %vm840, %v1347, %v1348
        %v1350 = vsel %vm840, %v1348, %v1347
        %v1351 = vsel %vm845, %v1350, 0.0
        %v1352 = vsel %vm846, %v1349, 0.0
        %1355 = vrot.lane.b32.xlu0 %v1351, 64
        %v1356 = vpop.permute.xlu0 %1355
        %1357 = vrot.lane.b32.xlu0 %v1352, 64
        %v1358 = vpop.permute.xlu0 %1357
        %v1361 = vmul.f32 %v1323, %v1356
        %v1362 = vmul.f32 %v1324, %v1358
        %v1363 = vadd.f32 %v1361, %v1313
        %v1364 = vadd.f32 %v1362, %v1314
        %1367 = vrot.lane.b32.xlu0 %v1337, 64
        %v1368 = vpop.permute.xlu0 %1367
        %1369 = vrot.lane.b32.xlu0 %v1338, 64
        %v1370 = vpop.permute.xlu0 %1369
        %v1373 = vmul.f32 %v1323, %v1368
        %v1374 = vmul.f32 %v1324, %v1370
        %1377 = vrot.lane.b32.xlu0 %v1373, 64
        %v1378 = vpop.permute.xlu0 %1377
        %1379 = vrot.lane.b32.xlu0 %v1374, 64
        %v1380 = vpop.permute.xlu0 %1379
        %v1383 = vsel %vm895, %v1380, 1.0
        %v1384 = vsel %vm896, %v1378, 1.0
        %1387 = vrot.lane.b32.xlu0 %v1363, 64
        %v1388 = vpop.permute.xlu0 %1387
        %1389 = vrot.lane.b32.xlu0 %v1364, 64
        %v1390 = vpop.permute.xlu0 %1389
        %v1393 = vsel %vm895, %v1390, 0.0
        %v1394 = vsel %vm896, %v1388, 0.0
        %1397 = vrot.lane.b32.xlu0 %v1393, 64
        %v1398 = vpop.permute.xlu0 %1397
        %1399 = vrot.lane.b32.xlu0 %v1394, 64
        %v1400 = vpop.permute.xlu0 %1399
        %v1403 = vmul.f32 %v1373, %v1398
        %v1404 = vmul.f32 %v1374, %v1400
        %v1405 = vadd.f32 %v1403, %v1363
        %v1406 = vadd.f32 %v1404, %v1364
        %1409 = vrot.lane.b32.xlu0 %v1383, 64
        %v1410 = vpop.permute.xlu0 %1409
        %1411 = vrot.lane.b32.xlu0 %v1384, 64
        %v1412 = vpop.permute.xlu0 %1411
        %v1415 = vmul.f32 %v1373, %v1410
        %v1416 = vmul.f32 %v1374, %v1412
        %v1417 = vlaneseq
        %v1418 = vshrl.u32 %v1417, 7
        %v1419 = vsub.s32 2, %v1418
        %v1420 = vrot.slane %v697, %v1419
        %1422 = vrot.lane.b32.xlu0 %v1420, 64
        %v1423 = vpop.permute.xlu0 %1422
        %v1425 = vmul.f32 %v1415, %v1423
        %v1426 = vmul.f32 %v1416, %v1423
        %v1427 = vadd.f32 %v1425, %v1405
        %v1428 = vadd.f32 %v1426, %v1406
        %1429 = vset.pattern.permute.xlu0 2
        %1430 = vperm.xlu0 %1429, %v623
        %v1431 = vpop.permute.xlu0 %1430
        %1433 = vset.pattern.permute.xlu0 2
        %1434 = vperm.xlu0 %1433, %v626
        %v1435 = vpop.permute.xlu0 %1434
        %v1437 = vmul.f32 %v1431, %v1427
        %v1438 = vmul.f32 %v1435, %v1428
        %1441 = vrot.lane.b32.xlu0 %v1437, 64
        %v1442 = vpop.permute.xlu0 %1441
        %1443 = vrot.lane.b32.xlu0 %v1438, 64
        %v1444 = vpop.permute.xlu0 %1443
        %v1447 = vadd.f32 %v1205, %v1442
        %v1448 = vadd.f32 %v1206, %v1444
        %s1449 = sld [smem:[#allocation7 + $0x3]]
        %v1450 = vstv %s1449
        %v1451 = vmul.f32 %v674, %v1450
        %v1452 = vmul.f32 %v675, %v1450
        %v1453 = vmul.f32 %v1451, 1.442695
        %v1454 = vpow.pop %v1453
        %v1455 = vmul.f32 %v1452, 1.442695
        %v1456 = vpow.pop %v1455
        %1457 = vset.pattern.permute.xlu0 3
        %1458 = vperm.xlu0 %1457, %v582
        %v1459 = vpop.permute.xlu0 %1458
        %1461 = vset.pattern.permute.xlu0 3
        %1462 = vperm.xlu0 %1461, %v586
        %v1463 = vpop.permute.xlu0 %1462
        %v1465 = vmul.f32 %v684, %v1459
        %v1466 = vmul.f32 %v685, %v1463
        %1469 = vrot.lane.b32.xlu0 %v1454, 64
        %v1470 = vpop.permute.xlu0 %1469
        %1471 = vrot.lane.b32.xlu0 %v1456, 64
        %v1472 = vpop.permute.xlu0 %1471
        %v1475 = vrot.slane %v1470, 7
        %v1476 = vrot.slane %v1472, 7
        %v1477 = vsel %vm730, %v1475, %v1476
        %v1478 = vsel %vm730, %v1476, %v1475
        %v1479 = vsel %vm735, %v1478, 1.0
        %v1480 = vsel %vm736, %v1477, 1.0
        %1483 = vrot.lane.b32.xlu0 %v1465, 64
        %v1484 = vpop.permute.xlu0 %1483
        %1485 = vrot.lane.b32.xlu0 %v1466, 64
        %v1486 = vpop.permute.xlu0 %1485
        %v1489 = vrot.slane %v1484, 7
        %v1490 = vrot.slane %v1486, 7
        %v1491 = vsel %vm730, %v1489, %v1490
        %v1492 = vsel %vm730, %v1490, %v1489
        %v1493 = vsel %vm735, %v1492, 0.0
        %v1494 = vsel %vm736, %v1491, 0.0
        %1497 = vrot.lane.b32.xlu0 %v1493, 64
        %v1498 = vpop.permute.xlu0 %1497
        %1499 = vrot.lane.b32.xlu0 %v1494, 64
        %v1500 = vpop.permute.xlu0 %1499
        %v1503 = vmul.f32 %v1454, %v1498
        %v1504 = vmul.f32 %v1456, %v1500
        %v1505 = vadd.f32 %v1503, %v1465
        %v1506 = vadd.f32 %v1504, %v1466
        %1509 = vrot.lane.b32.xlu0 %v1479, 64
        %v1510 = vpop.permute.xlu0 %1509
        %1511 = vrot.lane.b32.xlu0 %v1480, 64
        %v1512 = vpop.permute.xlu0 %1511
        %v1515 = vmul.f32 %v1454, %v1510
        %v1516 = vmul.f32 %v1456, %v1512
        %1519 = vrot.lane.b32.xlu0 %v1515, 64
        %v1520 = vpop.permute.xlu0 %1519
        %1521 = vrot.lane.b32.xlu0 %v1516, 64
        %v1522 = vpop.permute.xlu0 %1521
        %v1525 = vrot.slane %v1520, 6
        %v1526 = vrot.slane %v1522, 6
        %v1527 = vsel %vm785, %v1525, %v1526
        %v1528 = vsel %vm785, %v1526, %v1525
        %v1529 = vsel %vm790, %v1528, 1.0
        %v1530 = vsel %vm791, %v1527, 1.0
        %1533 = vrot.lane.b32.xlu0 %v1505, 64
        %v1534 = vpop.permute.xlu0 %1533
        %1535 = vrot.lane.b32.xlu0 %v1506, 64
        %v1536 = vpop.permute.xlu0 %1535
        %v1539 = vrot.slane %v1534, 6
        %v1540 = vrot.slane %v1536, 6
        %v1541 = vsel %vm785, %v1539, %v1540
        %v1542 = vsel %vm785, %v1540, %v1539
        %v1543 = vsel %vm790, %v1542, 0.0
        %v1544 = vsel %vm791, %v1541, 0.0
        %1547 = vrot.lane.b32.xlu0 %v1543, 64
        %v1548 = vpop.permute.xlu0 %1547
        %1549 = vrot.lane.b32.xlu0 %v1544, 64
        %v1550 = vpop.permute.xlu0 %1549
        %v1553 = vmul.f32 %v1515, %v1548
        %v1554 = vmul.f32 %v1516, %v1550
        %v1555 = vadd.f32 %v1553, %v1505
        %v1556 = vadd.f32 %v1554, %v1506
        %1559 = vrot.lane.b32.xlu0 %v1529, 64
        %v1560 = vpop.permute.xlu0 %1559
        %1561 = vrot.lane.b32.xlu0 %v1530, 64
        %v1562 = vpop.permute.xlu0 %1561
        %v1565 = vmul.f32 %v1515, %v1560
        %v1566 = vmul.f32 %v1516, %v1562
        %1569 = vrot.lane.b32.xlu0 %v1565, 64
        %v1570 = vpop.permute.xlu0 %1569
        %1571 = vrot.lane.b32.xlu0 %v1566, 64
        %v1572 = vpop.permute.xlu0 %1571
        %v1575 = vrot.slane %v1570, 4
        %v1576 = vrot.slane %v1572, 4
        %v1577 = vsel %vm840, %v1575, %v1576
        %v1578 = vsel %vm840, %v1576, %v1575
        %v1579 = vsel %vm845, %v1578, 1.0
        %v1580 = vsel %vm846, %v1577, 1.0
        %1583 = vrot.lane.b32.xlu0 %v1555, 64
        %v1584 = vpop.permute.xlu0 %1583
        %1585 = vrot.lane.b32.xlu0 %v1556, 64
        %v1586 = vpop.permute.xlu0 %1585
        %v1589 = vrot.slane %v1584, 4
        %v1590 = vrot.slane %v1586, 4
        %v1591 = vsel %vm840, %v1589, %v1590
        %v1592 = vsel %vm840, %v1590, %v1589
        %v1593 = vsel %vm845, %v1592, 0.0
        %v1594 = vsel %vm846, %v1591, 0.0
        %1597 = vrot.lane.b32.xlu0 %v1593, 64
        %v1598 = vpop.permute.xlu0 %1597
        %1599 = vrot.lane.b32.xlu0 %v1594, 64
        %v1600 = vpop.permute.xlu0 %1599
        %v1603 = vmul.f32 %v1565, %v1598
        %v1604 = vmul.f32 %v1566, %v1600
        %v1605 = vadd.f32 %v1603, %v1555
        %v1606 = vadd.f32 %v1604, %v1556
        %1609 = vrot.lane.b32.xlu0 %v1579, 64
        %v1610 = vpop.permute.xlu0 %1609
        %1611 = vrot.lane.b32.xlu0 %v1580, 64
        %v1612 = vpop.permute.xlu0 %1611
        %v1615 = vmul.f32 %v1565, %v1610
        %v1616 = vmul.f32 %v1566, %v1612
        %1619 = vrot.lane.b32.xlu0 %v1615, 64
        %v1620 = vpop.permute.xlu0 %1619
        %1621 = vrot.lane.b32.xlu0 %v1616, 64
        %v1622 = vpop.permute.xlu0 %1621
        %v1625 = vsel %vm895, %v1622, 1.0
        %v1626 = vsel %vm896, %v1620, 1.0
        %1629 = vrot.lane.b32.xlu0 %v1605, 64
        %v1630 = vpop.permute.xlu0 %1629
        %1631 = vrot.lane.b32.xlu0 %v1606, 64
        %v1632 = vpop.permute.xlu0 %1631
        %v1635 = vsel %vm895, %v1632, 0.0
        %v1636 = vsel %vm896, %v1630, 0.0
        %1639 = vrot.lane.b32.xlu0 %v1635, 64
        %v1640 = vpop.permute.xlu0 %1639
        %1641 = vrot.lane.b32.xlu0 %v1636, 64
        %v1642 = vpop.permute.xlu0 %1641
        %v1645 = vmul.f32 %v1615, %v1640
        %v1646 = vmul.f32 %v1616, %v1642
        %v1647 = vadd.f32 %v1645, %v1605
        %v1648 = vadd.f32 %v1646, %v1606
        %1651 = vrot.lane.b32.xlu0 %v1625, 64
        %v1652 = vpop.permute.xlu0 %1651
        %1653 = vrot.lane.b32.xlu0 %v1626, 64
        %v1654 = vpop.permute.xlu0 %1653
        %v1657 = vmul.f32 %v1615, %v1652
        %v1658 = vmul.f32 %v1616, %v1654
        %v1659 = vlaneseq
        %v1660 = vshrl.u32 %v1659, 7
        %v1661 = vsub.s32 3, %v1660
        %v1662 = vrot.slane %v697, %v1661
        %1664 = vrot.lane.b32.xlu0 %v1662, 64
        %v1665 = vpop.permute.xlu0 %1664
        %v1667 = vmul.f32 %v1657, %v1665
        %v1668 = vmul.f32 %v1658, %v1665
        %v1669 = vadd.f32 %v1667, %v1647
        %v1670 = vadd.f32 %v1668, %v1648
        %1671 = vset.pattern.permute.xlu0 3
        %1672 = vperm.xlu0 %1671, %v623
        %v1673 = vpop.permute.xlu0 %1672
        %1675 = vset.pattern.permute.xlu0 3
        %1676 = vperm.xlu0 %1675, %v626
        %v1677 = vpop.permute.xlu0 %1676
        %v1679 = vmul.f32 %v1673, %v1669
        %v1680 = vmul.f32 %v1677, %v1670
        %1683 = vrot.lane.b32.xlu0 %v1679, 64
        %v1684 = vpop.permute.xlu0 %1683
        %1685 = vrot.lane.b32.xlu0 %v1680, 64
        %v1686 = vpop.permute.xlu0 %1685
        %v1689 = vadd.f32 %v1447, %v1684
        %v1690 = vadd.f32 %v1448, %v1686
        %s1691 = sld [smem:[#allocation7 + $0x4]]
        %v1692 = vstv %s1691
        %v1693 = vmul.f32 %v674, %v1692
        %v1694 = vmul.f32 %v675, %v1692
        %v1695 = vmul.f32 %v1693, 1.442695
        %v1696 = vpow.pop %v1695
        %v1697 = vmul.f32 %v1694, 1.442695
        %v1698 = vpow.pop %v1697
        %1699 = vset.pattern.permute.xlu0 4
        %1700 = vperm.xlu0 %1699, %v582
        %v1701 = vpop.permute.xlu0 %1700
        %1703 = vset.pattern.permute.xlu0 4
        %1704 = vperm.xlu0 %1703, %v586
        %v1705 = vpop.permute.xlu0 %1704
        %v1707 = vmul.f32 %v684, %v1701
        %v1708 = vmul.f32 %v685, %v1705
        %1711 = vrot.lane.b32.xlu0 %v1696, 64
        %v1712 = vpop.permute.xlu0 %1711
        %1713 = vrot.lane.b32.xlu0 %v1698, 64
        %v1714 = vpop.permute.xlu0 %1713
        %v1717 = vrot.slane %v1712, 7
        %v1718 = vrot.slane %v1714, 7
        %v1719 = vsel %vm730, %v1717, %v1718
        %v1720 = vsel %vm730, %v1718, %v1717
        %v1721 = vsel %vm735, %v1720, 1.0
        %v1722 = vsel %vm736, %v1719, 1.0
        %1725 = vrot.lane.b32.xlu0 %v1707, 64
        %v1726 = vpop.permute.xlu0 %1725
        %1727 = vrot.lane.b32.xlu0 %v1708, 64
        %v1728 = vpop.permute.xlu0 %1727
        %v1731 = vrot.slane %v1726, 7
        %v1732 = vrot.slane %v1728, 7
        %v1733 = vsel %vm730, %v1731, %v1732
        %v1734 = vsel %vm730, %v1732, %v1731
        %v1735 = vsel %vm735, %v1734, 0.0
        %v1736 = vsel %vm736, %v1733, 0.0
        %1739 = vrot.lane.b32.xlu0 %v1735, 64
        %v1740 = vpop.permute.xlu0 %1739
        %1741 = vrot.lane.b32.xlu0 %v1736, 64
        %v1742 = vpop.permute.xlu0 %1741
        %v1745 = vmul.f32 %v1696, %v1740
        %v1746 = vmul.f32 %v1698, %v1742
        %v1747 = vadd.f32 %v1745, %v1707
        %v1748 = vadd.f32 %v1746, %v1708
        %1751 = vrot.lane.b32.xlu0 %v1721, 64
        %v1752 = vpop.permute.xlu0 %1751
        %1753 = vrot.lane.b32.xlu0 %v1722, 64
        %v1754 = vpop.permute.xlu0 %1753
        %v1757 = vmul.f32 %v1696, %v1752
        %v1758 = vmul.f32 %v1698, %v1754
        %1761 = vrot.lane.b32.xlu0 %v1757, 64
        %v1762 = vpop.permute.xlu0 %1761
        %1763 = vrot.lane.b32.xlu0 %v1758, 64
        %v1764 = vpop.permute.xlu0 %1763
        %v1767 = vrot.slane %v1762, 6
        %v1768 = vrot.slane %v1764, 6
        %v1769 = vsel %vm785, %v1767, %v1768
        %v1770 = vsel %vm785, %v1768, %v1767
        %v1771 = vsel %vm790, %v1770, 1.0
        %v1772 = vsel %vm791, %v1769, 1.0
        %1775 = vrot.lane.b32.xlu0 %v1747, 64
        %v1776 = vpop.permute.xlu0 %1775
        %1777 = vrot.lane.b32.xlu0 %v1748, 64
        %v1778 = vpop.permute.xlu0 %1777
        %v1781 = vrot.slane %v1776, 6
        %v1782 = vrot.slane %v1778, 6
        %v1783 = vsel %vm785, %v1781, %v1782
        %v1784 = vsel %vm785, %v1782, %v1781
        %v1785 = vsel %vm790, %v1784, 0.0
        %v1786 = vsel %vm791, %v1783, 0.0
        %1789 = vrot.lane.b32.xlu0 %v1785, 64
        %v1790 = vpop.permute.xlu0 %1789
        %1791 = vrot.lane.b32.xlu0 %v1786, 64
        %v1792 = vpop.permute.xlu0 %1791
        %v1795 = vmul.f32 %v1757, %v1790
        %v1796 = vmul.f32 %v1758, %v1792
        %v1797 = vadd.f32 %v1795, %v1747
        %v1798 = vadd.f32 %v1796, %v1748
        %1801 = vrot.lane.b32.xlu0 %v1771, 64
        %v1802 = vpop.permute.xlu0 %1801
        %1803 = vrot.lane.b32.xlu0 %v1772, 64
        %v1804 = vpop.permute.xlu0 %1803
        %v1807 = vmul.f32 %v1757, %v1802
        %v1808 = vmul.f32 %v1758, %v1804
        %1811 = vrot.lane.b32.xlu0 %v1807, 64
        %v1812 = vpop.permute.xlu0 %1811
        %1813 = vrot.lane.b32.xlu0 %v1808, 64
        %v1814 = vpop.permute.xlu0 %1813
        %v1817 = vrot.slane %v1812, 4
        %v1818 = vrot.slane %v1814, 4
        %v1819 = vsel %vm840, %v1817, %v1818
        %v1820 = vsel %vm840, %v1818, %v1817
        %v1821 = vsel %vm845, %v1820, 1.0
        %v1822 = vsel %vm846, %v1819, 1.0
        %1825 = vrot.lane.b32.xlu0 %v1797, 64
        %v1826 = vpop.permute.xlu0 %1825
        %1827 = vrot.lane.b32.xlu0 %v1798, 64
        %v1828 = vpop.permute.xlu0 %1827
        %v1831 = vrot.slane %v1826, 4
        %v1832 = vrot.slane %v1828, 4
        %v1833 = vsel %vm840, %v1831, %v1832
        %v1834 = vsel %vm840, %v1832, %v1831
        %v1835 = vsel %vm845, %v1834, 0.0
        %v1836 = vsel %vm846, %v1833, 0.0
        %1839 = vrot.lane.b32.xlu0 %v1835, 64
        %v1840 = vpop.permute.xlu0 %1839
        %1841 = vrot.lane.b32.xlu0 %v1836, 64
        %v1842 = vpop.permute.xlu0 %1841
        %v1845 = vmul.f32 %v1807, %v1840
        %v1846 = vmul.f32 %v1808, %v1842
        %v1847 = vadd.f32 %v1845, %v1797
        %v1848 = vadd.f32 %v1846, %v1798
        %1851 = vrot.lane.b32.xlu0 %v1821, 64
        %v1852 = vpop.permute.xlu0 %1851
        %1853 = vrot.lane.b32.xlu0 %v1822, 64
        %v1854 = vpop.permute.xlu0 %1853
        %v1857 = vmul.f32 %v1807, %v1852
        %v1858 = vmul.f32 %v1808, %v1854
        %1861 = vrot.lane.b32.xlu0 %v1857, 64
        %v1862 = vpop.permute.xlu0 %1861
        %1863 = vrot.lane.b32.xlu0 %v1858, 64
        %v1864 = vpop.permute.xlu0 %1863
        %v1867 = vsel %vm895, %v1864, 1.0
        %v1868 = vsel %vm896, %v1862, 1.0
        %1871 = vrot.lane.b32.xlu0 %v1847, 64
        %v1872 = vpop.permute.xlu0 %1871
        %1873 = vrot.lane.b32.xlu0 %v1848, 64
        %v1874 = vpop.permute.xlu0 %1873
        %v1877 = vsel %vm895, %v1874, 0.0
        %v1878 = vsel %vm896, %v1872, 0.0
        %1881 = vrot.lane.b32.xlu0 %v1877, 64
        %v1882 = vpop.permute.xlu0 %1881
        %1883 = vrot.lane.b32.xlu0 %v1878, 64
        %v1884 = vpop.permute.xlu0 %1883
        %v1887 = vmul.f32 %v1857, %v1882
        %v1888 = vmul.f32 %v1858, %v1884
        %v1889 = vadd.f32 %v1887, %v1847
        %v1890 = vadd.f32 %v1888, %v1848
        %1893 = vrot.lane.b32.xlu0 %v1867, 64
        %v1894 = vpop.permute.xlu0 %1893
        %1895 = vrot.lane.b32.xlu0 %v1868, 64
        %v1896 = vpop.permute.xlu0 %1895
        %v1899 = vmul.f32 %v1857, %v1894
        %v1900 = vmul.f32 %v1858, %v1896
        %v1901 = vlaneseq
        %v1902 = vshrl.u32 %v1901, 7
        %v1903 = vsub.s32 4, %v1902
        %v1904 = vrot.slane %v697, %v1903
        %1906 = vrot.lane.b32.xlu0 %v1904, 64
        %v1907 = vpop.permute.xlu0 %1906
        %v1909 = vmul.f32 %v1899, %v1907
        %v1910 = vmul.f32 %v1900, %v1907
        %v1911 = vadd.f32 %v1909, %v1889
        %v1912 = vadd.f32 %v1910, %v1890
        %1913 = vset.pattern.permute.xlu0 4
        %1914 = vperm.xlu0 %1913, %v623
        %v1915 = vpop.permute.xlu0 %1914
        %1917 = vset.pattern.permute.xlu0 4
        %1918 = vperm.xlu0 %1917, %v626
        %v1919 = vpop.permute.xlu0 %1918
        %v1921 = vmul.f32 %v1915, %v1911
        %v1922 = vmul.f32 %v1919, %v1912
        %1925 = vrot.lane.b32.xlu0 %v1921, 64
        %v1926 = vpop.permute.xlu0 %1925
        %1927 = vrot.lane.b32.xlu0 %v1922, 64
        %v1928 = vpop.permute.xlu0 %1927
        %v1931 = vadd.f32 %v1689, %v1926
        %v1932 = vadd.f32 %v1690, %v1928
        %s1933 = sld [smem:[#allocation7 + $0x5]]
        %v1934 = vstv %s1933
        %v1935 = vmul.f32 %v674, %v1934
        %v1936 = vmul.f32 %v675, %v1934
        %v1937 = vmul.f32 %v1935, 1.442695
        %v1938 = vpow.pop %v1937
        %v1939 = vmul.f32 %v1936, 1.442695
        %v1940 = vpow.pop %v1939
        %1941 = vset.pattern.permute.xlu0 5
        %1942 = vperm.xlu0 %1941, %v582
        %v1943 = vpop.permute.xlu0 %1942
        %1945 = vset.pattern.permute.xlu0 5
        %1946 = vperm.xlu0 %1945, %v586
        %v1947 = vpop.permute.xlu0 %1946
        %v1949 = vmul.f32 %v684, %v1943
        %v1950 = vmul.f32 %v685, %v1947
        %1953 = vrot.lane.b32.xlu0 %v1938, 64
        %v1954 = vpop.permute.xlu0 %1953
        %1955 = vrot.lane.b32.xlu0 %v1940, 64
        %v1956 = vpop.permute.xlu0 %1955
        %v1959 = vrot.slane %v1954, 7
        %v1960 = vrot.slane %v1956, 7
        %v1961 = vsel %vm730, %v1959, %v1960
        %v1962 = vsel %vm730, %v1960, %v1959
        %v1963 = vsel %vm735, %v1962, 1.0
        %v1964 = vsel %vm736, %v1961, 1.0
        %1967 = vrot.lane.b32.xlu0 %v1949, 64
        %v1968 = vpop.permute.xlu0 %1967
        %1969 = vrot.lane.b32.xlu0 %v1950, 64
        %v1970 = vpop.permute.xlu0 %1969
        %v1973 = vrot.slane %v1968, 7
        %v1974 = vrot.slane %v1970, 7
        %v1975 = vsel %vm730, %v1973, %v1974
        %v1976 = vsel %vm730, %v1974, %v1973
        %v1977 = vsel %vm735, %v1976, 0.0
        %v1978 = vsel %vm736, %v1975, 0.0
        %1981 = vrot.lane.b32.xlu0 %v1977, 64
        %v1982 = vpop.permute.xlu0 %1981
        %1983 = vrot.lane.b32.xlu0 %v1978, 64
        %v1984 = vpop.permute.xlu0 %1983
        %v1987 = vmul.f32 %v1938, %v1982
        %v1988 = vmul.f32 %v1940, %v1984
        %v1989 = vadd.f32 %v1987, %v1949
        %v1990 = vadd.f32 %v1988, %v1950
        %1993 = vrot.lane.b32.xlu0 %v1963, 64
        %v1994 = vpop.permute.xlu0 %1993
        %1995 = vrot.lane.b32.xlu0 %v1964, 64
        %v1996 = vpop.permute.xlu0 %1995
        %v1999 = vmul.f32 %v1938, %v1994
        %v2000 = vmul.f32 %v1940, %v1996
        %2003 = vrot.lane.b32.xlu0 %v1999, 64
        %v2004 = vpop.permute.xlu0 %2003
        %2005 = vrot.lane.b32.xlu0 %v2000, 64
        %v2006 = vpop.permute.xlu0 %2005
        %v2009 = vrot.slane %v2004, 6
        %v2010 = vrot.slane %v2006, 6
        %v2011 = vsel %vm785, %v2009, %v2010
        %v2012 = vsel %vm785, %v2010, %v2009
        %v2013 = vsel %vm790, %v2012, 1.0
        %v2014 = vsel %vm791, %v2011, 1.0
        %2017 = vrot.lane.b32.xlu0 %v1989, 64
        %v2018 = vpop.permute.xlu0 %2017
        %2019 = vrot.lane.b32.xlu0 %v1990, 64
        %v2020 = vpop.permute.xlu0 %2019
        %v2023 = vrot.slane %v2018, 6
        %v2024 = vrot.slane %v2020, 6
        %v2025 = vsel %vm785, %v2023, %v2024
        %v2026 = vsel %vm785, %v2024, %v2023
        %v2027 = vsel %vm790, %v2026, 0.0
        %v2028 = vsel %vm791, %v2025, 0.0
        %2031 = vrot.lane.b32.xlu0 %v2027, 64
        %v2032 = vpop.permute.xlu0 %2031
        %2033 = vrot.lane.b32.xlu0 %v2028, 64
        %v2034 = vpop.permute.xlu0 %2033
        %v2037 = vmul.f32 %v1999, %v2032
        %v2038 = vmul.f32 %v2000, %v2034
        %v2039 = vadd.f32 %v2037, %v1989
        %v2040 = vadd.f32 %v2038, %v1990
        %2043 = vrot.lane.b32.xlu0 %v2013, 64
        %v2044 = vpop.permute.xlu0 %2043
        %2045 = vrot.lane.b32.xlu0 %v2014, 64
        %v2046 = vpop.permute.xlu0 %2045
        %v2049 = vmul.f32 %v1999, %v2044
        %v2050 = vmul.f32 %v2000, %v2046
        %2053 = vrot.lane.b32.xlu0 %v2049, 64
        %v2054 = vpop.permute.xlu0 %2053
        %2055 = vrot.lane.b32.xlu0 %v2050, 64
        %v2056 = vpop.permute.xlu0 %2055
        %v2059 = vrot.slane %v2054, 4
        %v2060 = vrot.slane %v2056, 4
        %v2061 = vsel %vm840, %v2059, %v2060
        %v2062 = vsel %vm840, %v2060, %v2059
        %v2063 = vsel %vm845, %v2062, 1.0
        %v2064 = vsel %vm846, %v2061, 1.0
        %2067 = vrot.lane.b32.xlu0 %v2039, 64
        %v2068 = vpop.permute.xlu0 %2067
        %2069 = vrot.lane.b32.xlu0 %v2040, 64
        %v2070 = vpop.permute.xlu0 %2069
        %v2073 = vrot.slane %v2068, 4
        %v2074 = vrot.slane %v2070, 4
        %v2075 = vsel %vm840, %v2073, %v2074
        %v2076 = vsel %vm840, %v2074, %v2073
        %v2077 = vsel %vm845, %v2076, 0.0
        %v2078 = vsel %vm846, %v2075, 0.0
        %2081 = vrot.lane.b32.xlu0 %v2077, 64
        %v2082 = vpop.permute.xlu0 %2081
        %2083 = vrot.lane.b32.xlu0 %v2078, 64
        %v2084 = vpop.permute.xlu0 %2083
        %v2087 = vmul.f32 %v2049, %v2082
        %v2088 = vmul.f32 %v2050, %v2084
        %v2089 = vadd.f32 %v2087, %v2039
        %v2090 = vadd.f32 %v2088, %v2040
        %2093 = vrot.lane.b32.xlu0 %v2063, 64
        %v2094 = vpop.permute.xlu0 %2093
        %2095 = vrot.lane.b32.xlu0 %v2064, 64
        %v2096 = vpop.permute.xlu0 %2095
        %v2099 = vmul.f32 %v2049, %v2094
        %v2100 = vmul.f32 %v2050, %v2096
        %2103 = vrot.lane.b32.xlu0 %v2099, 64
        %v2104 = vpop.permute.xlu0 %2103
        %2105 = vrot.lane.b32.xlu0 %v2100, 64
        %v2106 = vpop.permute.xlu0 %2105
        %v2109 = vsel %vm895, %v2106, 1.0
        %v2110 = vsel %vm896, %v2104, 1.0
        %2113 = vrot.lane.b32.xlu0 %v2089, 64
        %v2114 = vpop.permute.xlu0 %2113
        %2115 = vrot.lane.b32.xlu0 %v2090, 64
        %v2116 = vpop.permute.xlu0 %2115
        %v2119 = vsel %vm895, %v2116, 0.0
        %v2120 = vsel %vm896, %v2114, 0.0
        %2123 = vrot.lane.b32.xlu0 %v2119, 64
        %v2124 = vpop.permute.xlu0 %2123
        %2125 = vrot.lane.b32.xlu0 %v2120, 64
        %v2126 = vpop.permute.xlu0 %2125
        %v2129 = vmul.f32 %v2099, %v2124
        %v2130 = vmul.f32 %v2100, %v2126
        %v2131 = vadd.f32 %v2129, %v2089
        %v2132 = vadd.f32 %v2130, %v2090
        %2135 = vrot.lane.b32.xlu0 %v2109, 64
        %v2136 = vpop.permute.xlu0 %2135
        %2137 = vrot.lane.b32.xlu0 %v2110, 64
        %v2138 = vpop.permute.xlu0 %2137
        %v2141 = vmul.f32 %v2099, %v2136
        %v2142 = vmul.f32 %v2100, %v2138
        %v2143 = vlaneseq
        %v2144 = vshrl.u32 %v2143, 7
        %v2145 = vsub.s32 5, %v2144
        %v2146 = vrot.slane %v697, %v2145
        %2148 = vrot.lane.b32.xlu0 %v2146, 64
        %v2149 = vpop.permute.xlu0 %2148
        %v2151 = vmul.f32 %v2141, %v2149
        %v2152 = vmul.f32 %v2142, %v2149
        %v2153 = vadd.f32 %v2151, %v2131
        %v2154 = vadd.f32 %v2152, %v2132
        %2155 = vset.pattern.permute.xlu0 5
        %2156 = vperm.xlu0 %2155, %v623
        %v2157 = vpop.permute.xlu0 %2156
        %2159 = vset.pattern.permute.xlu0 5
        %2160 = vperm.xlu0 %2159, %v626
        %v2161 = vpop.permute.xlu0 %2160
        %v2163 = vmul.f32 %v2157, %v2153
        %v2164 = vmul.f32 %v2161, %v2154
        %2167 = vrot.lane.b32.xlu0 %v2163, 64
        %v2168 = vpop.permute.xlu0 %2167
        %2169 = vrot.lane.b32.xlu0 %v2164, 64
        %v2170 = vpop.permute.xlu0 %2169
        %v2173 = vadd.f32 %v1931, %v2168
        %v2174 = vadd.f32 %v1932, %v2170
        %s2175 = sld [smem:[#allocation7 + $0x6]]
        %v2176 = vstv %s2175
        %v2177 = vmul.f32 %v674, %v2176
        %v2178 = vmul.f32 %v675, %v2176
        %v2179 = vmul.f32 %v2177, 1.442695
        %v2180 = vpow.pop %v2179
        %v2181 = vmul.f32 %v2178, 1.442695
        %v2182 = vpow.pop %v2181
        %2183 = vset.pattern.permute.xlu0 6
        %2184 = vperm.xlu0 %2183, %v582
        %v2185 = vpop.permute.xlu0 %2184
        %2187 = vset.pattern.permute.xlu0 6
        %2188 = vperm.xlu0 %2187, %v586
        %v2189 = vpop.permute.xlu0 %2188
        %v2191 = vmul.f32 %v684, %v2185
        %v2192 = vmul.f32 %v685, %v2189
        %2195 = vrot.lane.b32.xlu0 %v2180, 64
        %v2196 = vpop.permute.xlu0 %2195
        %2197 = vrot.lane.b32.xlu0 %v2182, 64
        %v2198 = vpop.permute.xlu0 %2197
        %v2201 = vrot.slane %v2196, 7
        %v2202 = vrot.slane %v2198, 7
        %v2203 = vsel %vm730, %v2201, %v2202
        %v2204 = vsel %vm730, %v2202, %v2201
        %v2205 = vsel %vm735, %v2204, 1.0
        %v2206 = vsel %vm736, %v2203, 1.0
        %2209 = vrot.lane.b32.xlu0 %v2191, 64
        %v2210 = vpop.permute.xlu0 %2209
        %2211 = vrot.lane.b32.xlu0 %v2192, 64
        %v2212 = vpop.permute.xlu0 %2211
        %v2215 = vrot.slane %v2210, 7
        %v2216 = vrot.slane %v2212, 7
        %v2217 = vsel %vm730, %v2215, %v2216
        %v2218 = vsel %vm730, %v2216, %v2215
        %v2219 = vsel %vm735, %v2218, 0.0
        %v2220 = vsel %vm736, %v2217, 0.0
        %2223 = vrot.lane.b32.xlu0 %v2219, 64
        %v2224 = vpop.permute.xlu0 %2223
        %2225 = vrot.lane.b32.xlu0 %v2220, 64
        %v2226 = vpop.permute.xlu0 %2225
        %v2229 = vmul.f32 %v2180, %v2224
        %v2230 = vmul.f32 %v2182, %v2226
        %v2231 = vadd.f32 %v2229, %v2191
        %v2232 = vadd.f32 %v2230, %v2192
        %2235 = vrot.lane.b32.xlu0 %v2205, 64
        %v2236 = vpop.permute.xlu0 %2235
        %2237 = vrot.lane.b32.xlu0 %v2206, 64
        %v2238 = vpop.permute.xlu0 %2237
        %v2241 = vmul.f32 %v2180, %v2236
        %v2242 = vmul.f32 %v2182, %v2238
        %2245 = vrot.lane.b32.xlu0 %v2241, 64
        %v2246 = vpop.permute.xlu0 %2245
        %2247 = vrot.lane.b32.xlu0 %v2242, 64
        %v2248 = vpop.permute.xlu0 %2247
        %v2251 = vrot.slane %v2246, 6
        %v2252 = vrot.slane %v2248, 6
        %v2253 = vsel %vm785, %v2251, %v2252
        %v2254 = vsel %vm785, %v2252, %v2251
        %v2255 = vsel %vm790, %v2254, 1.0
        %v2256 = vsel %vm791, %v2253, 1.0
        %2259 = vrot.lane.b32.xlu0 %v2231, 64
        %v2260 = vpop.permute.xlu0 %2259
        %2261 = vrot.lane.b32.xlu0 %v2232, 64
        %v2262 = vpop.permute.xlu0 %2261
        %v2265 = vrot.slane %v2260, 6
        %v2266 = vrot.slane %v2262, 6
        %v2267 = vsel %vm785, %v2265, %v2266
        %v2268 = vsel %vm785, %v2266, %v2265
        %v2269 = vsel %vm790, %v2268, 0.0
        %v2270 = vsel %vm791, %v2267, 0.0
        %2273 = vrot.lane.b32.xlu0 %v2269, 64
        %v2274 = vpop.permute.xlu0 %2273
        %2275 = vrot.lane.b32.xlu0 %v2270, 64
        %v2276 = vpop.permute.xlu0 %2275
        %v2279 = vmul.f32 %v2241, %v2274
        %v2280 = vmul.f32 %v2242, %v2276
        %v2281 = vadd.f32 %v2279, %v2231
        %v2282 = vadd.f32 %v2280, %v2232
        %2285 = vrot.lane.b32.xlu0 %v2255, 64
        %v2286 = vpop.permute.xlu0 %2285
        %2287 = vrot.lane.b32.xlu0 %v2256, 64
        %v2288 = vpop.permute.xlu0 %2287
        %v2291 = vmul.f32 %v2241, %v2286
        %v2292 = vmul.f32 %v2242, %v2288
        %2295 = vrot.lane.b32.xlu0 %v2291, 64
        %v2296 = vpop.permute.xlu0 %2295
        %2297 = vrot.lane.b32.xlu0 %v2292, 64
        %v2298 = vpop.permute.xlu0 %2297
        %v2301 = vrot.slane %v2296, 4
        %v2302 = vrot.slane %v2298, 4
        %v2303 = vsel %vm840, %v2301, %v2302
        %v2304 = vsel %vm840, %v2302, %v2301
        %v2305 = vsel %vm845, %v2304, 1.0
        %v2306 = vsel %vm846, %v2303, 1.0
        %2309 = vrot.lane.b32.xlu0 %v2281, 64
        %v2310 = vpop.permute.xlu0 %2309
        %2311 = vrot.lane.b32.xlu0 %v2282, 64
        %v2312 = vpop.permute.xlu0 %2311
        %v2315 = vrot.slane %v2310, 4
        %v2316 = vrot.slane %v2312, 4
        %v2317 = vsel %vm840, %v2315, %v2316
        %v2318 = vsel %vm840, %v2316, %v2315
        %v2319 = vsel %vm845, %v2318, 0.0
        %v2320 = vsel %vm846, %v2317, 0.0
        %2323 = vrot.lane.b32.xlu0 %v2319, 64
        %v2324 = vpop.permute.xlu0 %2323
        %2325 = vrot.lane.b32.xlu0 %v2320, 64
        %v2326 = vpop.permute.xlu0 %2325
        %v2329 = vmul.f32 %v2291, %v2324
        %v2330 = vmul.f32 %v2292, %v2326
        %v2331 = vadd.f32 %v2329, %v2281
        %v2332 = vadd.f32 %v2330, %v2282
        %2335 = vrot.lane.b32.xlu0 %v2305, 64
        %v2336 = vpop.permute.xlu0 %2335
        %2337 = vrot.lane.b32.xlu0 %v2306, 64
        %v2338 = vpop.permute.xlu0 %2337
        %v2341 = vmul.f32 %v2291, %v2336
        %v2342 = vmul.f32 %v2292, %v2338
        %2345 = vrot.lane.b32.xlu0 %v2341, 64
        %v2346 = vpop.permute.xlu0 %2345
        %2347 = vrot.lane.b32.xlu0 %v2342, 64
        %v2348 = vpop.permute.xlu0 %2347
        %v2351 = vsel %vm895, %v2348, 1.0
        %v2352 = vsel %vm896, %v2346, 1.0
        %2355 = vrot.lane.b32.xlu0 %v2331, 64
        %v2356 = vpop.permute.xlu0 %2355
        %2357 = vrot.lane.b32.xlu0 %v2332, 64
        %v2358 = vpop.permute.xlu0 %2357
        %v2361 = vsel %vm895, %v2358, 0.0
        %v2362 = vsel %vm896, %v2356, 0.0
        %2365 = vrot.lane.b32.xlu0 %v2361, 64
        %v2366 = vpop.permute.xlu0 %2365
        %2367 = vrot.lane.b32.xlu0 %v2362, 64
        %v2368 = vpop.permute.xlu0 %2367
        %v2371 = vmul.f32 %v2341, %v2366
        %v2372 = vmul.f32 %v2342, %v2368
        %v2373 = vadd.f32 %v2371, %v2331
        %v2374 = vadd.f32 %v2372, %v2332
        %2377 = vrot.lane.b32.xlu0 %v2351, 64
        %v2378 = vpop.permute.xlu0 %2377
        %2379 = vrot.lane.b32.xlu0 %v2352, 64
        %v2380 = vpop.permute.xlu0 %2379
        %v2383 = vmul.f32 %v2341, %v2378
        %v2384 = vmul.f32 %v2342, %v2380
        %v2385 = vlaneseq
        %v2386 = vshrl.u32 %v2385, 7
        %v2387 = vsub.s32 6, %v2386
        %v2388 = vrot.slane %v697, %v2387
        %2390 = vrot.lane.b32.xlu0 %v2388, 64
        %v2391 = vpop.permute.xlu0 %2390
        %v2393 = vmul.f32 %v2383, %v2391
        %v2394 = vmul.f32 %v2384, %v2391
        %v2395 = vadd.f32 %v2393, %v2373
        %v2396 = vadd.f32 %v2394, %v2374
        %2397 = vset.pattern.permute.xlu0 6
        %2398 = vperm.xlu0 %2397, %v623
        %v2399 = vpop.permute.xlu0 %2398
        %2401 = vset.pattern.permute.xlu0 6
        %2402 = vperm.xlu0 %2401, %v626
        %v2403 = vpop.permute.xlu0 %2402
        %v2405 = vmul.f32 %v2399, %v2395
        %v2406 = vmul.f32 %v2403, %v2396
        %2409 = vrot.lane.b32.xlu0 %v2405, 64
        %v2410 = vpop.permute.xlu0 %2409
        %2411 = vrot.lane.b32.xlu0 %v2406, 64
        %v2412 = vpop.permute.xlu0 %2411
        %v2415 = vadd.f32 %v2173, %v2410
        %v2416 = vadd.f32 %v2174, %v2412
        %s2417 = sld [smem:[#allocation7 + $0x7]]
        %v2418 = vstv %s2417
        %v2419 = vmul.f32 %v674, %v2418
        %v2420 = vmul.f32 %v675, %v2418
        %v2421 = vmul.f32 %v2419, 1.442695
        %v2422 = vpow.pop %v2421
        %v2423 = vmul.f32 %v2420, 1.442695
        %v2424 = vpow.pop %v2423
        %2425 = vset.pattern.permute.xlu0 7
        %2426 = vperm.xlu0 %2425, %v582
        %v2427 = vpop.permute.xlu0 %2426
        %2429 = vset.pattern.permute.xlu0 7
        %2430 = vperm.xlu0 %2429, %v586
        %v2431 = vpop.permute.xlu0 %2430
        %v2433 = vmul.f32 %v684, %v2427
        %v2434 = vmul.f32 %v685, %v2431
        %2437 = vrot.lane.b32.xlu0 %v2422, 64
        %v2438 = vpop.permute.xlu0 %2437
        %2439 = vrot.lane.b32.xlu0 %v2424, 64
        %v2440 = vpop.permute.xlu0 %2439
        %v2443 = vrot.slane %v2438, 7
        %v2444 = vrot.slane %v2440, 7
        %v2445 = vsel %vm730, %v2443, %v2444
        %v2446 = vsel %vm730, %v2444, %v2443
        %v2447 = vsel %vm735, %v2446, 1.0
        %v2448 = vsel %vm736, %v2445, 1.0
        %2451 = vrot.lane.b32.xlu0 %v2433, 64
        %v2452 = vpop.permute.xlu0 %2451
        %2453 = vrot.lane.b32.xlu0 %v2434, 64
        %v2454 = vpop.permute.xlu0 %2453
        %v2457 = vrot.slane %v2452, 7
        %v2458 = vrot.slane %v2454, 7
        %v2459 = vsel %vm730, %v2457, %v2458
        %v2460 = vsel %vm730, %v2458, %v2457
        %v2461 = vsel %vm735, %v2460, 0.0
        %v2462 = vsel %vm736, %v2459, 0.0
        %2465 = vrot.lane.b32.xlu0 %v2461, 64
        %v2466 = vpop.permute.xlu0 %2465
        %2467 = vrot.lane.b32.xlu0 %v2462, 64
        %v2468 = vpop.permute.xlu0 %2467
        %v2471 = vmul.f32 %v2422, %v2466
        %v2472 = vmul.f32 %v2424, %v2468
        %v2473 = vadd.f32 %v2471, %v2433
        %v2474 = vadd.f32 %v2472, %v2434
        %2477 = vrot.lane.b32.xlu0 %v2447, 64
        %v2478 = vpop.permute.xlu0 %2477
        %2479 = vrot.lane.b32.xlu0 %v2448, 64
        %v2480 = vpop.permute.xlu0 %2479
        %v2483 = vmul.f32 %v2422, %v2478
        %v2484 = vmul.f32 %v2424, %v2480
        %2487 = vrot.lane.b32.xlu0 %v2483, 64
        %v2488 = vpop.permute.xlu0 %2487
        %2489 = vrot.lane.b32.xlu0 %v2484, 64
        %v2490 = vpop.permute.xlu0 %2489
        %v2493 = vrot.slane %v2488, 6
        %v2494 = vrot.slane %v2490, 6
        %v2495 = vsel %vm785, %v2493, %v2494
        %v2496 = vsel %vm785, %v2494, %v2493
        %v2497 = vsel %vm790, %v2496, 1.0
        %v2498 = vsel %vm791, %v2495, 1.0
        %2501 = vrot.lane.b32.xlu0 %v2473, 64
        %v2502 = vpop.permute.xlu0 %2501
        %2503 = vrot.lane.b32.xlu0 %v2474, 64
        %v2504 = vpop.permute.xlu0 %2503
        %v2507 = vrot.slane %v2502, 6
        %v2508 = vrot.slane %v2504, 6
        %v2509 = vsel %vm785, %v2507, %v2508
        %v2510 = vsel %vm785, %v2508, %v2507
        %v2511 = vsel %vm790, %v2510, 0.0
        %v2512 = vsel %vm791, %v2509, 0.0
        %2515 = vrot.lane.b32.xlu0 %v2511, 64
        %v2516 = vpop.permute.xlu0 %2515
        %2517 = vrot.lane.b32.xlu0 %v2512, 64
        %v2518 = vpop.permute.xlu0 %2517
        %v2521 = vmul.f32 %v2483, %v2516
        %v2522 = vmul.f32 %v2484, %v2518
        %v2523 = vadd.f32 %v2521, %v2473
        %v2524 = vadd.f32 %v2522, %v2474
        %2527 = vrot.lane.b32.xlu0 %v2497, 64
        %v2528 = vpop.permute.xlu0 %2527
        %2529 = vrot.lane.b32.xlu0 %v2498, 64
        %v2530 = vpop.permute.xlu0 %2529
        %v2533 = vmul.f32 %v2483, %v2528
        %v2534 = vmul.f32 %v2484, %v2530
        %2537 = vrot.lane.b32.xlu0 %v2533, 64
        %v2538 = vpop.permute.xlu0 %2537
        %2539 = vrot.lane.b32.xlu0 %v2534, 64
        %v2540 = vpop.permute.xlu0 %2539
        %v2543 = vrot.slane %v2538, 4
        %v2544 = vrot.slane %v2540, 4
        %v2545 = vsel %vm840, %v2543, %v2544
        %v2546 = vsel %vm840, %v2544, %v2543
        %v2547 = vsel %vm845, %v2546, 1.0
        %v2548 = vsel %vm846, %v2545, 1.0
        %2551 = vrot.lane.b32.xlu0 %v2523, 64
        %v2552 = vpop.permute.xlu0 %2551
        %2553 = vrot.lane.b32.xlu0 %v2524, 64
        %v2554 = vpop.permute.xlu0 %2553
        %v2557 = vrot.slane %v2552, 4
        %v2558 = vrot.slane %v2554, 4
        %v2559 = vsel %vm840, %v2557, %v2558
        %v2560 = vsel %vm840, %v2558, %v2557
        %v2561 = vsel %vm845, %v2560, 0.0
        %v2562 = vsel %vm846, %v2559, 0.0
        %2565 = vrot.lane.b32.xlu0 %v2561, 64
        %v2566 = vpop.permute.xlu0 %2565
        %2567 = vrot.lane.b32.xlu0 %v2562, 64
        %v2568 = vpop.permute.xlu0 %2567
        %v2571 = vmul.f32 %v2533, %v2566
        %v2572 = vmul.f32 %v2534, %v2568
        %v2573 = vadd.f32 %v2571, %v2523
        %v2574 = vadd.f32 %v2572, %v2524
        %2577 = vrot.lane.b32.xlu0 %v2547, 64
        %v2578 = vpop.permute.xlu0 %2577
        %2579 = vrot.lane.b32.xlu0 %v2548, 64
        %v2580 = vpop.permute.xlu0 %2579
        %v2583 = vmul.f32 %v2533, %v2578
        %v2584 = vmul.f32 %v2534, %v2580
        %2587 = vrot.lane.b32.xlu0 %v2583, 64
        %v2588 = vpop.permute.xlu0 %2587
        %2589 = vrot.lane.b32.xlu0 %v2584, 64
        %v2590 = vpop.permute.xlu0 %2589
        %v2593 = vsel %vm895, %v2590, 1.0
        %v2594 = vsel %vm896, %v2588, 1.0
        %2597 = vrot.lane.b32.xlu0 %v2573, 64
        %v2598 = vpop.permute.xlu0 %2597
        %2599 = vrot.lane.b32.xlu0 %v2574, 64
        %v2600 = vpop.permute.xlu0 %2599
        %v2603 = vsel %vm895, %v2600, 0.0
        %v2604 = vsel %vm896, %v2598, 0.0
        %2607 = vrot.lane.b32.xlu0 %v2603, 64
        %v2608 = vpop.permute.xlu0 %2607
        %2609 = vrot.lane.b32.xlu0 %v2604, 64
        %v2610 = vpop.permute.xlu0 %2609
        %v2613 = vmul.f32 %v2583, %v2608
        %v2614 = vmul.f32 %v2584, %v2610
        %v2615 = vadd.f32 %v2613, %v2573
        %v2616 = vadd.f32 %v2614, %v2574
        %2619 = vrot.lane.b32.xlu0 %v2593, 64
        %v2620 = vpop.permute.xlu0 %2619
        %2621 = vrot.lane.b32.xlu0 %v2594, 64
        %v2622 = vpop.permute.xlu0 %2621
        %v2625 = vmul.f32 %v2583, %v2620
        %v2626 = vmul.f32 %v2584, %v2622
        %v2627 = vlaneseq
        %v2628 = vshrl.u32 %v2627, 7
        %v2629 = vsub.s32 7, %v2628
        %v2630 = vrot.slane %v697, %v2629
        %2632 = vrot.lane.b32.xlu0 %v2630, 64
        %v2633 = vpop.permute.xlu0 %2632
        %v2635 = vmul.f32 %v2625, %v2633
        %v2636 = vmul.f32 %v2626, %v2633
        %v2637 = vadd.f32 %v2635, %v2615
        %v2638 = vadd.f32 %v2636, %v2616
        %2639 = vset.pattern.permute.xlu0 7
        %2640 = vperm.xlu0 %2639, %v623
        %v2641 = vpop.permute.xlu0 %2640
        %2643 = vset.pattern.permute.xlu0 7
        %2644 = vperm.xlu0 %2643, %v626
        %v2645 = vpop.permute.xlu0 %2644
        %v2647 = vmul.f32 %v2641, %v2637
        %v2648 = vmul.f32 %v2645, %v2638
        %2651 = vrot.lane.b32.xlu0 %v2647, 64
        %v2652 = vpop.permute.xlu0 %2651
        %2653 = vrot.lane.b32.xlu0 %v2648, 64
        %v2654 = vpop.permute.xlu0 %2653
        %v2657 = vadd.f32 %v2415, %v2652
        %v2658 = vadd.f32 %v2416, %v2654
        %v2660 = vrot.slane %v942, 7
        %v2663 = vrot.slane %v1186, 6
        %v2666 = vrot.slane %v1428, 5
        %v2669 = vrot.slane %v1670, 4
        %v2672 = vrot.slane %v1912, 3
        %v2675 = vrot.slane %v2154, 2
        %v2678 = vrot.slane %v2396, 1
        %vm2680 = vcmask 1040384
        %v2681 = vsel %vm2680, %v2660, %v2663
        %vm2682 = vcmask 1041408
        %v2683 = vsel %vm2682, %v2681, %v2666
        %vm2684 = vcmask 1042432
        %v2685 = vsel %vm2684, %v2683, %v2669
        %vm2686 = vcmask 1043456
        %v2687 = vsel %vm2686, %v2685, %v2672
        %vm2688 = vcmask 1044480
        %v2689 = vsel %vm2688, %v2687, %v2675
        %vm2690 = vcmask 1045504
        %v2691 = vsel %vm2690, %v2689, %v2678
        %vm2692 = vcmask 1046528
        %v2693 = vsel %vm2692, %v2691, %v2638
        %2695 = vrot.lane.b32.xlu0 %v2693, 64
        %v2696 = vpop.permute.xlu0 %2695
        %2698 = vst.msk [vmem:[#allocation2] sm:$0xff] %vm541, %v2696
        %v2699 = vmul.f32 %v2657, %v679
        %v2700 = vmul.f32 %v2658, %v681
        %v2701 = vpack.c.bf16 %v2700, %v2699
        %v2702 = vld [vmem:[%s6] sm:$0xf]
        %v2703 = vld [vmem:[%s6 + $0x4] sm:$0xf]
        %v2704 = vld [vmem:[%s6 + $0x8] sm:$0xf]
        %v2705 = vld [vmem:[%s6 + $0xc] sm:$0xf]
        %v2706 = vld [vmem:[%s6 + $0x10] sm:$0xf]
        %v2707 = vld [vmem:[%s6 + $0x14] sm:$0xf]
        %v2708 = vld [vmem:[%s6 + $0x18] sm:$0xf]
        %v2709 = vld [vmem:[%s6 + $0x1c] sm:$0xf]
        %v2710 = vld [vmem:[%s7] sm:$0x1]
        %v2712 = vlaneseq
        %v2713 = vshrl.u32 %v2712, 7
        %v2714 = vsub.s32 0, %v2713
        %v2715 = vrot.slane %v2710, %v2714
        %v2725 = vunpack.c.l.b16 %v2702
        %v2726 = vunpack.c.l.b16 %v2703
        %v2727 = vunpack.c.l.b16 %v2704
        %v2728 = vunpack.c.l.b16 %v2705
        %v2729 = vunpack.c.l.b16 %v2706
        %v2730 = vunpack.c.l.b16 %v2707
        %v2731 = vunpack.c.l.b16 %v2708
        %v2732 = vunpack.c.l.b16 %v2709
        %v2733 = vpack.c.b16 %v2726, %v2725
        %v2734 = vpack.c.b16 %v2728, %v2727
        %v2735 = vpack.c.b16 %v2730, %v2729
        %v2736 = vpack.c.b16 %v2732, %v2731
        %v2742 = vsel %vm541, %v2701, 0
        %2744 = vmatprep.subr.bf16.mxu0 0
        %2745 = vmatpush1.bf16.msra.mxu0 0
        %2746 = vmatprep.subr.bf16.mxu0 0
        %2747 = vmatpush1.bf16.msra.mxu0 0
        %2748 = vmatprep.subr.bf16.mxu0 0
        %2749 = vmatpush1.bf16.msra.mxu0 0
        %2750 = vmatprep.subr.bf16.mxu0 0
        %2751 = vmatpush1.bf16.msra.mxu0 0
        %2752 = vmatprep.subr.bf16.mxu0 0
        %2753 = vmatpush1.bf16.msra.mxu0 %v2736
        %2754 = vmatprep.subr.bf16.mxu0 0
        %2755 = vmatpush1.bf16.msra.mxu0 %v2735
        %2756 = vmatprep.subr.bf16.mxu0 0
        %2757 = vmatpush1.bf16.msra.mxu0 %v2734
        %2758 = vmatprep.subr.bf16.mxu0 0
        %2759 = vmatpush1.bf16.msra.mxu0 %v2733
        %2760 = vmatprep.subr.bf16.mxu0 0
        %2761 = vmatpush2.bf16.msra.mxu0 0
        %2762 = vmatprep.subr.bf16.mxu0 0
        %2763 = vmatpush2.bf16.msra.mxu0 0
        %2764 = vmatprep.subr.bf16.mxu0 0
        %2765 = vmatpush2.bf16.msra.mxu0 0
        %2766 = vmatprep.subr.bf16.mxu0 0
        %2767 = vmatpush2.bf16.msra.mxu0 0
        %2768 = vmatprep.subr.bf16.mxu0 0
        %2769 = vmatpush2.bf16.msra.mxu0 0
        %2770 = vmatprep.subr.bf16.mxu0 0
        %2771 = vmatpush2.bf16.msra.mxu0 0
        %2772 = vmatprep.subr.bf16.mxu0 0
        %2773 = vmatpush2.bf16.msra.mxu0 0
        %2774 = vmatprep.subr.bf16.mxu0 0
        %2775 = vmatpush2.bf16.msra.mxu0 0
        %2776 = vmatprep.mubr.bf16.mxu0 0
        %2777 = vmatmul.mubr.bf16.gmra.mxu0 %v2742
        %v2778 = vpop.f32.mrf.mxu0
        %v2779 = vadd.f32 %v2715, %v2778
        %v2780 = vpop.f32.mrf.mxu0
        %v2781 = vpop.f32.mrf.mxu0
        %v2782 = vadd.f32 %v2715, %v2781
        %v2783 = vpop.f32.mrf.mxu0
        %2784 = vdwg.mxu0
        %2785 = vst.msk [vmem:[%s352] sm:$0xff] %vm401, %v2779
        %2786 = vst.msk [vmem:[%s352 + $0x8] sm:$0xff] %vm401, %v2782
        %s2787 = sand.u32 %s221, 1
        %s2788 = scalar_lea.sflag [#allocation5], %s2787
        %s2789 = sand.u32 %s221, 1
        %s2790 = smul.addr %s2789, 16
        %s2791 = scalar_lea.vmem [#allocation8], %s2790
        // Predicated region
        $region65: #{tpu_custom_call.1} parent=51 // pred_check
          %p2792 = pneg %p231
        $region66: #{tpu_custom_call.1} parent=51 // pred_check_branch
          %2794 = sbr.rel (%p2792) target = $region68
        $region67: #{tpu_custom_call.1} parent=51 // pred_region
          %s2795 = smul.u32 2, %s29
          %s2797 = ssub.s32 256, 256
          %2798 = vsyncadd %s2788, %s2797
          %s2799 = smul.addr %s28, 4
          %s2800 = sadd.s32 %s2795, %s2799
          %s2801 = smul.addr %s2800, 128
          %s2802 = scalar_lea.hbm %s8, %s2801
          %s2803 = sshll.u32 %s2791, 4
          %s2804 = int_to_ptr.vmem [resolvable:$true] %s2803
          %2809 = dma.vmem_to_hbm [thread:$0]  %s2804, 256, %s2802, %s2788, 128, 128, 8
        $region68: #{tpu_custom_call.1} parent=51 // pred_fallthru
          _
      $region52: #{tpu_custom_call.1} parent=5 // pred_fallthru
        _
      %p2810 = scmp.le.s32.totalorder 2, %s19
      // Predicated region
      $region69: #{tpu_custom_call.1} parent=5 // pred_check
        %p2811 = pneg %p2810
      $region70: #{tpu_custom_call.1} parent=5 // pred_check_branch
        %2813 = sbr.rel (%p2811) target = $region72
      $region71: #{tpu_custom_call.1} parent=5 // pred_region
        %s2814 = ssub.s32 %s19, 2
        // Predicated region
        $region73: #{tpu_custom_call.1} parent=71 // pred_check
          %p2815 = pneg %p237
        $region74: #{tpu_custom_call.1} parent=71 // pred_check_branch
          %2817 = sbr.rel (%p2815) target = $region76
        $region75: #{tpu_custom_call.1} parent=71 // pred_region
          %s2818 = sand.u32 %s222, 1
          %s2819 = scalar_lea.sflag [#allocation5], %s2818
          %s2820 = sand.u32 %s222, 1
          %s2821 = smul.addr %s2820, 16
          %s2822 = scalar_lea.vmem [#allocation8], %s2821
          %2823 = dma.done %s2819, 256
        $region76: #{tpu_custom_call.1} parent=71 // pred_fallthru
          _
      $region72: #{tpu_custom_call.1} parent=5 // pred_fallthru
        _
    $region6: #{tpu_custom_call.1} parent=1 // loop_footer
      %s23 = sadd.s32 1, %s19
    $region7: #{tpu_custom_call.1} parent=1 // loop_footer_branch
      %18 = sbr.rel target = $region3
    $region8: #{tpu_custom_call.1} parent=1 // loop_exit
      _
    %2824 = vsyncpa [#allocation4], 1
    %s2825 = scalar_lea.sflag [#allocation4], 1
    %2826 = vsyncpa %s2825, 1
    %2827 = vsyncpa [#allocation5], 1
    %s2828 = scalar_lea.sflag [#allocation5], 1
    %2829 = vsyncpa %s2828, 1
    %2830 = vsyncpa [#allocation6], 1
    %s2831 = scalar_lea.sflag [#allocation6], 1
    %2832 = vsyncpa %s2831, 1

</llo_original>
